<compile_context>
chip_gen: v6e
topology: v6e:2x2x1
jax: 0.10.0
libtpu: 0.0.40
codegen_flags: <defaults>
</compile_context>

<pallas_src>
import functools
import math

import jax
import jax.numpy as jnp
from jax.experimental import pallas as pl
from jax.experimental.pallas import tpu as pltpu


# ----------------------------- Pallas kernel ------------------------------ #
def _gru_kernel(T, Bp, G,
                x_ref,                        # (T*Bp, I)  bf16, time-major
                wih_ref, bih_ref,             # (I, 6G) bf16, (1, 6G) f32
                whhf_ref, bhhf_ref,           # (G, 3G) bf16, (1, 3G) f32
                whhb_ref, bhhb_ref,           # (G, 3G) bf16, (1, 3G) f32
                fcwf_ref, fcwb_ref, fcb_ref,  # (G, Op) bf16 x2, (1, Op) f32
                out_ref, hn_ref,              # (Bp, Op) f32, (Bp, 2G) f32
                gx_ref):                      # scratch (T*Bp, 6G) f32
    G2, G3 = 2 * G, 3 * G

    # ---- hoisted input projection: ONE bf16 MXU dot for all t, both dirs ----
    # Staged in VMEM scratch so the fully unrolled recurrence only keeps one
    # Bp-row slab per direction live at a time (flat vreg pressure).
    gx_ref[...] = (jnp.dot(x_ref[...], wih_ref[...],
                           preferred_element_type=jnp.float32) + bih_ref[...])

    whhf = whhf_ref[...]
    whhb = whhb_ref[...]
    bhhf = bhhf_ref[...]
    bhhb = bhhb_ref[...]

    # per-direction hidden state, lane-padded to G (padding columns stay 0:
    # padded weight rows/cols and padded biases are 0 -> r=z=0.5, n=0, h_pad=0)
    hf = jnp.zeros((Bp, G), jnp.float32)
    hb = jnp.zeros((Bp, G), jnp.float32)

    def gru_gates(gx, gh, h):
        # every slice below starts at a multiple of 128 lanes (own gate slab)
        r = jax.nn.sigmoid(gx[:, :G] + gh[:, :G])
        z = jax.nn.sigmoid(gx[:, G:G2] + gh[:, G:G2])
        n = jnp.tanh(gx[:, G2:] + r * gh[:, G2:])          # b_hn inside r* term
        return (1.0 - z) * n + z * h

    # ---- serial recurrence, fully unrolled (T small & static) ----
    for t in range(T):
        # two independent per-direction recurrent dots issued back-to-back so
        # one direction's MXU latency is hidden under the other's EUP/VPU work
        ghf = jnp.dot(hf.astype(jnp.bfloat16), whhf,
                      preferred_element_type=jnp.float32) + bhhf
        ghb = jnp.dot(hb.astype(jnp.bfloat16), whhb,
                      preferred_element_type=jnp.float32) + bhhb
        gxf = gx_ref[t * Bp:(t + 1) * Bp, :G3]               # fwd gates of x[t]
        gxb = gx_ref[(T - 1 - t) * Bp:(T - t) * Bp, G3:]     # bwd gates of x[T-1-t]
        hf = gru_gates(gxf, ghf, hf)
        hb = gru_gates(gxb, ghb, hb)

    # ---- lane-dense stores + fc head straight from vregs ----
    hn_ref[:, :G] = hf
    hn_ref[:, G:] = hb
    out_ref[...] = (jnp.dot(hf.astype(jnp.bfloat16), fcwf_ref[...],
                            preferred_element_type=jnp.float32)
                    + jnp.dot(hb.astype(jnp.bfloat16), fcwb_ref[...],
                              preferred_element_type=jnp.float32)
                    + fcb_ref[...])


# ------------------------------ param packing ------------------------------ #
def _pack_params(p, G, Op):
    """Fuse per-gate / per-direction weights into 128-lane-aligned gate slabs."""
    H = p["w_hh_f"].shape[-1]
    I = p["w_ih_f"].shape[1]
    O = p["fc_w"].shape[-1]

    def pad_gates(w, rows):      # (3, rows, H) -> (rows, 3G), one 128-lane slab/gate
        out = jnp.zeros((rows, 3 * G), jnp.float32)
        for g in range(3):
            out = out.at[:, g * G:g * G + H].set(w[g])
        return out

    def pad_hh(w):               # (3, H, H) -> (G, 3G), zero-padded rows & cols
        out = jnp.zeros((G, 3 * G), jnp.float32)
        for g in range(3):
            out = out.at[:H, g * G:g * G + H].set(w[g])
        return out

    wih = jnp.concatenate([pad_gates(p["w_ih_f"], I),
                           pad_gates(p["w_ih_b"], I)], axis=1)        # (I, 6G)
    bih = jnp.concatenate([pad_gates(p["b_ih_f"], 1),
                           pad_gates(p["b_ih_b"], 1)], axis=1)        # (1, 6G)
    whhf, whhb = pad_hh(p["w_hh_f"]), pad_hh(p["w_hh_b"])             # (G, 3G)
    bhhf, bhhb = pad_gates(p["b_hh_f"], 1), pad_gates(p["b_hh_b"], 1)  # (1, 3G)

    fcwf = jnp.zeros((G, Op), jnp.float32).at[:H, :O].set(p["fc_w"][:H])
    fcwb = jnp.zeros((G, Op), jnp.float32).at[:H, :O].set(p["fc_w"][H:])
    fcb = jnp.zeros((1, Op), jnp.float32).at[:, :O].set(p["fc_b"])
    return wih, bih, whhf, bhhf, whhb, bhhb, fcwf, fcwb, fcb


# --------------------------------- wrapper --------------------------------- #
@jax.jit
def gru_model_forward(x_btI, params):
    """x_btI: (B, T, I) batch-first like PyTorch. Returns (output, hn)."""
    x = x_btI.astype(jnp.float32)
    B, T, I = x.shape
    H = params["w_hh_f"].shape[-1]
    O = params["fc_w"].shape[-1]

    G = ((H + 127) // 128) * 128           # per-gate lane slab (128-aligned)
    Op = ((O + 127) // 128) * 128          # lane-dense fc output slab
    Bp = max(8, ((B + 7) // 8) * 8)        # f32 sublane tile

    (wih, bih, whhf, bhhf, whhb, bhhb,
     fcwf, fcwb, fcb) = _pack_params(params, G, Op)

    # time-major + batch pad, fused into one XLA copy; MXU operands cast to bf16.
    # TODO(synk): at large T*B stream x / gx through a time-chunk BlockSpec grid
    # (with a batch-parallel axis for v7x) instead of materializing this slab.
    x_tm = jnp.transpose(x, (1, 0, 2))
    x_tm = jnp.pad(x_tm, ((0, 0), (0, Bp - B), (0, 0)))
    x2d = x_tm.reshape(T * Bp, I).astype(jnp.bfloat16)

    bf16 = lambda a: a.astype(jnp.bfloat16)
    vmem = pl.BlockSpec(memory_space=pltpu.MemorySpace.VMEM)
    kernel = functools.partial(_gru_kernel, T, Bp, G)
    out_p, hn_p = pl.pallas_call(
        kernel,
        out_shape=(jax.ShapeDtypeStruct((Bp, Op), jnp.float32),
                   jax.ShapeDtypeStruct((Bp, 2 * G), jnp.float32)),
        in_specs=[vmem] * 10,
        out_specs=(vmem, vmem),
        scratch_shapes=[pltpu.VMEM((T * Bp, 6 * G), jnp.float32)],
        compiler_params=pltpu.CompilerParams(vmem_limit_bytes=32 * 1024 * 1024),
    )(x2d, bf16(wih), bih, bf16(whhf), bhhf, bf16(whhb), bhhb,
      bf16(fcwf), bf16(fcwb), fcb)

    out = out_p[:B, :O]
    hn = jnp.concatenate([hn_p[:B, :H], hn_p[:B, G:G + H]], axis=1)
    return out, hn


# ------------------------- deterministic parameters ------------------------ #
def init_params(key, input_size, hidden_size, output_size):
    ks = jax.random.split(key, 10)
    kg = 1.0 / math.sqrt(hidden_size)          # PyTorch GRU init: U(-1/sqrt(H), 1/sqrt(H))
    kf = 1.0 / math.sqrt(2 * hidden_size)      # PyTorch Linear init

    def u(k, shape, lim):
        return jax.random.uniform(k, shape, jnp.float32, -lim, lim)

    return {
        # forward direction (gate order r, z, n), stored as (3, in, H) / (3, 1, H)
        "w_ih_f": u(ks[0], (3, input_size, hidden_size), kg),
        "w_hh_f": u(ks[1], (3, hidden_size, hidden_size), kg),
        "b_ih_f": u(ks[2], (3, 1, hidden_size), kg),
        "b_hh_f": u(ks[3], (3, 1, hidden_size), kg),
        # backward direction
        "w_ih_b": u(ks[4], (3, input_size, hidden_size), kg),
        "w_hh_b": u(ks[5], (3, hidden_size, hidden_size), kg),
        "b_ih_b": u(ks[6], (3, 1, hidden_size), kg),
        "b_hh_b": u(ks[7], (3, 1, hidden_size), kg),
        # fc head
        "fc_w": u(ks[8], (2 * hidden_size, output_size), kf),
        "fc_b": u(ks[9], (1, output_size), kf),
    }


# --------------------------- pure-JAX reference ----------------------------- #
def gru_reference(x_btI, p):
    x = jnp.transpose(x_btI, (1, 0, 2)).astype(jnp.float32)
    T, B, _ = x.shape
    H = p["w_hh_f"].shape[-1]

    def cell(x_t, h, wi, wh, bi, bh):
        i_r = x_t @ wi[0] + bi[0]; i_z = x_t @ wi[1] + bi[1]; i_n = x_t @ wi[2] + bi[2]
        h_r = h @ wh[0] + bh[0];   h_z = h @ wh[1] + bh[1];   h_n = h @ wh[2] + bh[2]
        r = jax.nn.sigmoid(i_r + h_r)
        z = jax.nn.sigmoid(i_z + h_z)
        n = jnp.tanh(i_n + r * h_n)
        return (1.0 - z) * n + z * h

    hf = jnp.zeros((B, H), jnp.float32)
    hb = jnp.zeros((B, H), jnp.float32)
    for t in range(T):
        hf = cell(x[t], hf, p["w_ih_f"], p["w_hh_f"], p["b_ih_f"], p["b_hh_f"])
        hb = cell(x[T - 1 - t], hb, p["w_ih_b"], p["w_hh_b"], p["b_ih_b"], p["b_hh_b"])
    hn = jnp.concatenate([hf, hb], axis=1)
    out = hn @ p["fc_w"] + p["fc_b"]
    return out, hn


# ---------------------------------- main ----------------------------------- #
if __name__ == "__main__":
    B, T, I, H, O = 2, 8, 16, 32, 8

    key = jax.random.PRNGKey(0)
    kx, kp = jax.random.split(key)
    x = jax.random.normal(kx, (B, T, I), jnp.float32)        # (batch, seq, input)
    params = init_params(kp, I, H, O)

    out, hn = gru_model_forward(x, params)
    jax.block_until_ready((out, hn))

    ref_out, ref_hn = gru_reference(x, params)
    assert out.shape == (B, O) and hn.shape == (B, 2 * H)
    # bf16 MXU operands (f32 accumulation & f32 gate math) -> slightly looser
    # tolerance than a pure-f32 kernel; verified comfortably within it.
    assert jnp.allclose(out, ref_out, atol=2e-2, rtol=2e-2), \
        float(jnp.max(jnp.abs(out - ref_out)))
    assert jnp.allclose(hn, ref_hn, atol=2e-2, rtol=2e-2), \
        float(jnp.max(jnp.abs(hn - ref_hn)))

    print("KERNEL_OK")
</pallas_src>

<mosaic_0001>
module attributes {stable_mosaic.version = 11 : i64} {
  func.func @_gru_kernel(%arg0: memref<64x16xbf16, #tpu.memory_space<vmem>>, %arg1: memref<16x768xbf16, #tpu.memory_space<vmem>>, %arg2: memref<1x768xf32, #tpu.memory_space<vmem>>, %arg3: memref<128x384xbf16, #tpu.memory_space<vmem>>, %arg4: memref<1x384xf32, #tpu.memory_space<vmem>>, %arg5: memref<128x384xbf16, #tpu.memory_space<vmem>>, %arg6: memref<1x384xf32, #tpu.memory_space<vmem>>, %arg7: memref<128x128xbf16, #tpu.memory_space<vmem>>, %arg8: memref<128x128xbf16, #tpu.memory_space<vmem>>, %arg9: memref<1x128xf32, #tpu.memory_space<vmem>>, %arg10: memref<8x128xf32, #tpu.memory_space<vmem>>, %arg11: memref<8x256xf32, #tpu.memory_space<vmem>>, %arg12: memref<64x768xf32, #tpu.memory_space<vmem>>) attributes {dimension_semantics = [], scalar_prefetch = 0 : i64, scratch_operands = 1 : i64, tpu.core_type = #tpu.core_type<tc>} {
    %c0 = arith.constant 0 : index
    %c0_0 = arith.constant 0 : index
    %0 = vector.load %arg0[%c0, %c0_0] : memref<64x16xbf16, #tpu.memory_space<vmem>>, vector<64x16xbf16>
    %c0_1 = arith.constant 0 : index
    %c0_2 = arith.constant 0 : index
    %1 = vector.load %arg1[%c0_1, %c0_2] : memref<16x768xbf16, #tpu.memory_space<vmem>>, vector<16x768xbf16>
    %cst = arith.constant dense<0.000000e+00> : vector<64x768xf32>
    %2 = tpu.matmul %0, %1, %cst {dimension_numbers = #tpu.dot_dimension_numbers<[1], [0], [0], [1], [0, 0, 1, 1], [], []>} : vector<64x16xbf16>, vector<16x768xbf16>, vector<64x768xf32> -> vector<64x768xf32>
    %c0_3 = arith.constant 0 : index
    %c0_4 = arith.constant 0 : index
    %3 = vector.load %arg2[%c0_3, %c0_4] : memref<1x768xf32, #tpu.memory_space<vmem>>, vector<1x768xf32>
    %4 = vector.broadcast %3 : vector<1x768xf32> to vector<64x768xf32>
    %5 = arith.addf %2, %4 : vector<64x768xf32>
    %c0_5 = arith.constant 0 : index
    %c0_6 = arith.constant 0 : index
    %6 = vector.load %arg12[%c0_5, %c0_6] : memref<64x768xf32, #tpu.memory_space<vmem>>, vector<64x768xf32>
    tpu.vector_store %arg12[%c0_5, %c0_6], %5 {strides = array<i32>} : memref<64x768xf32, #tpu.memory_space<vmem>>, vector<64x768xf32>,
    %c0_7 = arith.constant 0 : index
    %c0_8 = arith.constant 0 : index
    %7 = vector.load %arg3[%c0_7, %c0_8] : memref<128x384xbf16, #tpu.memory_space<vmem>>, vector<128x384xbf16>
    %c0_9 = arith.constant 0 : index
    %c0_10 = arith.constant 0 : index
    %8 = vector.load %arg5[%c0_9, %c0_10] : memref<128x384xbf16, #tpu.memory_space<vmem>>, vector<128x384xbf16>
    %c0_11 = arith.constant 0 : index
    %c0_12 = arith.constant 0 : index
    %9 = vector.load %arg4[%c0_11, %c0_12] : memref<1x384xf32, #tpu.memory_space<vmem>>, vector<1x384xf32>
    %c0_13 = arith.constant 0 : index
    %c0_14 = arith.constant 0 : index
    %10 = vector.load %arg6[%c0_13, %c0_14] : memref<1x384xf32, #tpu.memory_space<vmem>>, vector<1x384xf32>
    %cst_15 = arith.constant 0.000000e+00 : f32
    %11 = vector.broadcast %cst_15 : f32 to vector<8x128xf32>
    %cst_16 = arith.constant 0.000000e+00 : f32
    %12 = vector.broadcast %cst_16 : f32 to vector<8x128xf32>
    %13 = arith.truncf %11 : vector<8x128xf32> to vector<8x128xbf16>
    %cst_17 = arith.constant dense<0.000000e+00> : vector<8x384xf32>
    %14 = tpu.matmul %13, %7, %cst_17 {dimension_numbers = #tpu.dot_dimension_numbers<[1], [0], [0], [1], [0, 0, 1, 1], [], []>} : vector<8x128xbf16>, vector<128x384xbf16>, vector<8x384xf32> -> vector<8x384xf32>
    %15 = vector.broadcast %9 : vector<1x384xf32> to vector<8x384xf32>
    %16 = arith.addf %14, %15 : vector<8x384xf32>
    %17 = arith.truncf %12 : vector<8x128xf32> to vector<8x128xbf16>
    %cst_18 = arith.constant dense<0.000000e+00> : vector<8x384xf32>
    %18 = tpu.matmul %17, %8, %cst_18 {dimension_numbers = #tpu.dot_dimension_numbers<[1], [0], [0], [1], [0, 0, 1, 1], [], []>} : vector<8x128xbf16>, vector<128x384xbf16>, vector<8x384xf32> -> vector<8x384xf32>
    %19 = vector.broadcast %10 : vector<1x384xf32> to vector<8x384xf32>
    %20 = arith.addf %18, %19 : vector<8x384xf32>
    %c0_19 = arith.constant 0 : index
    %c0_20 = arith.constant 0 : index
    %21 = vector.load %arg12[%c0_19, %c0_20] : memref<64x768xf32, #tpu.memory_space<vmem>>, vector<8x384xf32>
    %c56 = arith.constant 56 : index
    %c384 = arith.constant 384 : index
    %22 = vector.load %arg12[%c56, %c384] : memref<64x768xf32, #tpu.memory_space<vmem>>, vector<8x384xf32>
    %23 = vector.extract_strided_slice %21 {offsets = [0, 0], sizes = [8, 128], strides = [1, 1]} : vector<8x384xf32> to vector<8x128xf32>
    %24 = vector.extract_strided_slice %16 {offsets = [0, 0], sizes = [8, 128], strides = [1, 1]} : vector<8x384xf32> to vector<8x128xf32>
    %25 = arith.addf %23, %24 : vector<8x128xf32>
    %26 = arith.negf %25 : vector<8x128xf32>
    %27 = math.exp %26 : vector<8x128xf32>
    %cst_21 = arith.constant 1.000000e+00 : f32
    %28 = vector.broadcast %cst_21 : f32 to vector<8x128xf32>
    %29 = arith.addf %28, %27 : vector<8x128xf32>
    %30 = arith.divf %28, %29 : vector<8x128xf32>
    %31 = vector.extract_strided_slice %21 {offsets = [0, 128], sizes = [8, 128], strides = [1, 1]} : vector<8x384xf32> to vector<8x128xf32>
    %32 = vector.extract_strided_slice %16 {offsets = [0, 128], sizes = [8, 128], strides = [1, 1]} : vector<8x384xf32> to vector<8x128xf32>
    %33 = arith.addf %31, %32 : vector<8x128xf32>
    %34 = arith.negf %33 : vector<8x128xf32>
    %35 = math.exp %34 : vector<8x128xf32>
    %cst_22 = arith.constant 1.000000e+00 : f32
    %36 = vector.broadcast %cst_22 : f32 to vector<8x128xf32>
    %37 = arith.addf %36, %35 : vector<8x128xf32>
    %38 = arith.divf %36, %37 : vector<8x128xf32>
    %39 = vector.extract_strided_slice %21 {offsets = [0, 256], sizes = [8, 128], strides = [1, 1]} : vector<8x384xf32> to vector<8x128xf32>
    %40 = vector.extract_strided_slice %16 {offsets = [0, 256], sizes = [8, 128], strides = [1, 1]} : vector<8x384xf32> to vector<8x128xf32>
    %41 = arith.mulf %30, %40 : vector<8x128xf32>
    %42 = arith.addf %39, %41 : vector<8x128xf32>
    %43 = math.tanh %42 : vector<8x128xf32>
    %cst_23 = arith.constant 1.000000e+00 : f32
    %44 = vector.broadcast %cst_23 : f32 to vector<8x128xf32>
    %45 = arith.subf %44, %38 : vector<8x128xf32>
    %46 = arith.mulf %45, %43 : vector<8x128xf32>
    %47 = arith.mulf %38, %11 : vector<8x128xf32>
    %48 = arith.addf %46, %47 : vector<8x128xf32>
    %49 = vector.extract_strided_slice %22 {offsets = [0, 0], sizes = [8, 128], strides = [1, 1]} : vector<8x384xf32> to vector<8x128xf32>
    %50 = vector.extract_strided_slice %20 {offsets = [0, 0], sizes = [8, 128], strides = [1, 1]} : vector<8x384xf32> to vector<8x128xf32>
    %51 = arith.addf %49, %50 : vector<8x128xf32>
    %52 = arith.negf %51 : vector<8x128xf32>
    %53 = math.exp %52 : vector<8x128xf32>
    %cst_24 = arith.constant 1.000000e+00 : f32
    %54 = vector.broadcast %cst_24 : f32 to vector<8x128xf32>
    %55 = arith.addf %54, %53 : vector<8x128xf32>
    %56 = arith.divf %54, %55 : vector<8x128xf32>
    %57 = vector.extract_strided_slice %22 {offsets = [0, 128], sizes = [8, 128], strides = [1, 1]} : vector<8x384xf32> to vector<8x128xf32>
    %58 = vector.extract_strided_slice %20 {offsets = [0, 128], sizes = [8, 128], strides = [1, 1]} : vector<8x384xf32> to vector<8x128xf32>
    %59 = arith.addf %57, %58 : vector<8x128xf32>
    %60 = arith.negf %59 : vector<8x128xf32>
    %61 = math.exp %60 : vector<8x128xf32>
    %cst_25 = arith.constant 1.000000e+00 : f32
    %62 = vector.broadcast %cst_25 : f32 to vector<8x128xf32>
    %63 = arith.addf %62, %61 : vector<8x128xf32>
    %64 = arith.divf %62, %63 : vector<8x128xf32>
    %65 = vector.extract_strided_slice %22 {offsets = [0, 256], sizes = [8, 128], strides = [1, 1]} : vector<8x384xf32> to vector<8x128xf32>
    %66 = vector.extract_strided_slice %20 {offsets = [0, 256], sizes = [8, 128], strides = [1, 1]} : vector<8x384xf32> to vector<8x128xf32>
    %67 = arith.mulf %56, %66 : vector<8x128xf32>
    %68 = arith.addf %65, %67 : vector<8x128xf32>
    %69 = math.tanh %68 : vector<8x128xf32>
    %cst_26 = arith.constant 1.000000e+00 : f32
    %70 = vector.broadcast %cst_26 : f32 to vector<8x128xf32>
    %71 = arith.subf %70, %64 : vector<8x128xf32>
    %72 = arith.mulf %71, %69 : vector<8x128xf32>
    %73 = arith.mulf %64, %12 : vector<8x128xf32>
    %74 = arith.addf %72, %73 : vector<8x128xf32>
    %75 = arith.truncf %48 : vector<8x128xf32> to vector<8x128xbf16>
    %cst_27 = arith.constant dense<0.000000e+00> : vector<8x384xf32>
    %76 = tpu.matmul %75, %7, %cst_27 {dimension_numbers = #tpu.dot_dimension_numbers<[1], [0], [0], [1], [0, 0, 1, 1], [], []>} : vector<8x128xbf16>, vector<128x384xbf16>, vector<8x384xf32> -> vector<8x384xf32>
    %77 = vector.broadcast %9 : vector<1x384xf32> to vector<8x384xf32>
    %78 = arith.addf %76, %77 : vector<8x384xf32>
    %79 = arith.truncf %74 : vector<8x128xf32> to vector<8x128xbf16>
    %cst_28 = arith.constant dense<0.000000e+00> : vector<8x384xf32>
    %80 = tpu.matmul %79, %8, %cst_28 {dimension_numbers = #tpu.dot_dimension_numbers<[1], [0], [0], [1], [0, 0, 1, 1], [], []>} : vector<8x128xbf16>, vector<128x384xbf16>, vector<8x384xf32> -> vector<8x384xf32>
    %81 = vector.broadcast %10 : vector<1x384xf32> to vector<8x384xf32>
    %82 = arith.addf %80, %81 : vector<8x384xf32>
    %c8 = arith.constant 8 : index
    %c0_29 = arith.constant 0 : index
    %83 = vector.load %arg12[%c8, %c0_29] : memref<64x768xf32, #tpu.memory_space<vmem>>, vector<8x384xf32>
    %c48 = arith.constant 48 : index
    %c384_30 = arith.constant 384 : index
    %84 = vector.load %arg12[%c48, %c384_30] : memref<64x768xf32, #tpu.memory_space<vmem>>, vector<8x384xf32>
    %85 = vector.extract_strided_slice %83 {offsets = [0, 0], sizes = [8, 128], strides = [1, 1]} : vector<8x384xf32> to vector<8x128xf32>
    %86 = vector.extract_strided_slice %78 {offsets = [0, 0], sizes = [8, 128], strides = [1, 1]} : vector<8x384xf32> to vector<8x128xf32>
    %87 = arith.addf %85, %86 : vector<8x128xf32>
    %88 = arith.negf %87 : vector<8x128xf32>
    %89 = math.exp %88 : vector<8x128xf32>
    %cst_31 = arith.constant 1.000000e+00 : f32
    %90 = vector.broadcast %cst_31 : f32 to vector<8x128xf32>
    %91 = arith.addf %90, %89 : vector<8x128xf32>
    %92 = arith.divf %90, %91 : vector<8x128xf32>
    %93 = vector.extract_strided_slice %83 {offsets = [0, 128], sizes = [8, 128], strides = [1, 1]} : vector<8x384xf32> to vector<8x128xf32>
    %94 = vector.extract_strided_slice %78 {offsets = [0, 128], sizes = [8, 128], strides = [1, 1]} : vector<8x384xf32> to vector<8x128xf32>
    %95 = arith.addf %93, %94 : vector<8x128xf32>
    %96 = arith.negf %95 : vector<8x128xf32>
    %97 = math.exp %96 : vector<8x128xf32>
    %cst_32 = arith.constant 1.000000e+00 : f32
    %98 = vector.broadcast %cst_32 : f32 to vector<8x128xf32>
    %99 = arith.addf %98, %97 : vector<8x128xf32>
    %100 = arith.divf %98, %99 : vector<8x128xf32>
    %101 = vector.extract_strided_slice %83 {offsets = [0, 256], sizes = [8, 128], strides = [1, 1]} : vector<8x384xf32> to vector<8x128xf32>
    %102 = vector.extract_strided_slice %78 {offsets = [0, 256], sizes = [8, 128], strides = [1, 1]} : vector<8x384xf32> to vector<8x128xf32>
    %103 = arith.mulf %92, %102 : vector<8x128xf32>
    %104 = arith.addf %101, %103 : vector<8x128xf32>
    %105 = math.tanh %104 : vector<8x128xf32>
    %cst_33 = arith.constant 1.000000e+00 : f32
    %106 = vector.broadcast %cst_33 : f32 to vector<8x128xf32>
    %107 = arith.subf %106, %100 : vector<8x128xf32>
    %108 = arith.mulf %107, %105 : vector<8x128xf32>
    %109 = arith.mulf %100, %48 : vector<8x128xf32>
    %110 = arith.addf %108, %109 : vector<8x128xf32>
    %111 = vector.extract_strided_slice %84 {offsets = [0, 0], sizes = [8, 128], strides = [1, 1]} : vector<8x384xf32> to vector<8x128xf32>
    %112 = vector.extract_strided_slice %82 {offsets = [0, 0], sizes = [8, 128], strides = [1, 1]} : vector<8x384xf32> to vector<8x128xf32>
    %113 = arith.addf %111, %112 : vector<8x128xf32>
    %114 = arith.negf %113 : vector<8x128xf32>
    %115 = math.exp %114 : vector<8x128xf32>
    %cst_34 = arith.constant 1.000000e+00 : f32
    %116 = vector.broadcast %cst_34 : f32 to vector<8x128xf32>
    %117 = arith.addf %116, %115 : vector<8x128xf32>
    %118 = arith.divf %116, %117 : vector<8x128xf32>
    %119 = vector.extract_strided_slice %84 {offsets = [0, 128], sizes = [8, 128], strides = [1, 1]} : vector<8x384xf32> to vector<8x128xf32>
    %120 = vector.extract_strided_slice %82 {offsets = [0, 128], sizes = [8, 128], strides = [1, 1]} : vector<8x384xf32> to vector<8x128xf32>
    %121 = arith.addf %119, %120 : vector<8x128xf32>
    %122 = arith.negf %121 : vector<8x128xf32>
    %123 = math.exp %122 : vector<8x128xf32>
    %cst_35 = arith.constant 1.000000e+00 : f32
    %124 = vector.broadcast %cst_35 : f32 to vector<8x128xf32>
    %125 = arith.addf %124, %123 : vector<8x128xf32>
    %126 = arith.divf %124, %125 : vector<8x128xf32>
    %127 = vector.extract_strided_slice %84 {offsets = [0, 256], sizes = [8, 128], strides = [1, 1]} : vector<8x384xf32> to vector<8x128xf32>
    %128 = vector.extract_strided_slice %82 {offsets = [0, 256], sizes = [8, 128], strides = [1, 1]} : vector<8x384xf32> to vector<8x128xf32>
    %129 = arith.mulf %118, %128 : vector<8x128xf32>
    %130 = arith.addf %127, %129 : vector<8x128xf32>
    %131 = math.tanh %130 : vector<8x128xf32>
    %cst_36 = arith.constant 1.000000e+00 : f32
    %132 = vector.broadcast %cst_36 : f32 to vector<8x128xf32>
    %133 = arith.subf %132, %126 : vector<8x128xf32>
    %134 = arith.mulf %133, %131 : vector<8x128xf32>
    %135 = arith.mulf %126, %74 : vector<8x128xf32>
    %136 = arith.addf %134, %135 : vector<8x128xf32>
    %137 = arith.truncf %110 : vector<8x128xf32> to vector<8x128xbf16>
    %cst_37 = arith.constant dense<0.000000e+00> : vector<8x384xf32>
    %138 = tpu.matmul %137, %7, %cst_37 {dimension_numbers = #tpu.dot_dimension_numbers<[1], [0], [0], [1], [0, 0, 1, 1], [], []>} : vector<8x128xbf16>, vector<128x384xbf16>, vector<8x384xf32> -> vector<8x384xf32>
    %139 = vector.broadcast %9 : vector<1x384xf32> to vector<8x384xf32>
    %140 = arith.addf %138, %139 : vector<8x384xf32>
    %141 = arith.truncf %136 : vector<8x128xf32> to vector<8x128xbf16>
    %cst_38 = arith.constant dense<0.000000e+00> : vector<8x384xf32>
    %142 = tpu.matmul %141, %8, %cst_38 {dimension_numbers = #tpu.dot_dimension_numbers<[1], [0], [0], [1], [0, 0, 1, 1], [], []>} : vector<8x128xbf16>, vector<128x384xbf16>, vector<8x384xf32> -> vector<8x384xf32>
    %143 = vector.broadcast %10 : vector<1x384xf32> to vector<8x384xf32>
    %144 = arith.addf %142, %143 : vector<8x384xf32>
    %c16 = arith.constant 16 : index
    %c0_39 = arith.constant 0 : index
    %145 = vector.load %arg12[%c16, %c0_39] : memref<64x768xf32, #tpu.memory_space<vmem>>, vector<8x384xf32>
    %c40 = arith.constant 40 : index
    %c384_40 = arith.constant 384 : index
    %146 = vector.load %arg12[%c40, %c384_40] : memref<64x768xf32, #tpu.memory_space<vmem>>, vector<8x384xf32>
    %147 = vector.extract_strided_slice %145 {offsets = [0, 0], sizes = [8, 128], strides = [1, 1]} : vector<8x384xf32> to vector<8x128xf32>
    %148 = vector.extract_strided_slice %140 {offsets = [0, 0], sizes = [8, 128], strides = [1, 1]} : vector<8x384xf32> to vector<8x128xf32>
    %149 = arith.addf %147, %148 : vector<8x128xf32>
    %150 = arith.negf %149 : vector<8x128xf32>
    %151 = math.exp %150 : vector<8x128xf32>
    %cst_41 = arith.constant 1.000000e+00 : f32
    %152 = vector.broadcast %cst_41 : f32 to vector<8x128xf32>
    %153 = arith.addf %152, %151 : vector<8x128xf32>
    %154 = arith.divf %152, %153 : vector<8x128xf32>
    %155 = vector.extract_strided_slice %145 {offsets = [0, 128], sizes = [8, 128], strides = [1, 1]} : vector<8x384xf32> to vector<8x128xf32>
    %156 = vector.extract_strided_slice %140 {offsets = [0, 128], sizes = [8, 128], strides = [1, 1]} : vector<8x384xf32> to vector<8x128xf32>
    %157 = arith.addf %155, %156 : vector<8x128xf32>
    %158 = arith.negf %157 : vector<8x128xf32>
    %159 = math.exp %158 : vector<8x128xf32>
    %cst_42 = arith.constant 1.000000e+00 : f32
    %160 = vector.broadcast %cst_42 : f32 to vector<8x128xf32>
    %161 = arith.addf %160, %159 : vector<8x128xf32>
    %162 = arith.divf %160, %161 : vector<8x128xf32>
    %163 = vector.extract_strided_slice %145 {offsets = [0, 256], sizes = [8, 128], strides = [1, 1]} : vector<8x384xf32> to vector<8x128xf32>
    %164 = vector.extract_strided_slice %140 {offsets = [0, 256], sizes = [8, 128], strides = [1, 1]} : vector<8x384xf32> to vector<8x128xf32>
    %165 = arith.mulf %154, %164 : vector<8x128xf32>
    %166 = arith.addf %163, %165 : vector<8x128xf32>
    %167 = math.tanh %166 : vector<8x128xf32>
    %cst_43 = arith.constant 1.000000e+00 : f32
    %168 = vector.broadcast %cst_43 : f32 to vector<8x128xf32>
    %169 = arith.subf %168, %162 : vector<8x128xf32>
    %170 = arith.mulf %169, %167 : vector<8x128xf32>
    %171 = arith.mulf %162, %110 : vector<8x128xf32>
    %172 = arith.addf %170, %171 : vector<8x128xf32>
    %173 = vector.extract_strided_slice %146 {offsets = [0, 0], sizes = [8, 128], strides = [1, 1]} : vector<8x384xf32> to vector<8x128xf32>
    %174 = vector.extract_strided_slice %144 {offsets = [0, 0], sizes = [8, 128], strides = [1, 1]} : vector<8x384xf32> to vector<8x128xf32>
    %175 = arith.addf %173, %174 : vector<8x128xf32>
    %176 = arith.negf %175 : vector<8x128xf32>
    %177 = math.exp %176 : vector<8x128xf32>
    %cst_44 = arith.constant 1.000000e+00 : f32
    %178 = vector.broadcast %cst_44 : f32 to vector<8x128xf32>
    %179 = arith.addf %178, %177 : vector<8x128xf32>
    %180 = arith.divf %178, %179 : vector<8x128xf32>
    %181 = vector.extract_strided_slice %146 {offsets = [0, 128], sizes = [8, 128], strides = [1, 1]} : vector<8x384xf32> to vector<8x128xf32>
    %182 = vector.extract_strided_slice %144 {offsets = [0, 128], sizes = [8, 128], strides = [1, 1]} : vector<8x384xf32> to vector<8x128xf32>
    %183 = arith.addf %181, %182 : vector<8x128xf32>
    %184 = arith.negf %183 : vector<8x128xf32>
    %185 = math.exp %184 : vector<8x128xf32>
    %cst_45 = arith.constant 1.000000e+00 : f32
    %186 = vector.broadcast %cst_45 : f32 to vector<8x128xf32>
    %187 = arith.addf %186, %185 : vector<8x128xf32>
    %188 = arith.divf %186, %187 : vector<8x128xf32>
    %189 = vector.extract_strided_slice %146 {offsets = [0, 256], sizes = [8, 128], strides = [1, 1]} : vector<8x384xf32> to vector<8x128xf32>
    %190 = vector.extract_strided_slice %144 {offsets = [0, 256], sizes = [8, 128], strides = [1, 1]} : vector<8x384xf32> to vector<8x128xf32>
    %191 = arith.mulf %180, %190 : vector<8x128xf32>
    %192 = arith.addf %189, %191 : vector<8x128xf32>
    %193 = math.tanh %192 : vector<8x128xf32>
    %cst_46 = arith.constant 1.000000e+00 : f32
    %194 = vector.broadcast %cst_46 : f32 to vector<8x128xf32>
    %195 = arith.subf %194, %188 : vector<8x128xf32>
    %196 = arith.mulf %195, %193 : vector<8x128xf32>
    %197 = arith.mulf %188, %136 : vector<8x128xf32>
    %198 = arith.addf %196, %197 : vector<8x128xf32>
    %199 = arith.truncf %172 : vector<8x128xf32> to vector<8x128xbf16>
    %cst_47 = arith.constant dense<0.000000e+00> : vector<8x384xf32>
    %200 = tpu.matmul %199, %7, %cst_47 {dimension_numbers = #tpu.dot_dimension_numbers<[1], [0], [0], [1], [0, 0, 1, 1], [], []>} : vector<8x128xbf16>, vector<128x384xbf16>, vector<8x384xf32> -> vector<8x384xf32>
    %201 = vector.broadcast %9 : vector<1x384xf32> to vector<8x384xf32>
    %202 = arith.addf %200, %201 : vector<8x384xf32>
    %203 = arith.truncf %198 : vector<8x128xf32> to vector<8x128xbf16>
    %cst_48 = arith.constant dense<0.000000e+00> : vector<8x384xf32>
    %204 = tpu.matmul %203, %8, %cst_48 {dimension_numbers = #tpu.dot_dimension_numbers<[1], [0], [0], [1], [0, 0, 1, 1], [], []>} : vector<8x128xbf16>, vector<128x384xbf16>, vector<8x384xf32> -> vector<8x384xf32>
    %205 = vector.broadcast %10 : vector<1x384xf32> to vector<8x384xf32>
    %206 = arith.addf %204, %205 : vector<8x384xf32>
    %c24 = arith.constant 24 : index
    %c0_49 = arith.constant 0 : index
    %207 = vector.load %arg12[%c24, %c0_49] : memref<64x768xf32, #tpu.memory_space<vmem>>, vector<8x384xf32>
    %c32 = arith.constant 32 : index
    %c384_50 = arith.constant 384 : index
    %208 = vector.load %arg12[%c32, %c384_50] : memref<64x768xf32, #tpu.memory_space<vmem>>, vector<8x384xf32>
    %209 = vector.extract_strided_slice %207 {offsets = [0, 0], sizes = [8, 128], strides = [1, 1]} : vector<8x384xf32> to vector<8x128xf32>
    %210 = vector.extract_strided_slice %202 {offsets = [0, 0], sizes = [8, 128], strides = [1, 1]} : vector<8x384xf32> to vector<8x128xf32>
    %211 = arith.addf %209, %210 : vector<8x128xf32>
    %212 = arith.negf %211 : vector<8x128xf32>
    %213 = math.exp %212 : vector<8x128xf32>
    %cst_51 = arith.constant 1.000000e+00 : f32
    %214 = vector.broadcast %cst_51 : f32 to vector<8x128xf32>
    %215 = arith.addf %214, %213 : vector<8x128xf32>
    %216 = arith.divf %214, %215 : vector<8x128xf32>
    %217 = vector.extract_strided_slice %207 {offsets = [0, 128], sizes = [8, 128], strides = [1, 1]} : vector<8x384xf32> to vector<8x128xf32>
    %218 = vector.extract_strided_slice %202 {offsets = [0, 128], sizes = [8, 128], strides = [1, 1]} : vector<8x384xf32> to vector<8x128xf32>
    %219 = arith.addf %217, %218 : vector<8x128xf32>
    %220 = arith.negf %219 : vector<8x128xf32>
    %221 = math.exp %220 : vector<8x128xf32>
    %cst_52 = arith.constant 1.000000e+00 : f32
    %222 = vector.broadcast %cst_52 : f32 to vector<8x128xf32>
    %223 = arith.addf %222, %221 : vector<8x128xf32>
    %224 = arith.divf %222, %223 : vector<8x128xf32>
    %225 = vector.extract_strided_slice %207 {offsets = [0, 256], sizes = [8, 128], strides = [1, 1]} : vector<8x384xf32> to vector<8x128xf32>
    %226 = vector.extract_strided_slice %202 {offsets = [0, 256], sizes = [8, 128], strides = [1, 1]} : vector<8x384xf32> to vector<8x128xf32>
    %227 = arith.mulf %216, %226 : vector<8x128xf32>
    %228 = arith.addf %225, %227 : vector<8x128xf32>
    %229 = math.tanh %228 : vector<8x128xf32>
    %cst_53 = arith.constant 1.000000e+00 : f32
    %230 = vector.broadcast %cst_53 : f32 to vector<8x128xf32>
    %231 = arith.subf %230, %224 : vector<8x128xf32>
    %232 = arith.mulf %231, %229 : vector<8x128xf32>
    %233 = arith.mulf %224, %172 : vector<8x128xf32>
    %234 = arith.addf %232, %233 : vector<8x128xf32>
    %235 = vector.extract_strided_slice %208 {offsets = [0, 0], sizes = [8, 128], strides = [1, 1]} : vector<8x384xf32> to vector<8x128xf32>
    %236 = vector.extract_strided_slice %206 {offsets = [0, 0], sizes = [8, 128], strides = [1, 1]} : vector<8x384xf32> to vector<8x128xf32>
    %237 = arith.addf %235, %236 : vector<8x128xf32>
    %238 = arith.negf %237 : vector<8x128xf32>
    %239 = math.exp %238 : vector<8x128xf32>
    %cst_54 = arith.constant 1.000000e+00 : f32
    %240 = vector.broadcast %cst_54 : f32 to vector<8x128xf32>
    %241 = arith.addf %240, %239 : vector<8x128xf32>
    %242 = arith.divf %240, %241 : vector<8x128xf32>
    %243 = vector.extract_strided_slice %208 {offsets = [0, 128], sizes = [8, 128], strides = [1, 1]} : vector<8x384xf32> to vector<8x128xf32>
    %244 = vector.extract_strided_slice %206 {offsets = [0, 128], sizes = [8, 128], strides = [1, 1]} : vector<8x384xf32> to vector<8x128xf32>
    %245 = arith.addf %243, %244 : vector<8x128xf32>
    %246 = arith.negf %245 : vector<8x128xf32>
    %247 = math.exp %246 : vector<8x128xf32>
    %cst_55 = arith.constant 1.000000e+00 : f32
    %248 = vector.broadcast %cst_55 : f32 to vector<8x128xf32>
    %249 = arith.addf %248, %247 : vector<8x128xf32>
    %250 = arith.divf %248, %249 : vector<8x128xf32>
    %251 = vector.extract_strided_slice %208 {offsets = [0, 256], sizes = [8, 128], strides = [1, 1]} : vector<8x384xf32> to vector<8x128xf32>
    %252 = vector.extract_strided_slice %206 {offsets = [0, 256], sizes = [8, 128], strides = [1, 1]} : vector<8x384xf32> to vector<8x128xf32>
    %253 = arith.mulf %242, %252 : vector<8x128xf32>
    %254 = arith.addf %251, %253 : vector<8x128xf32>
    %255 = math.tanh %254 : vector<8x128xf32>
    %cst_56 = arith.constant 1.000000e+00 : f32
    %256 = vector.broadcast %cst_56 : f32 to vector<8x128xf32>
    %257 = arith.subf %256, %250 : vector<8x128xf32>
    %258 = arith.mulf %257, %255 : vector<8x128xf32>
    %259 = arith.mulf %250, %198 : vector<8x128xf32>
    %260 = arith.addf %258, %259 : vector<8x128xf32>
    %261 = arith.truncf %234 : vector<8x128xf32> to vector<8x128xbf16>
    %cst_57 = arith.constant dense<0.000000e+00> : vector<8x384xf32>
    %262 = tpu.matmul %261, %7, %cst_57 {dimension_numbers = #tpu.dot_dimension_numbers<[1], [0], [0], [1], [0, 0, 1, 1], [], []>} : vector<8x128xbf16>, vector<128x384xbf16>, vector<8x384xf32> -> vector<8x384xf32>
    %263 = vector.broadcast %9 : vector<1x384xf32> to vector<8x384xf32>
    %264 = arith.addf %262, %263 : vector<8x384xf32>
    %265 = arith.truncf %260 : vector<8x128xf32> to vector<8x128xbf16>
    %cst_58 = arith.constant dense<0.000000e+00> : vector<8x384xf32>
    %266 = tpu.matmul %265, %8, %cst_58 {dimension_numbers = #tpu.dot_dimension_numbers<[1], [0], [0], [1], [0, 0, 1, 1], [], []>} : vector<8x128xbf16>, vector<128x384xbf16>, vector<8x384xf32> -> vector<8x384xf32>
    %267 = vector.broadcast %10 : vector<1x384xf32> to vector<8x384xf32>
    %268 = arith.addf %266, %267 : vector<8x384xf32>
    %c32_59 = arith.constant 32 : index
    %c0_60 = arith.constant 0 : index
    %269 = vector.load %arg12[%c32_59, %c0_60] : memref<64x768xf32, #tpu.memory_space<vmem>>, vector<8x384xf32>
    %c24_61 = arith.constant 24 : index
    %c384_62 = arith.constant 384 : index
    %270 = vector.load %arg12[%c24_61, %c384_62] : memref<64x768xf32, #tpu.memory_space<vmem>>, vector<8x384xf32>
    %271 = vector.extract_strided_slice %269 {offsets = [0, 0], sizes = [8, 128], strides = [1, 1]} : vector<8x384xf32> to vector<8x128xf32>
    %272 = vector.extract_strided_slice %264 {offsets = [0, 0], sizes = [8, 128], strides = [1, 1]} : vector<8x384xf32> to vector<8x128xf32>
    %273 = arith.addf %271, %272 : vector<8x128xf32>
    %274 = arith.negf %273 : vector<8x128xf32>
    %275 = math.exp %274 : vector<8x128xf32>
    %cst_63 = arith.constant 1.000000e+00 : f32
    %276 = vector.broadcast %cst_63 : f32 to vector<8x128xf32>
    %277 = arith.addf %276, %275 : vector<8x128xf32>
    %278 = arith.divf %276, %277 : vector<8x128xf32>
    %279 = vector.extract_strided_slice %269 {offsets = [0, 128], sizes = [8, 128], strides = [1, 1]} : vector<8x384xf32> to vector<8x128xf32>
    %280 = vector.extract_strided_slice %264 {offsets = [0, 128], sizes = [8, 128], strides = [1, 1]} : vector<8x384xf32> to vector<8x128xf32>
    %281 = arith.addf %279, %280 : vector<8x128xf32>
    %282 = arith.negf %281 : vector<8x128xf32>
    %283 = math.exp %282 : vector<8x128xf32>
    %cst_64 = arith.constant 1.000000e+00 : f32
    %284 = vector.broadcast %cst_64 : f32 to vector<8x128xf32>
    %285 = arith.addf %284, %283 : vector<8x128xf32>
    %286 = arith.divf %284, %285 : vector<8x128xf32>
    %287 = vector.extract_strided_slice %269 {offsets = [0, 256], sizes = [8, 128], strides = [1, 1]} : vector<8x384xf32> to vector<8x128xf32>
    %288 = vector.extract_strided_slice %264 {offsets = [0, 256], sizes = [8, 128], strides = [1, 1]} : vector<8x384xf32> to vector<8x128xf32>
    %289 = arith.mulf %278, %288 : vector<8x128xf32>
    %290 = arith.addf %287, %289 : vector<8x128xf32>
    %291 = math.tanh %290 : vector<8x128xf32>
    %cst_65 = arith.constant 1.000000e+00 : f32
    %292 = vector.broadcast %cst_65 : f32 to vector<8x128xf32>
    %293 = arith.subf %292, %286 : vector<8x128xf32>
    %294 = arith.mulf %293, %291 : vector<8x128xf32>
    %295 = arith.mulf %286, %234 : vector<8x128xf32>
    %296 = arith.addf %294, %295 : vector<8x128xf32>
    %297 = vector.extract_strided_slice %270 {offsets = [0, 0], sizes = [8, 128], strides = [1, 1]} : vector<8x384xf32> to vector<8x128xf32>
    %298 = vector.extract_strided_slice %268 {offsets = [0, 0], sizes = [8, 128], strides = [1, 1]} : vector<8x384xf32> to vector<8x128xf32>
    %299 = arith.addf %297, %298 : vector<8x128xf32>
    %300 = arith.negf %299 : vector<8x128xf32>
    %301 = math.exp %300 : vector<8x128xf32>
    %cst_66 = arith.constant 1.000000e+00 : f32
    %302 = vector.broadcast %cst_66 : f32 to vector<8x128xf32>
    %303 = arith.addf %302, %301 : vector<8x128xf32>
    %304 = arith.divf %302, %303 : vector<8x128xf32>
    %305 = vector.extract_strided_slice %270 {offsets = [0, 128], sizes = [8, 128], strides = [1, 1]} : vector<8x384xf32> to vector<8x128xf32>
    %306 = vector.extract_strided_slice %268 {offsets = [0, 128], sizes = [8, 128], strides = [1, 1]} : vector<8x384xf32> to vector<8x128xf32>
    %307 = arith.addf %305, %306 : vector<8x128xf32>
    %308 = arith.negf %307 : vector<8x128xf32>
    %309 = math.exp %308 : vector<8x128xf32>
    %cst_67 = arith.constant 1.000000e+00 : f32
    %310 = vector.broadcast %cst_67 : f32 to vector<8x128xf32>
    %311 = arith.addf %310, %309 : vector<8x128xf32>
    %312 = arith.divf %310, %311 : vector<8x128xf32>
    %313 = vector.extract_strided_slice %270 {offsets = [0, 256], sizes = [8, 128], strides = [1, 1]} : vector<8x384xf32> to vector<8x128xf32>
    %314 = vector.extract_strided_slice %268 {offsets = [0, 256], sizes = [8, 128], strides = [1, 1]} : vector<8x384xf32> to vector<8x128xf32>
    %315 = arith.mulf %304, %314 : vector<8x128xf32>
    %316 = arith.addf %313, %315 : vector<8x128xf32>
    %317 = math.tanh %316 : vector<8x128xf32>
    %cst_68 = arith.constant 1.000000e+00 : f32
    %318 = vector.broadcast %cst_68 : f32 to vector<8x128xf32>
    %319 = arith.subf %318, %312 : vector<8x128xf32>
    %320 = arith.mulf %319, %317 : vector<8x128xf32>
    %321 = arith.mulf %312, %260 : vector<8x128xf32>
    %322 = arith.addf %320, %321 : vector<8x128xf32>
    %323 = arith.truncf %296 : vector<8x128xf32> to vector<8x128xbf16>
    %cst_69 = arith.constant dense<0.000000e+00> : vector<8x384xf32>
    %324 = tpu.matmul %323, %7, %cst_69 {dimension_numbers = #tpu.dot_dimension_numbers<[1], [0], [0], [1], [0, 0, 1, 1], [], []>} : vector<8x128xbf16>, vector<128x384xbf16>, vector<8x384xf32> -> vector<8x384xf32>
    %325 = vector.broadcast %9 : vector<1x384xf32> to vector<8x384xf32>
    %326 = arith.addf %324, %325 : vector<8x384xf32>
    %327 = arith.truncf %322 : vector<8x128xf32> to vector<8x128xbf16>
    %cst_70 = arith.constant dense<0.000000e+00> : vector<8x384xf32>
    %328 = tpu.matmul %327, %8, %cst_70 {dimension_numbers = #tpu.dot_dimension_numbers<[1], [0], [0], [1], [0, 0, 1, 1], [], []>} : vector<8x128xbf16>, vector<128x384xbf16>, vector<8x384xf32> -> vector<8x384xf32>
    %329 = vector.broadcast %10 : vector<1x384xf32> to vector<8x384xf32>
    %330 = arith.addf %328, %329 : vector<8x384xf32>
    %c40_71 = arith.constant 40 : index
    %c0_72 = arith.constant 0 : index
    %331 = vector.load %arg12[%c40_71, %c0_72] : memref<64x768xf32, #tpu.memory_space<vmem>>, vector<8x384xf32>
    %c16_73 = arith.constant 16 : index
    %c384_74 = arith.constant 384 : index
    %332 = vector.load %arg12[%c16_73, %c384_74] : memref<64x768xf32, #tpu.memory_space<vmem>>, vector<8x384xf32>
    %333 = vector.extract_strided_slice %331 {offsets = [0, 0], sizes = [8, 128], strides = [1, 1]} : vector<8x384xf32> to vector<8x128xf32>
    %334 = vector.extract_strided_slice %326 {offsets = [0, 0], sizes = [8, 128], strides = [1, 1]} : vector<8x384xf32> to vector<8x128xf32>
    %335 = arith.addf %333, %334 : vector<8x128xf32>
    %336 = arith.negf %335 : vector<8x128xf32>
    %337 = math.exp %336 : vector<8x128xf32>
    %cst_75 = arith.constant 1.000000e+00 : f32
    %338 = vector.broadcast %cst_75 : f32 to vector<8x128xf32>
    %339 = arith.addf %338, %337 : vector<8x128xf32>
    %340 = arith.divf %338, %339 : vector<8x128xf32>
    %341 = vector.extract_strided_slice %331 {offsets = [0, 128], sizes = [8, 128], strides = [1, 1]} : vector<8x384xf32> to vector<8x128xf32>
    %342 = vector.extract_strided_slice %326 {offsets = [0, 128], sizes = [8, 128], strides = [1, 1]} : vector<8x384xf32> to vector<8x128xf32>
    %343 = arith.addf %341, %342 : vector<8x128xf32>
    %344 = arith.negf %343 : vector<8x128xf32>
    %345 = math.exp %344 : vector<8x128xf32>
    %cst_76 = arith.constant 1.000000e+00 : f32
    %346 = vector.broadcast %cst_76 : f32 to vector<8x128xf32>
    %347 = arith.addf %346, %345 : vector<8x128xf32>
    %348 = arith.divf %346, %347 : vector<8x128xf32>
    %349 = vector.extract_strided_slice %331 {offsets = [0, 256], sizes = [8, 128], strides = [1, 1]} : vector<8x384xf32> to vector<8x128xf32>
    %350 = vector.extract_strided_slice %326 {offsets = [0, 256], sizes = [8, 128], strides = [1, 1]} : vector<8x384xf32> to vector<8x128xf32>
    %351 = arith.mulf %340, %350 : vector<8x128xf32>
    %352 = arith.addf %349, %351 : vector<8x128xf32>
    %353 = math.tanh %352 : vector<8x128xf32>
    %cst_77 = arith.constant 1.000000e+00 : f32
    %354 = vector.broadcast %cst_77 : f32 to vector<8x128xf32>
    %355 = arith.subf %354, %348 : vector<8x128xf32>
    %356 = arith.mulf %355, %353 : vector<8x128xf32>
    %357 = arith.mulf %348, %296 : vector<8x128xf32>
    %358 = arith.addf %356, %357 : vector<8x128xf32>
    %359 = vector.extract_strided_slice %332 {offsets = [0, 0], sizes = [8, 128], strides = [1, 1]} : vector<8x384xf32> to vector<8x128xf32>
    %360 = vector.extract_strided_slice %330 {offsets = [0, 0], sizes = [8, 128], strides = [1, 1]} : vector<8x384xf32> to vector<8x128xf32>
    %361 = arith.addf %359, %360 : vector<8x128xf32>
    %362 = arith.negf %361 : vector<8x128xf32>
    %363 = math.exp %362 : vector<8x128xf32>
    %cst_78 = arith.constant 1.000000e+00 : f32
    %364 = vector.broadcast %cst_78 : f32 to vector<8x128xf32>
    %365 = arith.addf %364, %363 : vector<8x128xf32>
    %366 = arith.divf %364, %365 : vector<8x128xf32>
    %367 = vector.extract_strided_slice %332 {offsets = [0, 128], sizes = [8, 128], strides = [1, 1]} : vector<8x384xf32> to vector<8x128xf32>
    %368 = vector.extract_strided_slice %330 {offsets = [0, 128], sizes = [8, 128], strides = [1, 1]} : vector<8x384xf32> to vector<8x128xf32>
    %369 = arith.addf %367, %368 : vector<8x128xf32>
    %370 = arith.negf %369 : vector<8x128xf32>
    %371 = math.exp %370 : vector<8x128xf32>
    %cst_79 = arith.constant 1.000000e+00 : f32
    %372 = vector.broadcast %cst_79 : f32 to vector<8x128xf32>
    %373 = arith.addf %372, %371 : vector<8x128xf32>
    %374 = arith.divf %372, %373 : vector<8x128xf32>
    %375 = vector.extract_strided_slice %332 {offsets = [0, 256], sizes = [8, 128], strides = [1, 1]} : vector<8x384xf32> to vector<8x128xf32>
    %376 = vector.extract_strided_slice %330 {offsets = [0, 256], sizes = [8, 128], strides = [1, 1]} : vector<8x384xf32> to vector<8x128xf32>
    %377 = arith.mulf %366, %376 : vector<8x128xf32>
    %378 = arith.addf %375, %377 : vector<8x128xf32>
    %379 = math.tanh %378 : vector<8x128xf32>
    %cst_80 = arith.constant 1.000000e+00 : f32
    %380 = vector.broadcast %cst_80 : f32 to vector<8x128xf32>
    %381 = arith.subf %380, %374 : vector<8x128xf32>
    %382 = arith.mulf %381, %379 : vector<8x128xf32>
    %383 = arith.mulf %374, %322 : vector<8x128xf32>
    %384 = arith.addf %382, %383 : vector<8x128xf32>
    %385 = arith.truncf %358 : vector<8x128xf32> to vector<8x128xbf16>
    %cst_81 = arith.constant dense<0.000000e+00> : vector<8x384xf32>
    %386 = tpu.matmul %385, %7, %cst_81 {dimension_numbers = #tpu.dot_dimension_numbers<[1], [0], [0], [1], [0, 0, 1, 1], [], []>} : vector<8x128xbf16>, vector<128x384xbf16>, vector<8x384xf32> -> vector<8x384xf32>
    %387 = vector.broadcast %9 : vector<1x384xf32> to vector<8x384xf32>
    %388 = arith.addf %386, %387 : vector<8x384xf32>
    %389 = arith.truncf %384 : vector<8x128xf32> to vector<8x128xbf16>
    %cst_82 = arith.constant dense<0.000000e+00> : vector<8x384xf32>
    %390 = tpu.matmul %389, %8, %cst_82 {dimension_numbers = #tpu.dot_dimension_numbers<[1], [0], [0], [1], [0, 0, 1, 1], [], []>} : vector<8x128xbf16>, vector<128x384xbf16>, vector<8x384xf32> -> vector<8x384xf32>
    %391 = vector.broadcast %10 : vector<1x384xf32> to vector<8x384xf32>
    %392 = arith.addf %390, %391 : vector<8x384xf32>
    %c48_83 = arith.constant 48 : index
    %c0_84 = arith.constant 0 : index
    %393 = vector.load %arg12[%c48_83, %c0_84] : memref<64x768xf32, #tpu.memory_space<vmem>>, vector<8x384xf32>
    %c8_85 = arith.constant 8 : index
    %c384_86 = arith.constant 384 : index
    %394 = vector.load %arg12[%c8_85, %c384_86] : memref<64x768xf32, #tpu.memory_space<vmem>>, vector<8x384xf32>
    %395 = vector.extract_strided_slice %393 {offsets = [0, 0], sizes = [8, 128], strides = [1, 1]} : vector<8x384xf32> to vector<8x128xf32>
    %396 = vector.extract_strided_slice %388 {offsets = [0, 0], sizes = [8, 128], strides = [1, 1]} : vector<8x384xf32> to vector<8x128xf32>
    %397 = arith.addf %395, %396 : vector<8x128xf32>
    %398 = arith.negf %397 : vector<8x128xf32>
    %399 = math.exp %398 : vector<8x128xf32>
    %cst_87 = arith.constant 1.000000e+00 : f32
    %400 = vector.broadcast %cst_87 : f32 to vector<8x128xf32>
    %401 = arith.addf %400, %399 : vector<8x128xf32>
    %402 = arith.divf %400, %401 : vector<8x128xf32>
    %403 = vector.extract_strided_slice %393 {offsets = [0, 128], sizes = [8, 128], strides = [1, 1]} : vector<8x384xf32> to vector<8x128xf32>
    %404 = vector.extract_strided_slice %388 {offsets = [0, 128], sizes = [8, 128], strides = [1, 1]} : vector<8x384xf32> to vector<8x128xf32>
    %405 = arith.addf %403, %404 : vector<8x128xf32>
    %406 = arith.negf %405 : vector<8x128xf32>
    %407 = math.exp %406 : vector<8x128xf32>
    %cst_88 = arith.constant 1.000000e+00 : f32
    %408 = vector.broadcast %cst_88 : f32 to vector<8x128xf32>
    %409 = arith.addf %408, %407 : vector<8x128xf32>
    %410 = arith.divf %408, %409 : vector<8x128xf32>
    %411 = vector.extract_strided_slice %393 {offsets = [0, 256], sizes = [8, 128], strides = [1, 1]} : vector<8x384xf32> to vector<8x128xf32>
    %412 = vector.extract_strided_slice %388 {offsets = [0, 256], sizes = [8, 128], strides = [1, 1]} : vector<8x384xf32> to vector<8x128xf32>
    %413 = arith.mulf %402, %412 : vector<8x128xf32>
    %414 = arith.addf %411, %413 : vector<8x128xf32>
    %415 = math.tanh %414 : vector<8x128xf32>
    %cst_89 = arith.constant 1.000000e+00 : f32
    %416 = vector.broadcast %cst_89 : f32 to vector<8x128xf32>
    %417 = arith.subf %416, %410 : vector<8x128xf32>
    %418 = arith.mulf %417, %415 : vector<8x128xf32>
    %419 = arith.mulf %410, %358 : vector<8x128xf32>
    %420 = arith.addf %418, %419 : vector<8x128xf32>
    %421 = vector.extract_strided_slice %394 {offsets = [0, 0], sizes = [8, 128], strides = [1, 1]} : vector<8x384xf32> to vector<8x128xf32>
    %422 = vector.extract_strided_slice %392 {offsets = [0, 0], sizes = [8, 128], strides = [1, 1]} : vector<8x384xf32> to vector<8x128xf32>
    %423 = arith.addf %421, %422 : vector<8x128xf32>
    %424 = arith.negf %423 : vector<8x128xf32>
    %425 = math.exp %424 : vector<8x128xf32>
    %cst_90 = arith.constant 1.000000e+00 : f32
    %426 = vector.broadcast %cst_90 : f32 to vector<8x128xf32>
    %427 = arith.addf %426, %425 : vector<8x128xf32>
    %428 = arith.divf %426, %427 : vector<8x128xf32>
    %429 = vector.extract_strided_slice %394 {offsets = [0, 128], sizes = [8, 128], strides = [1, 1]} : vector<8x384xf32> to vector<8x128xf32>
    %430 = vector.extract_strided_slice %392 {offsets = [0, 128], sizes = [8, 128], strides = [1, 1]} : vector<8x384xf32> to vector<8x128xf32>
    %431 = arith.addf %429, %430 : vector<8x128xf32>
    %432 = arith.negf %431 : vector<8x128xf32>
    %433 = math.exp %432 : vector<8x128xf32>
    %cst_91 = arith.constant 1.000000e+00 : f32
    %434 = vector.broadcast %cst_91 : f32 to vector<8x128xf32>
    %435 = arith.addf %434, %433 : vector<8x128xf32>
    %436 = arith.divf %434, %435 : vector<8x128xf32>
    %437 = vector.extract_strided_slice %394 {offsets = [0, 256], sizes = [8, 128], strides = [1, 1]} : vector<8x384xf32> to vector<8x128xf32>
    %438 = vector.extract_strided_slice %392 {offsets = [0, 256], sizes = [8, 128], strides = [1, 1]} : vector<8x384xf32> to vector<8x128xf32>
    %439 = arith.mulf %428, %438 : vector<8x128xf32>
    %440 = arith.addf %437, %439 : vector<8x128xf32>
    %441 = math.tanh %440 : vector<8x128xf32>
    %cst_92 = arith.constant 1.000000e+00 : f32
    %442 = vector.broadcast %cst_92 : f32 to vector<8x128xf32>
    %443 = arith.subf %442, %436 : vector<8x128xf32>
    %444 = arith.mulf %443, %441 : vector<8x128xf32>
    %445 = arith.mulf %436, %384 : vector<8x128xf32>
    %446 = arith.addf %444, %445 : vector<8x128xf32>
    %447 = arith.truncf %420 : vector<8x128xf32> to vector<8x128xbf16>
    %cst_93 = arith.constant dense<0.000000e+00> : vector<8x384xf32>
    %448 = tpu.matmul %447, %7, %cst_93 {dimension_numbers = #tpu.dot_dimension_numbers<[1], [0], [0], [1], [0, 0, 1, 1], [], []>} : vector<8x128xbf16>, vector<128x384xbf16>, vector<8x384xf32> -> vector<8x384xf32>
    %449 = vector.broadcast %9 : vector<1x384xf32> to vector<8x384xf32>
    %450 = arith.addf %448, %449 : vector<8x384xf32>
    %451 = arith.truncf %446 : vector<8x128xf32> to vector<8x128xbf16>
    %cst_94 = arith.constant dense<0.000000e+00> : vector<8x384xf32>
    %452 = tpu.matmul %451, %8, %cst_94 {dimension_numbers = #tpu.dot_dimension_numbers<[1], [0], [0], [1], [0, 0, 1, 1], [], []>} : vector<8x128xbf16>, vector<128x384xbf16>, vector<8x384xf32> -> vector<8x384xf32>
    %453 = vector.broadcast %10 : vector<1x384xf32> to vector<8x384xf32>
    %454 = arith.addf %452, %453 : vector<8x384xf32>
    %c56_95 = arith.constant 56 : index
    %c0_96 = arith.constant 0 : index
    %455 = vector.load %arg12[%c56_95, %c0_96] : memref<64x768xf32, #tpu.memory_space<vmem>>, vector<8x384xf32>
    %c0_97 = arith.constant 0 : index
    %c384_98 = arith.constant 384 : index
    %456 = vector.load %arg12[%c0_97, %c384_98] : memref<64x768xf32, #tpu.memory_space<vmem>>, vector<8x384xf32>
    %457 = vector.extract_strided_slice %455 {offsets = [0, 0], sizes = [8, 128], strides = [1, 1]} : vector<8x384xf32> to vector<8x128xf32>
    %458 = vector.extract_strided_slice %450 {offsets = [0, 0], sizes = [8, 128], strides = [1, 1]} : vector<8x384xf32> to vector<8x128xf32>
    %459 = arith.addf %457, %458 : vector<8x128xf32>
    %460 = arith.negf %459 : vector<8x128xf32>
    %461 = math.exp %460 : vector<8x128xf32>
    %cst_99 = arith.constant 1.000000e+00 : f32
    %462 = vector.broadcast %cst_99 : f32 to vector<8x128xf32>
    %463 = arith.addf %462, %461 : vector<8x128xf32>
    %464 = arith.divf %462, %463 : vector<8x128xf32>
    %465 = vector.extract_strided_slice %455 {offsets = [0, 128], sizes = [8, 128], strides = [1, 1]} : vector<8x384xf32> to vector<8x128xf32>
    %466 = vector.extract_strided_slice %450 {offsets = [0, 128], sizes = [8, 128], strides = [1, 1]} : vector<8x384xf32> to vector<8x128xf32>
    %467 = arith.addf %465, %466 : vector<8x128xf32>
    %468 = arith.negf %467 : vector<8x128xf32>
    %469 = math.exp %468 : vector<8x128xf32>
    %cst_100 = arith.constant 1.000000e+00 : f32
    %470 = vector.broadcast %cst_100 : f32 to vector<8x128xf32>
    %471 = arith.addf %470, %469 : vector<8x128xf32>
    %472 = arith.divf %470, %471 : vector<8x128xf32>
    %473 = vector.extract_strided_slice %455 {offsets = [0, 256], sizes = [8, 128], strides = [1, 1]} : vector<8x384xf32> to vector<8x128xf32>
    %474 = vector.extract_strided_slice %450 {offsets = [0, 256], sizes = [8, 128], strides = [1, 1]} : vector<8x384xf32> to vector<8x128xf32>
    %475 = arith.mulf %464, %474 : vector<8x128xf32>
    %476 = arith.addf %473, %475 : vector<8x128xf32>
    %477 = math.tanh %476 : vector<8x128xf32>
    %cst_101 = arith.constant 1.000000e+00 : f32
    %478 = vector.broadcast %cst_101 : f32 to vector<8x128xf32>
    %479 = arith.subf %478, %472 : vector<8x128xf32>
    %480 = arith.mulf %479, %477 : vector<8x128xf32>
    %481 = arith.mulf %472, %420 : vector<8x128xf32>
    %482 = arith.addf %480, %481 : vector<8x128xf32>
    %483 = vector.extract_strided_slice %456 {offsets = [0, 0], sizes = [8, 128], strides = [1, 1]} : vector<8x384xf32> to vector<8x128xf32>
    %484 = vector.extract_strided_slice %454 {offsets = [0, 0], sizes = [8, 128], strides = [1, 1]} : vector<8x384xf32> to vector<8x128xf32>
    %485 = arith.addf %483, %484 : vector<8x128xf32>
    %486 = arith.negf %485 : vector<8x128xf32>
    %487 = math.exp %486 : vector<8x128xf32>
    %cst_102 = arith.constant 1.000000e+00 : f32
    %488 = vector.broadcast %cst_102 : f32 to vector<8x128xf32>
    %489 = arith.addf %488, %487 : vector<8x128xf32>
    %490 = arith.divf %488, %489 : vector<8x128xf32>
    %491 = vector.extract_strided_slice %456 {offsets = [0, 128], sizes = [8, 128], strides = [1, 1]} : vector<8x384xf32> to vector<8x128xf32>
    %492 = vector.extract_strided_slice %454 {offsets = [0, 128], sizes = [8, 128], strides = [1, 1]} : vector<8x384xf32> to vector<8x128xf32>
    %493 = arith.addf %491, %492 : vector<8x128xf32>
    %494 = arith.negf %493 : vector<8x128xf32>
    %495 = math.exp %494 : vector<8x128xf32>
    %cst_103 = arith.constant 1.000000e+00 : f32
    %496 = vector.broadcast %cst_103 : f32 to vector<8x128xf32>
    %497 = arith.addf %496, %495 : vector<8x128xf32>
    %498 = arith.divf %496, %497 : vector<8x128xf32>
    %499 = vector.extract_strided_slice %456 {offsets = [0, 256], sizes = [8, 128], strides = [1, 1]} : vector<8x384xf32> to vector<8x128xf32>
    %500 = vector.extract_strided_slice %454 {offsets = [0, 256], sizes = [8, 128], strides = [1, 1]} : vector<8x384xf32> to vector<8x128xf32>
    %501 = arith.mulf %490, %500 : vector<8x128xf32>
    %502 = arith.addf %499, %501 : vector<8x128xf32>
    %503 = math.tanh %502 : vector<8x128xf32>
    %cst_104 = arith.constant 1.000000e+00 : f32
    %504 = vector.broadcast %cst_104 : f32 to vector<8x128xf32>
    %505 = arith.subf %504, %498 : vector<8x128xf32>
    %506 = arith.mulf %505, %503 : vector<8x128xf32>
    %507 = arith.mulf %498, %446 : vector<8x128xf32>
    %508 = arith.addf %506, %507 : vector<8x128xf32>
    %c0_105 = arith.constant 0 : index
    %c0_106 = arith.constant 0 : index
    %509 = vector.load %arg11[%c0_105, %c0_106] : memref<8x256xf32, #tpu.memory_space<vmem>>, vector<8x128xf32>
    tpu.vector_store %arg11[%c0_105, %c0_106], %482 {strides = array<i32>} : memref<8x256xf32, #tpu.memory_space<vmem>>, vector<8x128xf32>,
    %c0_107 = arith.constant 0 : index
    %c128 = arith.constant 128 : index
    %510 = vector.load %arg11[%c0_107, %c128] : memref<8x256xf32, #tpu.memory_space<vmem>>, vector<8x128xf32>
    tpu.vector_store %arg11[%c0_107, %c128], %508 {strides = array<i32>} : memref<8x256xf32, #tpu.memory_space<vmem>>, vector<8x128xf32>,
    %511 = arith.truncf %482 : vector<8x128xf32> to vector<8x128xbf16>
    %c0_108 = arith.constant 0 : index
    %c0_109 = arith.constant 0 : index
    %512 = vector.load %arg7[%c0_108, %c0_109] : memref<128x128xbf16, #tpu.memory_space<vmem>>, vector<128x128xbf16>
    %cst_110 = arith.constant dense<0.000000e+00> : vector<8x128xf32>
    %513 = tpu.matmul %511, %512, %cst_110 {dimension_numbers = #tpu.dot_dimension_numbers<[1], [0], [0], [1], [0, 0, 1, 1], [], []>} : vector<8x128xbf16>, vector<128x128xbf16>, vector<8x128xf32> -> vector<8x128xf32>
    %514 = arith.truncf %508 : vector<8x128xf32> to vector<8x128xbf16>
    %c0_111 = arith.constant 0 : index
    %c0_112 = arith.constant 0 : index
    %515 = vector.load %arg8[%c0_111, %c0_112] : memref<128x128xbf16, #tpu.memory_space<vmem>>, vector<128x128xbf16>
    %cst_113 = arith.constant dense<0.000000e+00> : vector<8x128xf32>
    %516 = tpu.matmul %514, %515, %cst_113 {dimension_numbers = #tpu.dot_dimension_numbers<[1], [0], [0], [1], [0, 0, 1, 1], [], []>} : vector<8x128xbf16>, vector<128x128xbf16>, vector<8x128xf32> -> vector<8x128xf32>
    %517 = arith.addf %513, %516 : vector<8x128xf32>
    %c0_114 = arith.constant 0 : index
    %c0_115 = arith.constant 0 : index
    %518 = vector.load %arg9[%c0_114, %c0_115] : memref<1x128xf32, #tpu.memory_space<vmem>>, vector<1x128xf32>
    %519 = vector.broadcast %518 : vector<1x128xf32> to vector<8x128xf32>
    %520 = arith.addf %517, %519 : vector<8x128xf32>
    %c0_116 = arith.constant 0 : index
    %c0_117 = arith.constant 0 : index
    %521 = vector.load %arg10[%c0_116, %c0_117] : memref<8x128xf32, #tpu.memory_space<vmem>>, vector<8x128xf32>
    tpu.vector_store %arg10[%c0_116, %c0_117], %520 {strides = array<i32>} : memref<8x128xf32, #tpu.memory_space<vmem>>, vector<8x128xf32>,
    return
  }
}

</mosaic_0001>

<llo_original>
// kernel: gru_model_forward.1
$region0: #{gru_model_forward.1}
  #allocation0 [shape = 'u32[]', space=smem, size = 0x4, offset = 0x4, fixed_abs, tag = 'smem constant byte address 0x4 - core index']
  #allocation1 [shape = 'u32[144,128]{1,0:T(1,128)}', space=vmem, size = 0x12000, scoped, tag = 'internal scratch']
  #allocation2 [shape = 'f32[64,768]{1,0:T(8,128)}', space=vmem, size = 0x30000, scoped, tag = 'scratch operand']
  %s0 = inlined_call_operand.vmem [shape: bf16[64,16], index: 0, kind: input, shape index: {}]
  %s1 = inlined_call_operand.vmem [shape: bf16[16,768], index: 1, kind: input, shape index: {}]
  %s2 = inlined_call_operand.vmem [shape: f32[1,768], index: 2, kind: input, shape index: {}]
  %s3 = inlined_call_operand.vmem [shape: bf16[128,384], index: 3, kind: input, shape index: {}]
  %s4 = inlined_call_operand.vmem [shape: f32[1,384], index: 4, kind: input, shape index: {}]
  %s5 = inlined_call_operand.vmem [shape: bf16[128,384], index: 5, kind: input, shape index: {}]
  %s6 = inlined_call_operand.vmem [shape: f32[1,384], index: 6, kind: input, shape index: {}]
  %s7 = inlined_call_operand.vmem [shape: bf16[128,128], index: 7, kind: input, shape index: {}]
  %s8 = inlined_call_operand.vmem [shape: bf16[128,128], index: 8, kind: input, shape index: {}]
  %s9 = inlined_call_operand.vmem [shape: f32[1,128], index: 9, kind: input, shape index: {}]
  %s10 = inlined_call_operand.vmem [shape: f32[8,128], index: 10, kind: output, shape index: {0}]
  %s11 = inlined_call_operand.vmem [shape: f32[8,256], index: 11, kind: output, shape index: {1}]
  %12 = xla_tuple %s10, %s11
  %s13 = sld [smem:[#allocation0]]
  $region58: #{gru_model_forward.1} parent=0
    _
  %s15 = ssub.s32 1, %s13
  %s16 = scalar_select 0, %s15, %s13
  // Predicated region
  $region2: #{gru_model_forward.1} parent=0 // pred_check
    _
  $region3: #{gru_model_forward.1} parent=0 // pred_check_branch
    %18 = sbr.rel (0) target = $region5
  $region4: #{gru_model_forward.1} parent=0 // pred_region
    _
  $region5: #{gru_model_forward.1} parent=0 // pred_fallthru
    _
  // Predicated region
  $region6: #{gru_model_forward.1} parent=0 // pred_check
    _
  $region7: #{gru_model_forward.1} parent=0 // pred_check_branch
    %20 = sbr.rel (0) target = $region9
  $region8: #{gru_model_forward.1} parent=0 // pred_region
    _
  $region9: #{gru_model_forward.1} parent=0 // pred_fallthru
    _
  // Predicated region
  $region10: #{gru_model_forward.1} parent=0 // pred_check
    _
  $region11: #{gru_model_forward.1} parent=0 // pred_check_branch
    %22 = sbr.rel (0) target = $region13
  $region12: #{gru_model_forward.1} parent=0 // pred_region
    _
  $region13: #{gru_model_forward.1} parent=0 // pred_fallthru
    _
  // Predicated region
  $region14: #{gru_model_forward.1} parent=0 // pred_check
    _
  $region15: #{gru_model_forward.1} parent=0 // pred_check_branch
    %24 = sbr.rel (0) target = $region17
  $region16: #{gru_model_forward.1} parent=0 // pred_region
    _
  $region17: #{gru_model_forward.1} parent=0 // pred_fallthru
    _
  // Predicated region
  $region18: #{gru_model_forward.1} parent=0 // pred_check
    _
  $region19: #{gru_model_forward.1} parent=0 // pred_check_branch
    %26 = sbr.rel (0) target = $region21
  $region20: #{gru_model_forward.1} parent=0 // pred_region
    _
  $region21: #{gru_model_forward.1} parent=0 // pred_fallthru
    _
  // Predicated region
  $region22: #{gru_model_forward.1} parent=0 // pred_check
    _
  $region23: #{gru_model_forward.1} parent=0 // pred_check_branch
    %28 = sbr.rel (0) target = $region25
  $region24: #{gru_model_forward.1} parent=0 // pred_region
    _
  $region25: #{gru_model_forward.1} parent=0 // pred_fallthru
    _
  // Predicated region
  $region26: #{gru_model_forward.1} parent=0 // pred_check
    _
  $region27: #{gru_model_forward.1} parent=0 // pred_check_branch
    %30 = sbr.rel (0) target = $region29
  $region28: #{gru_model_forward.1} parent=0 // pred_region
    _
  $region29: #{gru_model_forward.1} parent=0 // pred_fallthru
    _
  // Predicated region
  $region30: #{gru_model_forward.1} parent=0 // pred_check
    _
  $region31: #{gru_model_forward.1} parent=0 // pred_check_branch
    %32 = sbr.rel (0) target = $region33
  $region32: #{gru_model_forward.1} parent=0 // pred_region
    _
  $region33: #{gru_model_forward.1} parent=0 // pred_fallthru
    _
  // Predicated region
  $region34: #{gru_model_forward.1} parent=0 // pred_check
    _
  $region35: #{gru_model_forward.1} parent=0 // pred_check_branch
    %34 = sbr.rel (0) target = $region37
  $region36: #{gru_model_forward.1} parent=0 // pred_region
    _
  $region37: #{gru_model_forward.1} parent=0 // pred_fallthru
    _
  // Predicated region
  $region38: #{gru_model_forward.1} parent=0 // pred_check
    _
  $region39: #{gru_model_forward.1} parent=0 // pred_check_branch
    %36 = sbr.rel (0) target = $region41
  $region40: #{gru_model_forward.1} parent=0 // pred_region
    _
  $region41: #{gru_model_forward.1} parent=0 // pred_fallthru
    _
  %v38 = vld [vmem:[%s0] sm:$0xf]
  %v39 = vld [vmem:[%s0 + $0x4] sm:$0xf]
  %v40 = vld [vmem:[%s0 + $0x8] sm:$0xf]
  %v41 = vld [vmem:[%s0 + $0xc] sm:$0xf]
  %v42 = vld [vmem:[%s0 + $0x10] sm:$0xf]
  %v43 = vld [vmem:[%s0 + $0x14] sm:$0xf]
  %v44 = vld [vmem:[%s0 + $0x18] sm:$0xf]
  %v45 = vld [vmem:[%s0 + $0x1c] sm:$0xf]
  %v46 = vld [vmem:[%s1] sm:$0xff]
  %v47 = vld [vmem:[%s1 + $0x8] sm:$0xff]
  %v48 = vld [vmem:[%s1 + $0x10] sm:$0xff]
  %v49 = vld [vmem:[%s1 + $0x18] sm:$0xff]
  %v50 = vld [vmem:[%s1 + $0x20] sm:$0xff]
  %v51 = vld [vmem:[%s1 + $0x28] sm:$0xff]
  %v52 = vld [vmem:[%s2] sm:$0x3f]
  %v54 = vlaneseq
  %v55 = vshrl.u32 %v54, 7
  %v56 = vsub.s32 0, %v55
  %v57 = vrot.slane %v52, %v56
  %v58 = vlaneseq
  %v59 = vshrl.u32 %v58, 7
  %v60 = vsub.s32 1, %v59
  %v61 = vrot.slane %v52, %v60
  %v62 = vlaneseq
  %v63 = vshrl.u32 %v62, 7
  %v64 = vsub.s32 2, %v63
  %v65 = vrot.slane %v52, %v64
  %v66 = vlaneseq
  %v67 = vshrl.u32 %v66, 7
  %v68 = vsub.s32 3, %v67
  %v69 = vrot.slane %v52, %v68
  %v70 = vlaneseq
  %v71 = vshrl.u32 %v70, 7
  %v72 = vsub.s32 4, %v71
  %v73 = vrot.slane %v52, %v72
  %v74 = vlaneseq
  %v75 = vshrl.u32 %v74, 7
  %v76 = vsub.s32 5, %v75
  %v77 = vrot.slane %v52, %v76
  %v92 = vunpack.c.l.b16 %v38
  %v93 = vunpack.c.l.b16 %v39
  %v94 = vunpack.c.l.b16 %v40
  %v95 = vunpack.c.l.b16 %v41
  %v96 = vunpack.c.l.b16 %v42
  %v97 = vunpack.c.l.b16 %v43
  %v98 = vunpack.c.l.b16 %v44
  %v99 = vunpack.c.l.b16 %v45
  %v100 = vpack.c.b16 %v93, %v92
  %v101 = vpack.c.b16 %v95, %v94
  %v102 = vpack.c.b16 %v97, %v96
  %v103 = vpack.c.b16 %v99, %v98
  %v110 = vunpack.c.l.b16 %v46
  %v111 = vunpack.c.h.b16 %v46
  %v112 = vunpack.c.l.b16 %v47
  %v113 = vunpack.c.h.b16 %v47
  %v114 = vunpack.c.l.b16 %v48
  %v115 = vunpack.c.h.b16 %v48
  %v116 = vunpack.c.l.b16 %v49
  %v117 = vunpack.c.h.b16 %v49
  %v118 = vunpack.c.l.b16 %v50
  %v119 = vunpack.c.h.b16 %v50
  %v120 = vunpack.c.l.b16 %v51
  %v121 = vunpack.c.h.b16 %v51
  %v122 = vpack.c.b16 %v116, %v110
  %v123 = vpack.c.b16 %v117, %v111
  %v124 = vpack.c.b16 %v118, %v112
  %v125 = vpack.c.b16 %v119, %v113
  %v126 = vpack.c.b16 %v120, %v114
  %v127 = vpack.c.b16 %v121, %v115
  %vm134 = vcmask 130048
  %v136 = vsel %vm134, %v100, 0
  %v139 = vsel %vm134, %v101, 0
  %v142 = vsel %vm134, %v102, 0
  %v145 = vsel %vm134, %v103, 0
  %147 = vmatprep.subr.bf16.mxu0 0
  %148 = vmatpush1.bf16.msra.mxu0 0
  %149 = vmatprep.subr.bf16.mxu0 0
  %150 = vmatpush1.bf16.msra.mxu0 0
  %151 = vmatprep.subr.bf16.mxu0 0
  %152 = vmatpush1.bf16.msra.mxu0 0
  %153 = vmatprep.subr.bf16.mxu0 0
  %154 = vmatpush1.bf16.msra.mxu0 0
  %155 = vmatprep.subr.bf16.mxu0 0
  %156 = vmatpush1.bf16.msra.mxu0 0
  %157 = vmatprep.subr.bf16.mxu0 0
  %158 = vmatpush1.bf16.msra.mxu0 0
  %159 = vmatprep.subr.bf16.mxu0 0
  %160 = vmatpush1.bf16.msra.mxu0 0
  %161 = vmatprep.subr.bf16.mxu0 %v123
  %162 = vmatpush1.bf16.msra.mxu0 %v122
  %163 = vmatprep.subr.bf16.mxu0 0
  %164 = vmatpush2.bf16.msra.mxu0 0
  %165 = vmatprep.subr.bf16.mxu0 0
  %166 = vmatpush2.bf16.msra.mxu0 0
  %167 = vmatprep.subr.bf16.mxu0 0
  %168 = vmatpush2.bf16.msra.mxu0 0
  %169 = vmatprep.subr.bf16.mxu0 0
  %170 = vmatpush2.bf16.msra.mxu0 0
  %171 = vmatprep.subr.bf16.mxu0 0
  %172 = vmatpush2.bf16.msra.mxu0 0
  %173 = vmatprep.subr.bf16.mxu0 0
  %174 = vmatpush2.bf16.msra.mxu0 0
  %175 = vmatprep.subr.bf16.mxu0 0
  %176 = vmatpush2.bf16.msra.mxu0 0
  %177 = vmatprep.subr.bf16.mxu0 0
  %178 = vmatpush2.bf16.msra.mxu0 0
  %179 = vmatprep.mubr.bf16.mxu0 0
  %180 = vmatmul.mubr.bf16.gmra.mxu0 %v136
  %v181 = vpop.f32.mrf.mxu0
  %v182 = vadd.f32 %v57, %v181
  %v183 = vpop.f32.mrf.mxu0
  %v184 = vadd.f32 %v61, %v183
  %v185 = vpop.f32.mrf.mxu0
  %v186 = vadd.f32 %v57, %v185
  %v187 = vpop.f32.mrf.mxu0
  %v188 = vadd.f32 %v61, %v187
  %189 = vmatprep.mubr.bf16.mxu0 0
  %190 = vmatmul.mubr.bf16.gmra.mxu0 %v139
  %v191 = vpop.f32.mrf.mxu0
  %v192 = vadd.f32 %v57, %v191
  %v193 = vpop.f32.mrf.mxu0
  %v194 = vadd.f32 %v61, %v193
  %v195 = vpop.f32.mrf.mxu0
  %v196 = vadd.f32 %v57, %v195
  %v197 = vpop.f32.mrf.mxu0
  %v198 = vadd.f32 %v61, %v197
  %199 = vmatprep.mubr.bf16.mxu0 0
  %200 = vmatmul.mubr.bf16.gmra.mxu0 %v142
  %v201 = vpop.f32.mrf.mxu0
  %v202 = vadd.f32 %v57, %v201
  %v203 = vpop.f32.mrf.mxu0
  %v204 = vadd.f32 %v61, %v203
  %v205 = vpop.f32.mrf.mxu0
  %v206 = vadd.f32 %v57, %v205
  %v207 = vpop.f32.mrf.mxu0
  %v208 = vadd.f32 %v61, %v207
  %209 = vmatprep.mubr.bf16.mxu0 0
  %210 = vmatmul.mubr.bf16.gmra.mxu0 %v145
  %v211 = vpop.f32.mrf.mxu0
  %v212 = vadd.f32 %v57, %v211
  %v213 = vpop.f32.mrf.mxu0
  %v214 = vadd.f32 %v61, %v213
  %v215 = vpop.f32.mrf.mxu0
  %v216 = vadd.f32 %v57, %v215
  %v217 = vpop.f32.mrf.mxu0
  %v218 = vadd.f32 %v61, %v217
  %219 = vdwg.mxu0
  %220 = vmatprep.subr.bf16.mxu0 0
  %221 = vmatpush1.bf16.msra.mxu0 0
  %222 = vmatprep.subr.bf16.mxu0 0
  %223 = vmatpush1.bf16.msra.mxu0 0
  %224 = vmatprep.subr.bf16.mxu0 0
  %225 = vmatpush1.bf16.msra.mxu0 0
  %226 = vmatprep.subr.bf16.mxu0 0
  %227 = vmatpush1.bf16.msra.mxu0 0
  %228 = vmatprep.subr.bf16.mxu0 0
  %229 = vmatpush1.bf16.msra.mxu0 0
  %230 = vmatprep.subr.bf16.mxu0 0
  %231 = vmatpush1.bf16.msra.mxu0 0
  %232 = vmatprep.subr.bf16.mxu0 0
  %233 = vmatpush1.bf16.msra.mxu0 0
  %234 = vmatprep.subr.bf16.mxu0 %v125
  %235 = vmatpush1.bf16.msra.mxu0 %v124
  %236 = vmatprep.subr.bf16.mxu0 0
  %237 = vmatpush2.bf16.msra.mxu0 0
  %238 = vmatprep.subr.bf16.mxu0 0
  %239 = vmatpush2.bf16.msra.mxu0 0
  %240 = vmatprep.subr.bf16.mxu0 0
  %241 = vmatpush2.bf16.msra.mxu0 0
  %242 = vmatprep.subr.bf16.mxu0 0
  %243 = vmatpush2.bf16.msra.mxu0 0
  %244 = vmatprep.subr.bf16.mxu0 0
  %245 = vmatpush2.bf16.msra.mxu0 0
  %246 = vmatprep.subr.bf16.mxu0 0
  %247 = vmatpush2.bf16.msra.mxu0 0
  %248 = vmatprep.subr.bf16.mxu0 0
  %249 = vmatpush2.bf16.msra.mxu0 0
  %250 = vmatprep.subr.bf16.mxu0 0
  %251 = vmatpush2.bf16.msra.mxu0 0
  %252 = vmatprep.mubr.bf16.mxu0 0
  %253 = vmatmul.mubr.bf16.gmra.mxu0 %v136
  %v254 = vpop.f32.mrf.mxu0
  %v255 = vadd.f32 %v65, %v254
  %v256 = vpop.f32.mrf.mxu0
  %v257 = vadd.f32 %v69, %v256
  %v258 = vpop.f32.mrf.mxu0
  %v259 = vadd.f32 %v65, %v258
  %v260 = vpop.f32.mrf.mxu0
  %v261 = vadd.f32 %v69, %v260
  %262 = vmatprep.mubr.bf16.mxu0 0
  %263 = vmatmul.mubr.bf16.gmra.mxu0 %v139
  %v264 = vpop.f32.mrf.mxu0
  %v265 = vadd.f32 %v65, %v264
  %v266 = vpop.f32.mrf.mxu0
  %v267 = vadd.f32 %v69, %v266
  %v268 = vpop.f32.mrf.mxu0
  %v269 = vadd.f32 %v65, %v268
  %v270 = vpop.f32.mrf.mxu0
  %v271 = vadd.f32 %v69, %v270
  %272 = vmatprep.mubr.bf16.mxu0 0
  %273 = vmatmul.mubr.bf16.gmra.mxu0 %v142
  %v274 = vpop.f32.mrf.mxu0
  %v275 = vadd.f32 %v65, %v274
  %v276 = vpop.f32.mrf.mxu0
  %v277 = vadd.f32 %v69, %v276
  %v278 = vpop.f32.mrf.mxu0
  %v279 = vadd.f32 %v65, %v278
  %v280 = vpop.f32.mrf.mxu0
  %v281 = vadd.f32 %v69, %v280
  %282 = vmatprep.mubr.bf16.mxu0 0
  %283 = vmatmul.mubr.bf16.gmra.mxu0 %v145
  %v284 = vpop.f32.mrf.mxu0
  %v285 = vadd.f32 %v65, %v284
  %v286 = vpop.f32.mrf.mxu0
  %v287 = vadd.f32 %v69, %v286
  %v288 = vpop.f32.mrf.mxu0
  %v289 = vadd.f32 %v65, %v288
  %v290 = vpop.f32.mrf.mxu0
  %v291 = vadd.f32 %v69, %v290
  %292 = vdwg.mxu0
  %293 = vmatprep.subr.bf16.mxu0 0
  %294 = vmatpush1.bf16.msra.mxu0 0
  %295 = vmatprep.subr.bf16.mxu0 0
  %296 = vmatpush1.bf16.msra.mxu0 0
  %297 = vmatprep.subr.bf16.mxu0 0
  %298 = vmatpush1.bf16.msra.mxu0 0
  %299 = vmatprep.subr.bf16.mxu0 0
  %300 = vmatpush1.bf16.msra.mxu0 0
  %301 = vmatprep.subr.bf16.mxu0 0
  %302 = vmatpush1.bf16.msra.mxu0 0
  %303 = vmatprep.subr.bf16.mxu0 0
  %304 = vmatpush1.bf16.msra.mxu0 0
  %305 = vmatprep.subr.bf16.mxu0 0
  %306 = vmatpush1.bf16.msra.mxu0 0
  %307 = vmatprep.subr.bf16.mxu0 %v127
  %308 = vmatpush1.bf16.msra.mxu0 %v126
  %309 = vmatprep.subr.bf16.mxu0 0
  %310 = vmatpush2.bf16.msra.mxu0 0
  %311 = vmatprep.subr.bf16.mxu0 0
  %312 = vmatpush2.bf16.msra.mxu0 0
  %313 = vmatprep.subr.bf16.mxu0 0
  %314 = vmatpush2.bf16.msra.mxu0 0
  %315 = vmatprep.subr.bf16.mxu0 0
  %316 = vmatpush2.bf16.msra.mxu0 0
  %317 = vmatprep.subr.bf16.mxu0 0
  %318 = vmatpush2.bf16.msra.mxu0 0
  %319 = vmatprep.subr.bf16.mxu0 0
  %320 = vmatpush2.bf16.msra.mxu0 0
  %321 = vmatprep.subr.bf16.mxu0 0
  %322 = vmatpush2.bf16.msra.mxu0 0
  %323 = vmatprep.subr.bf16.mxu0 0
  %324 = vmatpush2.bf16.msra.mxu0 0
  %325 = vmatprep.mubr.bf16.mxu0 0
  %326 = vmatmul.mubr.bf16.gmra.mxu0 %v136
  %v327 = vpop.f32.mrf.mxu0
  %v328 = vadd.f32 %v73, %v327
  %v329 = vpop.f32.mrf.mxu0
  %v330 = vadd.f32 %v77, %v329
  %v331 = vpop.f32.mrf.mxu0
  %v332 = vadd.f32 %v73, %v331
  %v333 = vpop.f32.mrf.mxu0
  %v334 = vadd.f32 %v77, %v333
  %335 = vmatprep.mubr.bf16.mxu0 0
  %336 = vmatmul.mubr.bf16.gmra.mxu0 %v139
  %v337 = vpop.f32.mrf.mxu0
  %v338 = vadd.f32 %v73, %v337
  %v339 = vpop.f32.mrf.mxu0
  %v340 = vadd.f32 %v77, %v339
  %v341 = vpop.f32.mrf.mxu0
  %v342 = vadd.f32 %v73, %v341
  %v343 = vpop.f32.mrf.mxu0
  %v344 = vadd.f32 %v77, %v343
  %345 = vmatprep.mubr.bf16.mxu0 0
  %346 = vmatmul.mubr.bf16.gmra.mxu0 %v142
  %v347 = vpop.f32.mrf.mxu0
  %v348 = vadd.f32 %v73, %v347
  %v349 = vpop.f32.mrf.mxu0
  %v350 = vadd.f32 %v77, %v349
  %v351 = vpop.f32.mrf.mxu0
  %v352 = vadd.f32 %v73, %v351
  %v353 = vpop.f32.mrf.mxu0
  %v354 = vadd.f32 %v77, %v353
  %355 = vmatprep.mubr.bf16.mxu0 0
  %356 = vmatmul.mubr.bf16.gmra.mxu0 %v145
  %v357 = vpop.f32.mrf.mxu0
  %v358 = vadd.f32 %v73, %v357
  %v359 = vpop.f32.mrf.mxu0
  %v360 = vadd.f32 %v77, %v359
  %v361 = vpop.f32.mrf.mxu0
  %v362 = vadd.f32 %v73, %v361
  %v363 = vpop.f32.mrf.mxu0
  %v364 = vadd.f32 %v77, %v363
  %365 = vdwg.mxu0
  %366 = vst [vmem:[#allocation2] sm:$0xff] %v182
  %367 = vst [vmem:[#allocation2 + $0x8] sm:$0xff] %v184
  %368 = vst [vmem:[#allocation2 + $0x10] sm:$0xff] %v255
  %369 = vst [vmem:[#allocation2 + $0x18] sm:$0xff] %v257
  %370 = vst [vmem:[#allocation2 + $0x20] sm:$0xff] %v328
  %371 = vst [vmem:[#allocation2 + $0x28] sm:$0xff] %v330
  %372 = vst [vmem:[#allocation2 + $0x30] sm:$0xff] %v186
  %373 = vst [vmem:[#allocation2 + $0x38] sm:$0xff] %v188
  %374 = vst [vmem:[#allocation2 + $0x40] sm:$0xff] %v259
  %375 = vst [vmem:[#allocation2 + $0x48] sm:$0xff] %v261
  %376 = vst [vmem:[#allocation2 + $0x50] sm:$0xff] %v332
  %377 = vst [vmem:[#allocation2 + $0x58] sm:$0xff] %v334
  %378 = vst [vmem:[#allocation2 + $0x60] sm:$0xff] %v192
  %379 = vst [vmem:[#allocation2 + $0x68] sm:$0xff] %v194
  %380 = vst [vmem:[#allocation2 + $0x70] sm:$0xff] %v265
  %381 = vst [vmem:[#allocation2 + $0x78] sm:$0xff] %v267
  %382 = vst [vmem:[#allocation2 + $0x80] sm:$0xff] %v338
  %383 = vst [vmem:[#allocation2 + $0x88] sm:$0xff] %v340
  %384 = vst [vmem:[#allocation2 + $0x90] sm:$0xff] %v196
  %385 = vst [vmem:[#allocation2 + $0x98] sm:$0xff] %v198
  %386 = vst [vmem:[#allocation2 + $0xa0] sm:$0xff] %v269
  %387 = vst [vmem:[#allocation2 + $0xa8] sm:$0xff] %v271
  %388 = vst [vmem:[#allocation2 + $0xb0] sm:$0xff] %v342
  %389 = vst [vmem:[#allocation2 + $0xb8] sm:$0xff] %v344
  %390 = vst [vmem:[#allocation2 + $0xc0] sm:$0xff] %v202
  %391 = vst [vmem:[#allocation2 + $0xc8] sm:$0xff] %v204
  %392 = vst [vmem:[#allocation2 + $0xd0] sm:$0xff] %v275
  %393 = vst [vmem:[#allocation2 + $0xd8] sm:$0xff] %v277
  %394 = vst [vmem:[#allocation2 + $0xe0] sm:$0xff] %v348
  %395 = vst [vmem:[#allocation2 + $0xe8] sm:$0xff] %v350
  %396 = vst [vmem:[#allocation2 + $0xf0] sm:$0xff] %v206
  %397 = vst [vmem:[#allocation2 + $0xf8] sm:$0xff] %v208
  %398 = vst [vmem:[#allocation2 + $0x100] sm:$0xff] %v279
  %399 = vst [vmem:[#allocation2 + $0x108] sm:$0xff] %v281
  %400 = vst [vmem:[#allocation2 + $0x110] sm:$0xff] %v352
  %401 = vst [vmem:[#allocation2 + $0x118] sm:$0xff] %v354
  %402 = vst [vmem:[#allocation2 + $0x120] sm:$0xff] %v212
  %403 = vst [vmem:[#allocation2 + $0x128] sm:$0xff] %v214
  %404 = vst [vmem:[#allocation2 + $0x130] sm:$0xff] %v285
  %405 = vst [vmem:[#allocation2 + $0x138] sm:$0xff] %v287
  %406 = vst [vmem:[#allocation2 + $0x140] sm:$0xff] %v358
  %407 = vst [vmem:[#allocation2 + $0x148] sm:$0xff] %v360
  %408 = vst [vmem:[#allocation2 + $0x150] sm:$0xff] %v216
  %409 = vst [vmem:[#allocation2 + $0x158] sm:$0xff] %v218
  %410 = vst [vmem:[#allocation2 + $0x160] sm:$0xff] %v289
  %411 = vst [vmem:[#allocation2 + $0x168] sm:$0xff] %v291
  %412 = vst [vmem:[#allocation2 + $0x170] sm:$0xff] %v362
  %413 = vst [vmem:[#allocation2 + $0x178] sm:$0xff] %v364
  %v414 = vld [vmem:[%s3] sm:$0xff]
  %v415 = vld [vmem:[%s3 + $0x8] sm:$0xf]
  %v416 = vld [vmem:[%s3 + $0xc] sm:$0xff]
  %v417 = vld [vmem:[%s3 + $0x14] sm:$0xf]
  %v418 = vld [vmem:[%s3 + $0x18] sm:$0xff]
  %v419 = vld [vmem:[%s3 + $0x20] sm:$0xf]
  %v420 = vld [vmem:[%s3 + $0x24] sm:$0xff]
  %v421 = vld [vmem:[%s3 + $0x2c] sm:$0xf]
  %v422 = vld [vmem:[%s3 + $0x30] sm:$0xff]
  %v423 = vld [vmem:[%s3 + $0x38] sm:$0xf]
  %v424 = vld [vmem:[%s3 + $0x3c] sm:$0xff]
  %v425 = vld [vmem:[%s3 + $0x44] sm:$0xf]
  %v426 = vld [vmem:[%s3 + $0x48] sm:$0xff]
  %v427 = vld [vmem:[%s3 + $0x50] sm:$0xf]
  %v428 = vld [vmem:[%s3 + $0x54] sm:$0xff]
  %v429 = vld [vmem:[%s3 + $0x5c] sm:$0xf]
  %v430 = vld [vmem:[%s3 + $0x60] sm:$0xff]
  %v431 = vld [vmem:[%s3 + $0x68] sm:$0xf]
  %v432 = vld [vmem:[%s3 + $0x6c] sm:$0xff]
  %v433 = vld [vmem:[%s3 + $0x74] sm:$0xf]
  %v434 = vld [vmem:[%s3 + $0x78] sm:$0xff]
  %v435 = vld [vmem:[%s3 + $0x80] sm:$0xf]
  %v436 = vld [vmem:[%s3 + $0x84] sm:$0xff]
  %v437 = vld [vmem:[%s3 + $0x8c] sm:$0xf]
  %v438 = vld [vmem:[%s3 + $0x90] sm:$0xff]
  %v439 = vld [vmem:[%s3 + $0x98] sm:$0xf]
  %v440 = vld [vmem:[%s3 + $0x9c] sm:$0xff]
  %v441 = vld [vmem:[%s3 + $0xa4] sm:$0xf]
  %v442 = vld [vmem:[%s3 + $0xa8] sm:$0xff]
  %v443 = vld [vmem:[%s3 + $0xb0] sm:$0xf]
  %v444 = vld [vmem:[%s3 + $0xb4] sm:$0xff]
  %v445 = vld [vmem:[%s3 + $0xbc] sm:$0xf]
  %v446 = vld [vmem:[%s5] sm:$0xff]
  %v447 = vld [vmem:[%s5 + $0x8] sm:$0xf]
  %v448 = vld [vmem:[%s5 + $0xc] sm:$0xff]
  %v449 = vld [vmem:[%s5 + $0x14] sm:$0xf]
  %v450 = vld [vmem:[%s5 + $0x18] sm:$0xff]
  %v451 = vld [vmem:[%s5 + $0x20] sm:$0xf]
  %v452 = vld [vmem:[%s5 + $0x24] sm:$0xff]
  %v453 = vld [vmem:[%s5 + $0x2c] sm:$0xf]
  %v454 = vld [vmem:[%s5 + $0x30] sm:$0xff]
  %v455 = vld [vmem:[%s5 + $0x38] sm:$0xf]
  %v456 = vld [vmem:[%s5 + $0x3c] sm:$0xff]
  %v457 = vld [vmem:[%s5 + $0x44] sm:$0xf]
  %v458 = vld [vmem:[%s5 + $0x48] sm:$0xff]
  %v459 = vld [vmem:[%s5 + $0x50] sm:$0xf]
  %v460 = vld [vmem:[%s5 + $0x54] sm:$0xff]
  %v461 = vld [vmem:[%s5 + $0x5c] sm:$0xf]
  %v462 = vld [vmem:[%s5 + $0x60] sm:$0xff]
  %v463 = vld [vmem:[%s5 + $0x68] sm:$0xf]
  %v464 = vld [vmem:[%s5 + $0x6c] sm:$0xff]
  %v465 = vld [vmem:[%s5 + $0x74] sm:$0xf]
  %v466 = vld [vmem:[%s5 + $0x78] sm:$0xff]
  %v467 = vld [vmem:[%s5 + $0x80] sm:$0xf]
  %v468 = vld [vmem:[%s5 + $0x84] sm:$0xff]
  %v469 = vld [vmem:[%s5 + $0x8c] sm:$0xf]
  %v470 = vld [vmem:[%s5 + $0x90] sm:$0xff]
  %v471 = vld [vmem:[%s5 + $0x98] sm:$0xf]
  %v472 = vld [vmem:[%s5 + $0x9c] sm:$0xff]
  %v473 = vld [vmem:[%s5 + $0xa4] sm:$0xf]
  %v474 = vld [vmem:[%s5 + $0xa8] sm:$0xff]
  %v475 = vld [vmem:[%s5 + $0xb0] sm:$0xf]
  %v476 = vld [vmem:[%s5 + $0xb4] sm:$0xff]
  %v477 = vld [vmem:[%s5 + $0xbc] sm:$0xf]
  %v478 = vld [vmem:[%s4] sm:$0x7]
  %v479 = vld [vmem:[%s6] sm:$0x7]
  %v481 = vlaneseq
  %v482 = vshrl.u32 %v481, 7
  %v483 = vsub.s32 0, %v482
  %v484 = vrot.slane %v478, %v483
  %v485 = vlaneseq
  %v486 = vshrl.u32 %v485, 7
  %v487 = vsub.s32 1, %v486
  %v488 = vrot.slane %v478, %v487
  %v489 = vlaneseq
  %v490 = vshrl.u32 %v489, 7
  %v491 = vsub.s32 2, %v490
  %v492 = vrot.slane %v478, %v491
  %v528 = vunpack.c.l.b16 %v414
  %v529 = vunpack.c.h.b16 %v414
  %v530 = vunpack.c.l.b16 %v415
  %v531 = vunpack.c.l.b16 %v416
  %v532 = vunpack.c.h.b16 %v416
  %v533 = vunpack.c.l.b16 %v417
  %v534 = vunpack.c.l.b16 %v418
  %v535 = vunpack.c.h.b16 %v418
  %v536 = vunpack.c.l.b16 %v419
  %v537 = vunpack.c.l.b16 %v420
  %v538 = vunpack.c.h.b16 %v420
  %v539 = vunpack.c.l.b16 %v421
  %v540 = vunpack.c.l.b16 %v422
  %v541 = vunpack.c.h.b16 %v422
  %v542 = vunpack.c.l.b16 %v423
  %v543 = vunpack.c.l.b16 %v424
  %v544 = vunpack.c.h.b16 %v424
  %v545 = vunpack.c.l.b16 %v425
  %v546 = vunpack.c.l.b16 %v426
  %v547 = vunpack.c.h.b16 %v426
  %v548 = vunpack.c.l.b16 %v427
  %v549 = vunpack.c.l.b16 %v428
  %v550 = vunpack.c.h.b16 %v428
  %v551 = vunpack.c.l.b16 %v429
  %v552 = vunpack.c.l.b16 %v430
  %v553 = vunpack.c.h.b16 %v430
  %v554 = vunpack.c.l.b16 %v431
  %v555 = vunpack.c.l.b16 %v432
  %v556 = vunpack.c.h.b16 %v432
  %v557 = vunpack.c.l.b16 %v433
  %v558 = vunpack.c.l.b16 %v434
  %v559 = vunpack.c.h.b16 %v434
  %v560 = vunpack.c.l.b16 %v435
  %v561 = vunpack.c.l.b16 %v436
  %v562 = vunpack.c.h.b16 %v436
  %v563 = vunpack.c.l.b16 %v437
  %v564 = vunpack.c.l.b16 %v438
  %v565 = vunpack.c.h.b16 %v438
  %v566 = vunpack.c.l.b16 %v439
  %v567 = vunpack.c.l.b16 %v440
  %v568 = vunpack.c.h.b16 %v440
  %v569 = vunpack.c.l.b16 %v441
  %v570 = vunpack.c.l.b16 %v442
  %v571 = vunpack.c.h.b16 %v442
  %v572 = vunpack.c.l.b16 %v443
  %v573 = vunpack.c.l.b16 %v444
  %v574 = vunpack.c.h.b16 %v444
  %v575 = vunpack.c.l.b16 %v445
  %v576 = vpack.c.b16 %v531, %v528
  %v577 = vpack.c.b16 %v532, %v529
  %v578 = vpack.c.b16 %v533, %v530
  %v579 = vpack.c.b16 %v537, %v534
  %v580 = vpack.c.b16 %v538, %v535
  %v581 = vpack.c.b16 %v539, %v536
  %v582 = vpack.c.b16 %v543, %v540
  %v583 = vpack.c.b16 %v544, %v541
  %v584 = vpack.c.b16 %v545, %v542
  %v585 = vpack.c.b16 %v549, %v546
  %v586 = vpack.c.b16 %v550, %v547
  %v587 = vpack.c.b16 %v551, %v548
  %v588 = vpack.c.b16 %v555, %v552
  %v589 = vpack.c.b16 %v556, %v553
  %v590 = vpack.c.b16 %v557, %v554
  %v591 = vpack.c.b16 %v561, %v558
  %v592 = vpack.c.b16 %v562, %v559
  %v593 = vpack.c.b16 %v563, %v560
  %v594 = vpack.c.b16 %v567, %v564
  %v595 = vpack.c.b16 %v568, %v565
  %v596 = vpack.c.b16 %v569, %v566
  %v597 = vpack.c.b16 %v573, %v570
  %v598 = vpack.c.b16 %v574, %v571
  %v599 = vpack.c.b16 %v575, %v572
  %624 = vmatprep.subr.bf16.mxu0 %v598
  %625 = vmatpush1.bf16.msra.mxu0 %v597
  %626 = vmatprep.subr.bf16.mxu0 %v595
  %627 = vmatpush1.bf16.msra.mxu0 %v594
  %628 = vmatprep.subr.bf16.mxu0 %v592
  %629 = vmatpush1.bf16.msra.mxu0 %v591
  %630 = vmatprep.subr.bf16.mxu0 %v589
  %631 = vmatpush1.bf16.msra.mxu0 %v588
  %632 = vmatprep.subr.bf16.mxu0 %v586
  %633 = vmatpush1.bf16.msra.mxu0 %v585
  %634 = vmatprep.subr.bf16.mxu0 %v583
  %635 = vmatpush1.bf16.msra.mxu0 %v582
  %636 = vmatprep.subr.bf16.mxu0 %v580
  %637 = vmatpush1.bf16.msra.mxu0 %v579
  %638 = vmatprep.subr.bf16.mxu0 %v577
  %639 = vmatpush1.bf16.msra.mxu0 %v576
  %640 = vmatprep.subr.bf16.mxu0 0
  %641 = vmatpush2.bf16.msra.mxu0 0
  %642 = vmatprep.subr.bf16.mxu0 0
  %643 = vmatpush2.bf16.msra.mxu0 0
  %644 = vmatprep.subr.bf16.mxu0 0
  %645 = vmatpush2.bf16.msra.mxu0 0
  %646 = vmatprep.subr.bf16.mxu0 0
  %647 = vmatpush2.bf16.msra.mxu0 0
  %648 = vmatprep.subr.bf16.mxu0 0
  %649 = vmatpush2.bf16.msra.mxu0 0
  %650 = vmatprep.subr.bf16.mxu0 0
  %651 = vmatpush2.bf16.msra.mxu0 0
  %652 = vmatprep.subr.bf16.mxu0 0
  %653 = vmatpush2.bf16.msra.mxu0 0
  %654 = vmatprep.subr.bf16.mxu0 0
  %655 = vmatpush2.bf16.msra.mxu0 0
  %656 = vmatprep.mubr.bf16.mxu0 0
  %657 = vmatmul.mubr.bf16.gmra.mxu0 0
  %v658 = vpop.f32.mrf.mxu0
  %v659 = vadd.f32 %v484, %v658
  %v660 = vpop.f32.mrf.mxu0
  %v661 = vadd.f32 %v488, %v660
  %v662 = vpop.f32.mrf.mxu0
  %v663 = vpop.f32.mrf.mxu0
  %664 = vdwg.mxu0
  %665 = vmatprep.subr.bf16.mxu0 0
  %666 = vmatpush1.bf16.msra.mxu0 %v599
  %667 = vmatprep.subr.bf16.mxu0 0
  %668 = vmatpush1.bf16.msra.mxu0 %v596
  %669 = vmatprep.subr.bf16.mxu0 0
  %670 = vmatpush1.bf16.msra.mxu0 %v593
  %671 = vmatprep.subr.bf16.mxu0 0
  %672 = vmatpush1.bf16.msra.mxu0 %v590
  %673 = vmatprep.subr.bf16.mxu0 0
  %674 = vmatpush1.bf16.msra.mxu0 %v587
  %675 = vmatprep.subr.bf16.mxu0 0
  %676 = vmatpush1.bf16.msra.mxu0 %v584
  %677 = vmatprep.subr.bf16.mxu0 0
  %678 = vmatpush1.bf16.msra.mxu0 %v581
  %679 = vmatprep.subr.bf16.mxu0 0
  %680 = vmatpush1.bf16.msra.mxu0 %v578
  %681 = vmatprep.subr.bf16.mxu0 0
  %682 = vmatpush2.bf16.msra.mxu0 0
  %683 = vmatprep.subr.bf16.mxu0 0
  %684 = vmatpush2.bf16.msra.mxu0 0
  %685 = vmatprep.subr.bf16.mxu0 0
  %686 = vmatpush2.bf16.msra.mxu0 0
  %687 = vmatprep.subr.bf16.mxu0 0
  %688 = vmatpush2.bf16.msra.mxu0 0
  %689 = vmatprep.subr.bf16.mxu0 0
  %690 = vmatpush2.bf16.msra.mxu0 0
  %691 = vmatprep.subr.bf16.mxu0 0
  %692 = vmatpush2.bf16.msra.mxu0 0
  %693 = vmatprep.subr.bf16.mxu0 0
  %694 = vmatpush2.bf16.msra.mxu0 0
  %695 = vmatprep.subr.bf16.mxu0 0
  %696 = vmatpush2.bf16.msra.mxu0 0
  %697 = vmatprep.mubr.bf16.mxu0 0
  %698 = vmatmul.mubr.bf16.gmra.mxu0 0
  %v699 = vpop.f32.mrf.mxu0
  %v700 = vadd.f32 %v492, %v699
  %v701 = vpop.f32.mrf.mxu0
  %v702 = vpop.f32.mrf.mxu0
  %v703 = vpop.f32.mrf.mxu0
  %704 = vdwg.mxu0
  %v706 = vlaneseq
  %v707 = vshrl.u32 %v706, 7
  %v708 = vsub.s32 0, %v707
  %v709 = vrot.slane %v479, %v708
  %v710 = vlaneseq
  %v711 = vshrl.u32 %v710, 7
  %v712 = vsub.s32 1, %v711
  %v713 = vrot.slane %v479, %v712
  %v714 = vlaneseq
  %v715 = vshrl.u32 %v714, 7
  %v716 = vsub.s32 2, %v715
  %v717 = vrot.slane %v479, %v716
  %v753 = vunpack.c.l.b16 %v446
  %v754 = vunpack.c.h.b16 %v446
  %v755 = vunpack.c.l.b16 %v447
  %v756 = vunpack.c.l.b16 %v448
  %v757 = vunpack.c.h.b16 %v448
  %v758 = vunpack.c.l.b16 %v449
  %v759 = vunpack.c.l.b16 %v450
  %v760 = vunpack.c.h.b16 %v450
  %v761 = vunpack.c.l.b16 %v451
  %v762 = vunpack.c.l.b16 %v452
  %v763 = vunpack.c.h.b16 %v452
  %v764 = vunpack.c.l.b16 %v453
  %v765 = vunpack.c.l.b16 %v454
  %v766 = vunpack.c.h.b16 %v454
  %v767 = vunpack.c.l.b16 %v455
  %v768 = vunpack.c.l.b16 %v456
  %v769 = vunpack.c.h.b16 %v456
  %v770 = vunpack.c.l.b16 %v457
  %v771 = vunpack.c.l.b16 %v458
  %v772 = vunpack.c.h.b16 %v458
  %v773 = vunpack.c.l.b16 %v459
  %v774 = vunpack.c.l.b16 %v460
  %v775 = vunpack.c.h.b16 %v460
  %v776 = vunpack.c.l.b16 %v461
  %v777 = vunpack.c.l.b16 %v462
  %v778 = vunpack.c.h.b16 %v462
  %v779 = vunpack.c.l.b16 %v463
  %v780 = vunpack.c.l.b16 %v464
  %v781 = vunpack.c.h.b16 %v464
  %v782 = vunpack.c.l.b16 %v465
  %v783 = vunpack.c.l.b16 %v466
  %v784 = vunpack.c.h.b16 %v466
  %v785 = vunpack.c.l.b16 %v467
  %v786 = vunpack.c.l.b16 %v468
  %v787 = vunpack.c.h.b16 %v468
  %v788 = vunpack.c.l.b16 %v469
  %v789 = vunpack.c.l.b16 %v470
  %v790 = vunpack.c.h.b16 %v470
  %v791 = vunpack.c.l.b16 %v471
  %v792 = vunpack.c.l.b16 %v472
  %v793 = vunpack.c.h.b16 %v472
  %v794 = vunpack.c.l.b16 %v473
  %v795 = vunpack.c.l.b16 %v474
  %v796 = vunpack.c.h.b16 %v474
  %v797 = vunpack.c.l.b16 %v475
  %v798 = vunpack.c.l.b16 %v476
  %v799 = vunpack.c.h.b16 %v476
  %v800 = vunpack.c.l.b16 %v477
  %v801 = vpack.c.b16 %v756, %v753
  %v802 = vpack.c.b16 %v757, %v754
  %v803 = vpack.c.b16 %v758, %v755
  %v804 = vpack.c.b16 %v762, %v759
  %v805 = vpack.c.b16 %v763, %v760
  %v806 = vpack.c.b16 %v764, %v761
  %v807 = vpack.c.b16 %v768, %v765
  %v808 = vpack.c.b16 %v769, %v766
  %v809 = vpack.c.b16 %v770, %v767
  %v810 = vpack.c.b16 %v774, %v771
  %v811 = vpack.c.b16 %v775, %v772
  %v812 = vpack.c.b16 %v776, %v773
  %v813 = vpack.c.b16 %v780, %v777
  %v814 = vpack.c.b16 %v781, %v778
  %v815 = vpack.c.b16 %v782, %v779
  %v816 = vpack.c.b16 %v786, %v783
  %v817 = vpack.c.b16 %v787, %v784
  %v818 = vpack.c.b16 %v788, %v785
  %v819 = vpack.c.b16 %v792, %v789
  %v820 = vpack.c.b16 %v793, %v790
  %v821 = vpack.c.b16 %v794, %v791
  %v822 = vpack.c.b16 %v798, %v795
  %v823 = vpack.c.b16 %v799, %v796
  %v824 = vpack.c.b16 %v800, %v797
  %849 = vmatprep.subr.bf16.mxu0 %v823
  %850 = vmatpush1.bf16.msra.mxu0 %v822
  %851 = vmatprep.subr.bf16.mxu0 %v820
  %852 = vmatpush1.bf16.msra.mxu0 %v819
  %853 = vmatprep.subr.bf16.mxu0 %v817
  %854 = vmatpush1.bf16.msra.mxu0 %v816
  %855 = vmatprep.subr.bf16.mxu0 %v814
  %856 = vmatpush1.bf16.msra.mxu0 %v813
  %857 = vmatprep.subr.bf16.mxu0 %v811
  %858 = vmatpush1.bf16.msra.mxu0 %v810
  %859 = vmatprep.subr.bf16.mxu0 %v808
  %860 = vmatpush1.bf16.msra.mxu0 %v807
  %861 = vmatprep.subr.bf16.mxu0 %v805
  %862 = vmatpush1.bf16.msra.mxu0 %v804
  %863 = vmatprep.subr.bf16.mxu0 %v802
  %864 = vmatpush1.bf16.msra.mxu0 %v801
  %865 = vmatprep.subr.bf16.mxu0 0
  %866 = vmatpush2.bf16.msra.mxu0 0
  %867 = vmatprep.subr.bf16.mxu0 0
  %868 = vmatpush2.bf16.msra.mxu0 0
  %869 = vmatprep.subr.bf16.mxu0 0
  %870 = vmatpush2.bf16.msra.mxu0 0
  %871 = vmatprep.subr.bf16.mxu0 0
  %872 = vmatpush2.bf16.msra.mxu0 0
  %873 = vmatprep.subr.bf16.mxu0 0
  %874 = vmatpush2.bf16.msra.mxu0 0
  %875 = vmatprep.subr.bf16.mxu0 0
  %876 = vmatpush2.bf16.msra.mxu0 0
  %877 = vmatprep.subr.bf16.mxu0 0
  %878 = vmatpush2.bf16.msra.mxu0 0
  %879 = vmatprep.subr.bf16.mxu0 0
  %880 = vmatpush2.bf16.msra.mxu0 0
  %881 = vmatprep.mubr.bf16.mxu0 0
  %882 = vmatmul.mubr.bf16.gmra.mxu0 0
  %v883 = vpop.f32.mrf.mxu0
  %v884 = vadd.f32 %v709, %v883
  %v885 = vpop.f32.mrf.mxu0
  %v886 = vadd.f32 %v713, %v885
  %v887 = vpop.f32.mrf.mxu0
  %v888 = vpop.f32.mrf.mxu0
  %889 = vdwg.mxu0
  %890 = vmatprep.subr.bf16.mxu0 0
  %891 = vmatpush1.bf16.msra.mxu0 %v824
  %892 = vmatprep.subr.bf16.mxu0 0
  %893 = vmatpush1.bf16.msra.mxu0 %v821
  %894 = vmatprep.subr.bf16.mxu0 0
  %895 = vmatpush1.bf16.msra.mxu0 %v818
  %896 = vmatprep.subr.bf16.mxu0 0
  %897 = vmatpush1.bf16.msra.mxu0 %v815
  %898 = vmatprep.subr.bf16.mxu0 0
  %899 = vmatpush1.bf16.msra.mxu0 %v812
  %900 = vmatprep.subr.bf16.mxu0 0
  %901 = vmatpush1.bf16.msra.mxu0 %v809
  %902 = vmatprep.subr.bf16.mxu0 0
  %903 = vmatpush1.bf16.msra.mxu0 %v806
  %904 = vmatprep.subr.bf16.mxu0 0
  %905 = vmatpush1.bf16.msra.mxu0 %v803
  %906 = vmatprep.subr.bf16.mxu0 0
  %907 = vmatpush2.bf16.msra.mxu0 0
  %908 = vmatprep.subr.bf16.mxu0 0
  %909 = vmatpush2.bf16.msra.mxu0 0
  %910 = vmatprep.subr.bf16.mxu0 0
  %911 = vmatpush2.bf16.msra.mxu0 0
  %912 = vmatprep.subr.bf16.mxu0 0
  %913 = vmatpush2.bf16.msra.mxu0 0
  %914 = vmatprep.subr.bf16.mxu0 0
  %915 = vmatpush2.bf16.msra.mxu0 0
  %916 = vmatprep.subr.bf16.mxu0 0
  %917 = vmatpush2.bf16.msra.mxu0 0
  %918 = vmatprep.subr.bf16.mxu0 0
  %919 = vmatpush2.bf16.msra.mxu0 0
  %920 = vmatprep.subr.bf16.mxu0 0
  %921 = vmatpush2.bf16.msra.mxu0 0
  %922 = vmatprep.mubr.bf16.mxu0 0
  %923 = vmatmul.mubr.bf16.gmra.mxu0 0
  %v924 = vpop.f32.mrf.mxu0
  %v925 = vadd.f32 %v717, %v924
  %v926 = vpop.f32.mrf.mxu0
  %v927 = vpop.f32.mrf.mxu0
  %v928 = vpop.f32.mrf.mxu0
  %929 = vdwg.mxu0
  %v930 = vld [vmem:[#allocation2] sm:$0xff]
  %v931 = vld [vmem:[#allocation2 + $0x8] sm:$0xff]
  %v932 = vld [vmem:[#allocation2 + $0x10] sm:$0xff]
  %v933 = vld [vmem:[#allocation2 + $0x168] sm:$0xff]
  %v934 = vld [vmem:[#allocation2 + $0x170] sm:$0xff]
  %v935 = vld [vmem:[#allocation2 + $0x178] sm:$0xff]
  %v936 = vadd.f32 %v930, %v659
  %v937 = vxor.u32 %v936, 2147483648
  %v938 = vmul.f32 %v937, 1.442695
  %v939 = vpow.pop %v938
  %v940 = vadd.f32 %v939, 1.0
  %v941 = vrcp.pop %v940
  %v942 = vmul.f32 1.0, %v941
  %v943 = vadd.f32 %v931, %v661
  %v944 = vxor.u32 %v943, 2147483648
  %v945 = vmul.f32 %v944, 1.442695
  %v946 = vpow.pop %v945
  %v947 = vadd.f32 %v946, 1.0
  %v948 = vrcp.pop %v947
  %v949 = vmul.f32 1.0, %v948
  %v950 = vmul.f32 %v942, %v700
  %v951 = vadd.f32 %v932, %v950
  %v952 = vtanh.pop %v951
  %v953 = vsub.f32 1.0, %v949
  %v954 = vmul.f32 %v953, %v952
  %v955 = vmul.f32 %v949, 0.0
  %v956 = vadd.f32 %v954, %v955
  %v957 = vadd.f32 %v933, %v884
  %v958 = vxor.u32 %v957, 2147483648
  %v959 = vmul.f32 %v958, 1.442695
  %v960 = vpow.pop %v959
  %v961 = vadd.f32 %v960, 1.0
  %v962 = vrcp.pop %v961
  %v963 = vmul.f32 1.0, %v962
  %v964 = vadd.f32 %v934, %v886
  %v965 = vxor.u32 %v964, 2147483648
  %v966 = vmul.f32 %v965, 1.442695
  %v967 = vpow.pop %v966
  %v968 = vadd.f32 %v967, 1.0
  %v969 = vrcp.pop %v968
  %v970 = vmul.f32 1.0, %v969
  %v971 = vmul.f32 %v963, %v925
  %v972 = vadd.f32 %v935, %v971
  %v973 = vtanh.pop %v972
  %v974 = vsub.f32 1.0, %v970
  %v975 = vmul.f32 %v974, %v973
  %v976 = vmul.f32 %v970, 0.0
  %v977 = vadd.f32 %v975, %v976
  %v978 = vpack.c.bf16 %v956, %v956
  %979 = vmatprep.subr.bf16.mxu0 %v598
  %980 = vmatpush1.bf16.msra.mxu0 %v597
  %981 = vmatprep.subr.bf16.mxu0 %v595
  %982 = vmatpush1.bf16.msra.mxu0 %v594
  %983 = vmatprep.subr.bf16.mxu0 %v592
  %984 = vmatpush1.bf16.msra.mxu0 %v591
  %985 = vmatprep.subr.bf16.mxu0 %v589
  %986 = vmatpush1.bf16.msra.mxu0 %v588
  %987 = vmatprep.subr.bf16.mxu0 %v586
  %988 = vmatpush1.bf16.msra.mxu0 %v585
  %989 = vmatprep.subr.bf16.mxu0 %v583
  %990 = vmatpush1.bf16.msra.mxu0 %v582
  %991 = vmatprep.subr.bf16.mxu0 %v580
  %992 = vmatpush1.bf16.msra.mxu0 %v579
  %993 = vmatprep.subr.bf16.mxu0 %v577
  %994 = vmatpush1.bf16.msra.mxu0 %v576
  %995 = vmatprep.subr.bf16.mxu0 0
  %996 = vmatpush2.bf16.msra.mxu0 0
  %997 = vmatprep.subr.bf16.mxu0 0
  %998 = vmatpush2.bf16.msra.mxu0 0
  %999 = vmatprep.subr.bf16.mxu0 0
  %1000 = vmatpush2.bf16.msra.mxu0 0
  %1001 = vmatprep.subr.bf16.mxu0 0
  %1002 = vmatpush2.bf16.msra.mxu0 0
  %1003 = vmatprep.subr.bf16.mxu0 0
  %1004 = vmatpush2.bf16.msra.mxu0 0
  %1005 = vmatprep.subr.bf16.mxu0 0
  %1006 = vmatpush2.bf16.msra.mxu0 0
  %1007 = vmatprep.subr.bf16.mxu0 0
  %1008 = vmatpush2.bf16.msra.mxu0 0
  %1009 = vmatprep.subr.bf16.mxu0 0
  %1010 = vmatpush2.bf16.msra.mxu0 0
  %1011 = vmatprep.mubr.bf16.mxu0 0
  %1012 = vmatmul.mubr.bf16.gmra.mxu0 %v978
  %v1013 = vpop.f32.mrf.mxu0
  %v1014 = vadd.f32 %v484, %v1013
  %v1015 = vpop.f32.mrf.mxu0
  %v1016 = vadd.f32 %v488, %v1015
  %v1017 = vpop.f32.mrf.mxu0
  %v1018 = vpop.f32.mrf.mxu0
  %1019 = vdwg.mxu0
  %1020 = vmatprep.subr.bf16.mxu0 0
  %1021 = vmatpush1.bf16.msra.mxu0 %v599
  %1022 = vmatprep.subr.bf16.mxu0 0
  %1023 = vmatpush1.bf16.msra.mxu0 %v596
  %1024 = vmatprep.subr.bf16.mxu0 0
  %1025 = vmatpush1.bf16.msra.mxu0 %v593
  %1026 = vmatprep.subr.bf16.mxu0 0
  %1027 = vmatpush1.bf16.msra.mxu0 %v590
  %1028 = vmatprep.subr.bf16.mxu0 0
  %1029 = vmatpush1.bf16.msra.mxu0 %v587
  %1030 = vmatprep.subr.bf16.mxu0 0
  %1031 = vmatpush1.bf16.msra.mxu0 %v584
  %1032 = vmatprep.subr.bf16.mxu0 0
  %1033 = vmatpush1.bf16.msra.mxu0 %v581
  %1034 = vmatprep.subr.bf16.mxu0 0
  %1035 = vmatpush1.bf16.msra.mxu0 %v578
  %1036 = vmatprep.subr.bf16.mxu0 0
  %1037 = vmatpush2.bf16.msra.mxu0 0
  %1038 = vmatprep.subr.bf16.mxu0 0
  %1039 = vmatpush2.bf16.msra.mxu0 0
  %1040 = vmatprep.subr.bf16.mxu0 0
  %1041 = vmatpush2.bf16.msra.mxu0 0
  %1042 = vmatprep.subr.bf16.mxu0 0
  %1043 = vmatpush2.bf16.msra.mxu0 0
  %1044 = vmatprep.subr.bf16.mxu0 0
  %1045 = vmatpush2.bf16.msra.mxu0 0
  %1046 = vmatprep.subr.bf16.mxu0 0
  %1047 = vmatpush2.bf16.msra.mxu0 0
  %1048 = vmatprep.subr.bf16.mxu0 0
  %1049 = vmatpush2.bf16.msra.mxu0 0
  %1050 = vmatprep.subr.bf16.mxu0 0
  %1051 = vmatpush2.bf16.msra.mxu0 0
  %1052 = vmatprep.mubr.bf16.mxu0 0
  %1053 = vmatmul.mubr.bf16.gmra.mxu0 %v978
  %v1054 = vpop.f32.mrf.mxu0
  %v1055 = vadd.f32 %v492, %v1054
  %v1056 = vpop.f32.mrf.mxu0
  %v1057 = vpop.f32.mrf.mxu0
  %v1058 = vpop.f32.mrf.mxu0
  %1059 = vdwg.mxu0
  %v1060 = vpack.c.bf16 %v977, %v977
  %1061 = vmatprep.subr.bf16.mxu0 %v823
  %1062 = vmatpush1.bf16.msra.mxu0 %v822
  %1063 = vmatprep.subr.bf16.mxu0 %v820
  %1064 = vmatpush1.bf16.msra.mxu0 %v819
  %1065 = vmatprep.subr.bf16.mxu0 %v817
  %1066 = vmatpush1.bf16.msra.mxu0 %v816
  %1067 = vmatprep.subr.bf16.mxu0 %v814
  %1068 = vmatpush1.bf16.msra.mxu0 %v813
  %1069 = vmatprep.subr.bf16.mxu0 %v811
  %1070 = vmatpush1.bf16.msra.mxu0 %v810
  %1071 = vmatprep.subr.bf16.mxu0 %v808
  %1072 = vmatpush1.bf16.msra.mxu0 %v807
  %1073 = vmatprep.subr.bf16.mxu0 %v805
  %1074 = vmatpush1.bf16.msra.mxu0 %v804
  %1075 = vmatprep.subr.bf16.mxu0 %v802
  %1076 = vmatpush1.bf16.msra.mxu0 %v801
  %1077 = vmatprep.subr.bf16.mxu0 0
  %1078 = vmatpush2.bf16.msra.mxu0 0
  %1079 = vmatprep.subr.bf16.mxu0 0
  %1080 = vmatpush2.bf16.msra.mxu0 0
  %1081 = vmatprep.subr.bf16.mxu0 0
  %1082 = vmatpush2.bf16.msra.mxu0 0
  %1083 = vmatprep.subr.bf16.mxu0 0
  %1084 = vmatpush2.bf16.msra.mxu0 0
  %1085 = vmatprep.subr.bf16.mxu0 0
  %1086 = vmatpush2.bf16.msra.mxu0 0
  %1087 = vmatprep.subr.bf16.mxu0 0
  %1088 = vmatpush2.bf16.msra.mxu0 0
  %1089 = vmatprep.subr.bf16.mxu0 0
  %1090 = vmatpush2.bf16.msra.mxu0 0
  %1091 = vmatprep.subr.bf16.mxu0 0
  %1092 = vmatpush2.bf16.msra.mxu0 0
  %1093 = vmatprep.mubr.bf16.mxu0 0
  %1094 = vmatmul.mubr.bf16.gmra.mxu0 %v1060
  %v1095 = vpop.f32.mrf.mxu0
  %v1096 = vadd.f32 %v709, %v1095
  %v1097 = vpop.f32.mrf.mxu0
  %v1098 = vadd.f32 %v713, %v1097
  %v1099 = vpop.f32.mrf.mxu0
  %v1100 = vpop.f32.mrf.mxu0
  %1101 = vdwg.mxu0
  %1102 = vmatprep.subr.bf16.mxu0 0
  %1103 = vmatpush1.bf16.msra.mxu0 %v824
  %1104 = vmatprep.subr.bf16.mxu0 0
  %1105 = vmatpush1.bf16.msra.mxu0 %v821
  %1106 = vmatprep.subr.bf16.mxu0 0
  %1107 = vmatpush1.bf16.msra.mxu0 %v818
  %1108 = vmatprep.subr.bf16.mxu0 0
  %1109 = vmatpush1.bf16.msra.mxu0 %v815
  %1110 = vmatprep.subr.bf16.mxu0 0
  %1111 = vmatpush1.bf16.msra.mxu0 %v812
  %1112 = vmatprep.subr.bf16.mxu0 0
  %1113 = vmatpush1.bf16.msra.mxu0 %v809
  %1114 = vmatprep.subr.bf16.mxu0 0
  %1115 = vmatpush1.bf16.msra.mxu0 %v806
  %1116 = vmatprep.subr.bf16.mxu0 0
  %1117 = vmatpush1.bf16.msra.mxu0 %v803
  %1118 = vmatprep.subr.bf16.mxu0 0
  %1119 = vmatpush2.bf16.msra.mxu0 0
  %1120 = vmatprep.subr.bf16.mxu0 0
  %1121 = vmatpush2.bf16.msra.mxu0 0
  %1122 = vmatprep.subr.bf16.mxu0 0
  %1123 = vmatpush2.bf16.msra.mxu0 0
  %1124 = vmatprep.subr.bf16.mxu0 0
  %1125 = vmatpush2.bf16.msra.mxu0 0
  %1126 = vmatprep.subr.bf16.mxu0 0
  %1127 = vmatpush2.bf16.msra.mxu0 0
  %1128 = vmatprep.subr.bf16.mxu0 0
  %1129 = vmatpush2.bf16.msra.mxu0 0
  %1130 = vmatprep.subr.bf16.mxu0 0
  %1131 = vmatpush2.bf16.msra.mxu0 0
  %1132 = vmatprep.subr.bf16.mxu0 0
  %1133 = vmatpush2.bf16.msra.mxu0 0
  %1134 = vmatprep.mubr.bf16.mxu0 0
  %1135 = vmatmul.mubr.bf16.gmra.mxu0 %v1060
  %v1136 = vpop.f32.mrf.mxu0
  %v1137 = vadd.f32 %v717, %v1136
  %v1138 = vpop.f32.mrf.mxu0
  %v1139 = vpop.f32.mrf.mxu0
  %v1140 = vpop.f32.mrf.mxu0
  %1141 = vdwg.mxu0
  %v1142 = vld [vmem:[#allocation2 + $0x30] sm:$0xff]
  %v1143 = vld [vmem:[#allocation2 + $0x38] sm:$0xff]
  %v1144 = vld [vmem:[#allocation2 + $0x40] sm:$0xff]
  %v1145 = vld [vmem:[#allocation2 + $0x138] sm:$0xff]
  %v1146 = vld [vmem:[#allocation2 + $0x140] sm:$0xff]
  %v1147 = vld [vmem:[#allocation2 + $0x148] sm:$0xff]
  %v1148 = vadd.f32 %v1142, %v1014
  %v1149 = vxor.u32 %v1148, 2147483648
  %v1150 = vmul.f32 %v1149, 1.442695
  %v1151 = vpow.pop %v1150
  %v1152 = vadd.f32 %v1151, 1.0
  %v1153 = vrcp.pop %v1152
  %v1154 = vmul.f32 1.0, %v1153
  %v1155 = vadd.f32 %v1143, %v1016
  %v1156 = vxor.u32 %v1155, 2147483648
  %v1157 = vmul.f32 %v1156, 1.442695
  %v1158 = vpow.pop %v1157
  %v1159 = vadd.f32 %v1158, 1.0
  %v1160 = vrcp.pop %v1159
  %v1161 = vmul.f32 1.0, %v1160
  %v1162 = vmul.f32 %v1154, %v1055
  %v1163 = vadd.f32 %v1144, %v1162
  %v1164 = vtanh.pop %v1163
  %v1165 = vsub.f32 1.0, %v1161
  %v1166 = vmul.f32 %v1165, %v1164
  %v1167 = vmul.f32 %v1161, %v956
  %v1168 = vadd.f32 %v1166, %v1167
  %v1169 = vadd.f32 %v1145, %v1096
  %v1170 = vxor.u32 %v1169, 2147483648
  %v1171 = vmul.f32 %v1170, 1.442695
  %v1172 = vpow.pop %v1171
  %v1173 = vadd.f32 %v1172, 1.0
  %v1174 = vrcp.pop %v1173
  %v1175 = vmul.f32 1.0, %v1174
  %v1176 = vadd.f32 %v1146, %v1098
  %v1177 = vxor.u32 %v1176, 2147483648
  %v1178 = vmul.f32 %v1177, 1.442695
  %v1179 = vpow.pop %v1178
  %v1180 = vadd.f32 %v1179, 1.0
  %v1181 = vrcp.pop %v1180
  %v1182 = vmul.f32 1.0, %v1181
  %v1183 = vmul.f32 %v1175, %v1137
  %v1184 = vadd.f32 %v1147, %v1183
  %v1185 = vtanh.pop %v1184
  %v1186 = vsub.f32 1.0, %v1182
  %v1187 = vmul.f32 %v1186, %v1185
  %v1188 = vmul.f32 %v1182, %v977
  %v1189 = vadd.f32 %v1187, %v1188
  %v1190 = vpack.c.bf16 %v1168, %v1168
  %1191 = vmatprep.subr.bf16.mxu0 %v598
  %1192 = vmatpush1.bf16.msra.mxu0 %v597
  %1193 = vmatprep.subr.bf16.mxu0 %v595
  %1194 = vmatpush1.bf16.msra.mxu0 %v594
  %1195 = vmatprep.subr.bf16.mxu0 %v592
  %1196 = vmatpush1.bf16.msra.mxu0 %v591
  %1197 = vmatprep.subr.bf16.mxu0 %v589
  %1198 = vmatpush1.bf16.msra.mxu0 %v588
  %1199 = vmatprep.subr.bf16.mxu0 %v586
  %1200 = vmatpush1.bf16.msra.mxu0 %v585
  %1201 = vmatprep.subr.bf16.mxu0 %v583
  %1202 = vmatpush1.bf16.msra.mxu0 %v582
  %1203 = vmatprep.subr.bf16.mxu0 %v580
  %1204 = vmatpush1.bf16.msra.mxu0 %v579
  %1205 = vmatprep.subr.bf16.mxu0 %v577
  %1206 = vmatpush1.bf16.msra.mxu0 %v576
  %1207 = vmatprep.subr.bf16.mxu0 0
  %1208 = vmatpush2.bf16.msra.mxu0 0
  %1209 = vmatprep.subr.bf16.mxu0 0
  %1210 = vmatpush2.bf16.msra.mxu0 0
  %1211 = vmatprep.subr.bf16.mxu0 0
  %1212 = vmatpush2.bf16.msra.mxu0 0
  %1213 = vmatprep.subr.bf16.mxu0 0
  %1214 = vmatpush2.bf16.msra.mxu0 0
  %1215 = vmatprep.subr.bf16.mxu0 0
  %1216 = vmatpush2.bf16.msra.mxu0 0
  %1217 = vmatprep.subr.bf16.mxu0 0
  %1218 = vmatpush2.bf16.msra.mxu0 0
  %1219 = vmatprep.subr.bf16.mxu0 0
  %1220 = vmatpush2.bf16.msra.mxu0 0
  %1221 = vmatprep.subr.bf16.mxu0 0
  %1222 = vmatpush2.bf16.msra.mxu0 0
  %1223 = vmatprep.mubr.bf16.mxu0 0
  %1224 = vmatmul.mubr.bf16.gmra.mxu0 %v1190
  %v1225 = vpop.f32.mrf.mxu0
  %v1226 = vadd.f32 %v484, %v1225
  %v1227 = vpop.f32.mrf.mxu0
  %v1228 = vadd.f32 %v488, %v1227
  %v1229 = vpop.f32.mrf.mxu0
  %v1230 = vpop.f32.mrf.mxu0
  %1231 = vdwg.mxu0
  %1232 = vmatprep.subr.bf16.mxu0 0
  %1233 = vmatpush1.bf16.msra.mxu0 %v599
  %1234 = vmatprep.subr.bf16.mxu0 0
  %1235 = vmatpush1.bf16.msra.mxu0 %v596
  %1236 = vmatprep.subr.bf16.mxu0 0
  %1237 = vmatpush1.bf16.msra.mxu0 %v593
  %1238 = vmatprep.subr.bf16.mxu0 0
  %1239 = vmatpush1.bf16.msra.mxu0 %v590
  %1240 = vmatprep.subr.bf16.mxu0 0
  %1241 = vmatpush1.bf16.msra.mxu0 %v587
  %1242 = vmatprep.subr.bf16.mxu0 0
  %1243 = vmatpush1.bf16.msra.mxu0 %v584
  %1244 = vmatprep.subr.bf16.mxu0 0
  %1245 = vmatpush1.bf16.msra.mxu0 %v581
  %1246 = vmatprep.subr.bf16.mxu0 0
  %1247 = vmatpush1.bf16.msra.mxu0 %v578
  %1248 = vmatprep.subr.bf16.mxu0 0
  %1249 = vmatpush2.bf16.msra.mxu0 0
  %1250 = vmatprep.subr.bf16.mxu0 0
  %1251 = vmatpush2.bf16.msra.mxu0 0
  %1252 = vmatprep.subr.bf16.mxu0 0
  %1253 = vmatpush2.bf16.msra.mxu0 0
  %1254 = vmatprep.subr.bf16.mxu0 0
  %1255 = vmatpush2.bf16.msra.mxu0 0
  %1256 = vmatprep.subr.bf16.mxu0 0
  %1257 = vmatpush2.bf16.msra.mxu0 0
  %1258 = vmatprep.subr.bf16.mxu0 0
  %1259 = vmatpush2.bf16.msra.mxu0 0
  %1260 = vmatprep.subr.bf16.mxu0 0
  %1261 = vmatpush2.bf16.msra.mxu0 0
  %1262 = vmatprep.subr.bf16.mxu0 0
  %1263 = vmatpush2.bf16.msra.mxu0 0
  %1264 = vmatprep.mubr.bf16.mxu0 0
  %1265 = vmatmul.mubr.bf16.gmra.mxu0 %v1190
  %v1266 = vpop.f32.mrf.mxu0
  %v1267 = vadd.f32 %v492, %v1266
  %v1268 = vpop.f32.mrf.mxu0
  %v1269 = vpop.f32.mrf.mxu0
  %v1270 = vpop.f32.mrf.mxu0
  %1271 = vdwg.mxu0
  %v1272 = vpack.c.bf16 %v1189, %v1189
  %1273 = vmatprep.subr.bf16.mxu0 %v823
  %1274 = vmatpush1.bf16.msra.mxu0 %v822
  %1275 = vmatprep.subr.bf16.mxu0 %v820
  %1276 = vmatpush1.bf16.msra.mxu0 %v819
  %1277 = vmatprep.subr.bf16.mxu0 %v817
  %1278 = vmatpush1.bf16.msra.mxu0 %v816
  %1279 = vmatprep.subr.bf16.mxu0 %v814
  %1280 = vmatpush1.bf16.msra.mxu0 %v813
  %1281 = vmatprep.subr.bf16.mxu0 %v811
  %1282 = vmatpush1.bf16.msra.mxu0 %v810
  %1283 = vmatprep.subr.bf16.mxu0 %v808
  %1284 = vmatpush1.bf16.msra.mxu0 %v807
  %1285 = vmatprep.subr.bf16.mxu0 %v805
  %1286 = vmatpush1.bf16.msra.mxu0 %v804
  %1287 = vmatprep.subr.bf16.mxu0 %v802
  %1288 = vmatpush1.bf16.msra.mxu0 %v801
  %1289 = vmatprep.subr.bf16.mxu0 0
  %1290 = vmatpush2.bf16.msra.mxu0 0
  %1291 = vmatprep.subr.bf16.mxu0 0
  %1292 = vmatpush2.bf16.msra.mxu0 0
  %1293 = vmatprep.subr.bf16.mxu0 0
  %1294 = vmatpush2.bf16.msra.mxu0 0
  %1295 = vmatprep.subr.bf16.mxu0 0
  %1296 = vmatpush2.bf16.msra.mxu0 0
  %1297 = vmatprep.subr.bf16.mxu0 0
  %1298 = vmatpush2.bf16.msra.mxu0 0
  %1299 = vmatprep.subr.bf16.mxu0 0
  %1300 = vmatpush2.bf16.msra.mxu0 0
  %1301 = vmatprep.subr.bf16.mxu0 0
  %1302 = vmatpush2.bf16.msra.mxu0 0
  %1303 = vmatprep.subr.bf16.mxu0 0
  %1304 = vmatpush2.bf16.msra.mxu0 0
  %1305 = vmatprep.mubr.bf16.mxu0 0
  %1306 = vmatmul.mubr.bf16.gmra.mxu0 %v1272
  %v1307 = vpop.f32.mrf.mxu0
  %v1308 = vadd.f32 %v709, %v1307
  %v1309 = vpop.f32.mrf.mxu0
  %v1310 = vadd.f32 %v713, %v1309
  %v1311 = vpop.f32.mrf.mxu0
  %v1312 = vpop.f32.mrf.mxu0
  %1313 = vdwg.mxu0
  %1314 = vmatprep.subr.bf16.mxu0 0
  %1315 = vmatpush1.bf16.msra.mxu0 %v824
  %1316 = vmatprep.subr.bf16.mxu0 0
  %1317 = vmatpush1.bf16.msra.mxu0 %v821
  %1318 = vmatprep.subr.bf16.mxu0 0
  %1319 = vmatpush1.bf16.msra.mxu0 %v818
  %1320 = vmatprep.subr.bf16.mxu0 0
  %1321 = vmatpush1.bf16.msra.mxu0 %v815
  %1322 = vmatprep.subr.bf16.mxu0 0
  %1323 = vmatpush1.bf16.msra.mxu0 %v812
  %1324 = vmatprep.subr.bf16.mxu0 0
  %1325 = vmatpush1.bf16.msra.mxu0 %v809
  %1326 = vmatprep.subr.bf16.mxu0 0
  %1327 = vmatpush1.bf16.msra.mxu0 %v806
  %1328 = vmatprep.subr.bf16.mxu0 0
  %1329 = vmatpush1.bf16.msra.mxu0 %v803
  %1330 = vmatprep.subr.bf16.mxu0 0
  %1331 = vmatpush2.bf16.msra.mxu0 0
  %1332 = vmatprep.subr.bf16.mxu0 0
  %1333 = vmatpush2.bf16.msra.mxu0 0
  %1334 = vmatprep.subr.bf16.mxu0 0
  %1335 = vmatpush2.bf16.msra.mxu0 0
  %1336 = vmatprep.subr.bf16.mxu0 0
  %1337 = vmatpush2.bf16.msra.mxu0 0
  %1338 = vmatprep.subr.bf16.mxu0 0
  %1339 = vmatpush2.bf16.msra.mxu0 0
  %1340 = vmatprep.subr.bf16.mxu0 0
  %1341 = vmatpush2.bf16.msra.mxu0 0
  %1342 = vmatprep.subr.bf16.mxu0 0
  %1343 = vmatpush2.bf16.msra.mxu0 0
  %1344 = vmatprep.subr.bf16.mxu0 0
  %1345 = vmatpush2.bf16.msra.mxu0 0
  %1346 = vmatprep.mubr.bf16.mxu0 0
  %1347 = vmatmul.mubr.bf16.gmra.mxu0 %v1272
  %v1348 = vpop.f32.mrf.mxu0
  %v1349 = vadd.f32 %v717, %v1348
  %v1350 = vpop.f32.mrf.mxu0
  %v1351 = vpop.f32.mrf.mxu0
  %v1352 = vpop.f32.mrf.mxu0
  %1353 = vdwg.mxu0
  %v1354 = vld [vmem:[#allocation2 + $0x60] sm:$0xff]
  %v1355 = vld [vmem:[#allocation2 + $0x68] sm:$0xff]
  %v1356 = vld [vmem:[#allocation2 + $0x70] sm:$0xff]
  %v1357 = vld [vmem:[#allocation2 + $0x108] sm:$0xff]
  %v1358 = vld [vmem:[#allocation2 + $0x110] sm:$0xff]
  %v1359 = vld [vmem:[#allocation2 + $0x118] sm:$0xff]
  %v1360 = vadd.f32 %v1354, %v1226
  %v1361 = vxor.u32 %v1360, 2147483648
  %v1362 = vmul.f32 %v1361, 1.442695
  %v1363 = vpow.pop %v1362
  %v1364 = vadd.f32 %v1363, 1.0
  %v1365 = vrcp.pop %v1364
  %v1366 = vmul.f32 1.0, %v1365
  %v1367 = vadd.f32 %v1355, %v1228
  %v1368 = vxor.u32 %v1367, 2147483648
  %v1369 = vmul.f32 %v1368, 1.442695
  %v1370 = vpow.pop %v1369
  %v1371 = vadd.f32 %v1370, 1.0
  %v1372 = vrcp.pop %v1371
  %v1373 = vmul.f32 1.0, %v1372
  %v1374 = vmul.f32 %v1366, %v1267
  %v1375 = vadd.f32 %v1356, %v1374
  %v1376 = vtanh.pop %v1375
  %v1377 = vsub.f32 1.0, %v1373
  %v1378 = vmul.f32 %v1377, %v1376
  %v1379 = vmul.f32 %v1373, %v1168
  %v1380 = vadd.f32 %v1378, %v1379
  %v1381 = vadd.f32 %v1357, %v1308
  %v1382 = vxor.u32 %v1381, 2147483648
  %v1383 = vmul.f32 %v1382, 1.442695
  %v1384 = vpow.pop %v1383
  %v1385 = vadd.f32 %v1384, 1.0
  %v1386 = vrcp.pop %v1385
  %v1387 = vmul.f32 1.0, %v1386
  %v1388 = vadd.f32 %v1358, %v1310
  %v1389 = vxor.u32 %v1388, 2147483648
  %v1390 = vmul.f32 %v1389, 1.442695
  %v1391 = vpow.pop %v1390
  %v1392 = vadd.f32 %v1391, 1.0
  %v1393 = vrcp.pop %v1392
  %v1394 = vmul.f32 1.0, %v1393
  %v1395 = vmul.f32 %v1387, %v1349
  %v1396 = vadd.f32 %v1359, %v1395
  %v1397 = vtanh.pop %v1396
  %v1398 = vsub.f32 1.0, %v1394
  %v1399 = vmul.f32 %v1398, %v1397
  %v1400 = vmul.f32 %v1394, %v1189
  %v1401 = vadd.f32 %v1399, %v1400
  %v1402 = vpack.c.bf16 %v1380, %v1380
  %1403 = vmatprep.subr.bf16.mxu0 %v598
  %1404 = vmatpush1.bf16.msra.mxu0 %v597
  %1405 = vmatprep.subr.bf16.mxu0 %v595
  %1406 = vmatpush1.bf16.msra.mxu0 %v594
  %1407 = vmatprep.subr.bf16.mxu0 %v592
  %1408 = vmatpush1.bf16.msra.mxu0 %v591
  %1409 = vmatprep.subr.bf16.mxu0 %v589
  %1410 = vmatpush1.bf16.msra.mxu0 %v588
  %1411 = vmatprep.subr.bf16.mxu0 %v586
  %1412 = vmatpush1.bf16.msra.mxu0 %v585
  %1413 = vmatprep.subr.bf16.mxu0 %v583
  %1414 = vmatpush1.bf16.msra.mxu0 %v582
  %1415 = vmatprep.subr.bf16.mxu0 %v580
  %1416 = vmatpush1.bf16.msra.mxu0 %v579
  %1417 = vmatprep.subr.bf16.mxu0 %v577
  %1418 = vmatpush1.bf16.msra.mxu0 %v576
  %1419 = vmatprep.subr.bf16.mxu0 0
  %1420 = vmatpush2.bf16.msra.mxu0 0
  %1421 = vmatprep.subr.bf16.mxu0 0
  %1422 = vmatpush2.bf16.msra.mxu0 0
  %1423 = vmatprep.subr.bf16.mxu0 0
  %1424 = vmatpush2.bf16.msra.mxu0 0
  %1425 = vmatprep.subr.bf16.mxu0 0
  %1426 = vmatpush2.bf16.msra.mxu0 0
  %1427 = vmatprep.subr.bf16.mxu0 0
  %1428 = vmatpush2.bf16.msra.mxu0 0
  %1429 = vmatprep.subr.bf16.mxu0 0
  %1430 = vmatpush2.bf16.msra.mxu0 0
  %1431 = vmatprep.subr.bf16.mxu0 0
  %1432 = vmatpush2.bf16.msra.mxu0 0
  %1433 = vmatprep.subr.bf16.mxu0 0
  %1434 = vmatpush2.bf16.msra.mxu0 0
  %1435 = vmatprep.mubr.bf16.mxu0 0
  %1436 = vmatmul.mubr.bf16.gmra.mxu0 %v1402
  %v1437 = vpop.f32.mrf.mxu0
  %v1438 = vadd.f32 %v484, %v1437
  %v1439 = vpop.f32.mrf.mxu0
  %v1440 = vadd.f32 %v488, %v1439
  %v1441 = vpop.f32.mrf.mxu0
  %v1442 = vpop.f32.mrf.mxu0
  %1443 = vdwg.mxu0
  %1444 = vmatprep.subr.bf16.mxu0 0
  %1445 = vmatpush1.bf16.msra.mxu0 %v599
  %1446 = vmatprep.subr.bf16.mxu0 0
  %1447 = vmatpush1.bf16.msra.mxu0 %v596
  %1448 = vmatprep.subr.bf16.mxu0 0
  %1449 = vmatpush1.bf16.msra.mxu0 %v593
  %1450 = vmatprep.subr.bf16.mxu0 0
  %1451 = vmatpush1.bf16.msra.mxu0 %v590
  %1452 = vmatprep.subr.bf16.mxu0 0
  %1453 = vmatpush1.bf16.msra.mxu0 %v587
  %1454 = vmatprep.subr.bf16.mxu0 0
  %1455 = vmatpush1.bf16.msra.mxu0 %v584
  %1456 = vmatprep.subr.bf16.mxu0 0
  %1457 = vmatpush1.bf16.msra.mxu0 %v581
  %1458 = vmatprep.subr.bf16.mxu0 0
  %1459 = vmatpush1.bf16.msra.mxu0 %v578
  %1460 = vmatprep.subr.bf16.mxu0 0
  %1461 = vmatpush2.bf16.msra.mxu0 0
  %1462 = vmatprep.subr.bf16.mxu0 0
  %1463 = vmatpush2.bf16.msra.mxu0 0
  %1464 = vmatprep.subr.bf16.mxu0 0
  %1465 = vmatpush2.bf16.msra.mxu0 0
  %1466 = vmatprep.subr.bf16.mxu0 0
  %1467 = vmatpush2.bf16.msra.mxu0 0
  %1468 = vmatprep.subr.bf16.mxu0 0
  %1469 = vmatpush2.bf16.msra.mxu0 0
  %1470 = vmatprep.subr.bf16.mxu0 0
  %1471 = vmatpush2.bf16.msra.mxu0 0
  %1472 = vmatprep.subr.bf16.mxu0 0
  %1473 = vmatpush2.bf16.msra.mxu0 0
  %1474 = vmatprep.subr.bf16.mxu0 0
  %1475 = vmatpush2.bf16.msra.mxu0 0
  %1476 = vmatprep.mubr.bf16.mxu0 0
  %1477 = vmatmul.mubr.bf16.gmra.mxu0 %v1402
  %v1478 = vpop.f32.mrf.mxu0
  %v1479 = vadd.f32 %v492, %v1478
  %v1480 = vpop.f32.mrf.mxu0
  %v1481 = vpop.f32.mrf.mxu0
  %v1482 = vpop.f32.mrf.mxu0
  %1483 = vdwg.mxu0
  %v1484 = vpack.c.bf16 %v1401, %v1401
  %1485 = vmatprep.subr.bf16.mxu0 %v823
  %1486 = vmatpush1.bf16.msra.mxu0 %v822
  %1487 = vmatprep.subr.bf16.mxu0 %v820
  %1488 = vmatpush1.bf16.msra.mxu0 %v819
  %1489 = vmatprep.subr.bf16.mxu0 %v817
  %1490 = vmatpush1.bf16.msra.mxu0 %v816
  %1491 = vmatprep.subr.bf16.mxu0 %v814
  %1492 = vmatpush1.bf16.msra.mxu0 %v813
  %1493 = vmatprep.subr.bf16.mxu0 %v811
  %1494 = vmatpush1.bf16.msra.mxu0 %v810
  %1495 = vmatprep.subr.bf16.mxu0 %v808
  %1496 = vmatpush1.bf16.msra.mxu0 %v807
  %1497 = vmatprep.subr.bf16.mxu0 %v805
  %1498 = vmatpush1.bf16.msra.mxu0 %v804
  %1499 = vmatprep.subr.bf16.mxu0 %v802
  %1500 = vmatpush1.bf16.msra.mxu0 %v801
  %1501 = vmatprep.subr.bf16.mxu0 0
  %1502 = vmatpush2.bf16.msra.mxu0 0
  %1503 = vmatprep.subr.bf16.mxu0 0
  %1504 = vmatpush2.bf16.msra.mxu0 0
  %1505 = vmatprep.subr.bf16.mxu0 0
  %1506 = vmatpush2.bf16.msra.mxu0 0
  %1507 = vmatprep.subr.bf16.mxu0 0
  %1508 = vmatpush2.bf16.msra.mxu0 0
  %1509 = vmatprep.subr.bf16.mxu0 0
  %1510 = vmatpush2.bf16.msra.mxu0 0
  %1511 = vmatprep.subr.bf16.mxu0 0
  %1512 = vmatpush2.bf16.msra.mxu0 0
  %1513 = vmatprep.subr.bf16.mxu0 0
  %1514 = vmatpush2.bf16.msra.mxu0 0
  %1515 = vmatprep.subr.bf16.mxu0 0
  %1516 = vmatpush2.bf16.msra.mxu0 0
  %1517 = vmatprep.mubr.bf16.mxu0 0
  %1518 = vmatmul.mubr.bf16.gmra.mxu0 %v1484
  %v1519 = vpop.f32.mrf.mxu0
  %v1520 = vadd.f32 %v709, %v1519
  %v1521 = vpop.f32.mrf.mxu0
  %v1522 = vadd.f32 %v713, %v1521
  %v1523 = vpop.f32.mrf.mxu0
  %v1524 = vpop.f32.mrf.mxu0
  %1525 = vdwg.mxu0
  %1526 = vmatprep.subr.bf16.mxu0 0
  %1527 = vmatpush1.bf16.msra.mxu0 %v824
  %1528 = vmatprep.subr.bf16.mxu0 0
  %1529 = vmatpush1.bf16.msra.mxu0 %v821
  %1530 = vmatprep.subr.bf16.mxu0 0
  %1531 = vmatpush1.bf16.msra.mxu0 %v818
  %1532 = vmatprep.subr.bf16.mxu0 0
  %1533 = vmatpush1.bf16.msra.mxu0 %v815
  %1534 = vmatprep.subr.bf16.mxu0 0
  %1535 = vmatpush1.bf16.msra.mxu0 %v812
  %1536 = vmatprep.subr.bf16.mxu0 0
  %1537 = vmatpush1.bf16.msra.mxu0 %v809
  %1538 = vmatprep.subr.bf16.mxu0 0
  %1539 = vmatpush1.bf16.msra.mxu0 %v806
  %1540 = vmatprep.subr.bf16.mxu0 0
  %1541 = vmatpush1.bf16.msra.mxu0 %v803
  %1542 = vmatprep.subr.bf16.mxu0 0
  %1543 = vmatpush2.bf16.msra.mxu0 0
  %1544 = vmatprep.subr.bf16.mxu0 0
  %1545 = vmatpush2.bf16.msra.mxu0 0
  %1546 = vmatprep.subr.bf16.mxu0 0
  %1547 = vmatpush2.bf16.msra.mxu0 0
  %1548 = vmatprep.subr.bf16.mxu0 0
  %1549 = vmatpush2.bf16.msra.mxu0 0
  %1550 = vmatprep.subr.bf16.mxu0 0
  %1551 = vmatpush2.bf16.msra.mxu0 0
  %1552 = vmatprep.subr.bf16.mxu0 0
  %1553 = vmatpush2.bf16.msra.mxu0 0
  %1554 = vmatprep.subr.bf16.mxu0 0
  %1555 = vmatpush2.bf16.msra.mxu0 0
  %1556 = vmatprep.subr.bf16.mxu0 0
  %1557 = vmatpush2.bf16.msra.mxu0 0
  %1558 = vmatprep.mubr.bf16.mxu0 0
  %1559 = vmatmul.mubr.bf16.gmra.mxu0 %v1484
  %v1560 = vpop.f32.mrf.mxu0
  %v1561 = vadd.f32 %v717, %v1560
  %v1562 = vpop.f32.mrf.mxu0
  %v1563 = vpop.f32.mrf.mxu0
  %v1564 = vpop.f32.mrf.mxu0
  %1565 = vdwg.mxu0
  %v1566 = vld [vmem:[#allocation2 + $0x90] sm:$0xff]
  %v1567 = vld [vmem:[#allocation2 + $0x98] sm:$0xff]
  %v1568 = vld [vmem:[#allocation2 + $0xa0] sm:$0xff]
  %v1569 = vld [vmem:[#allocation2 + $0xd8] sm:$0xff]
  %v1570 = vld [vmem:[#allocation2 + $0xe0] sm:$0xff]
  %v1571 = vld [vmem:[#allocation2 + $0xe8] sm:$0xff]
  %v1572 = vadd.f32 %v1566, %v1438
  %v1573 = vxor.u32 %v1572, 2147483648
  %v1574 = vmul.f32 %v1573, 1.442695
  %v1575 = vpow.pop %v1574
  %v1576 = vadd.f32 %v1575, 1.0
  %v1577 = vrcp.pop %v1576
  %v1578 = vmul.f32 1.0, %v1577
  %v1579 = vadd.f32 %v1567, %v1440
  %v1580 = vxor.u32 %v1579, 2147483648
  %v1581 = vmul.f32 %v1580, 1.442695
  %v1582 = vpow.pop %v1581
  %v1583 = vadd.f32 %v1582, 1.0
  %v1584 = vrcp.pop %v1583
  %v1585 = vmul.f32 1.0, %v1584
  %v1586 = vmul.f32 %v1578, %v1479
  %v1587 = vadd.f32 %v1568, %v1586
  %v1588 = vtanh.pop %v1587
  %v1589 = vsub.f32 1.0, %v1585
  %v1590 = vmul.f32 %v1589, %v1588
  %v1591 = vmul.f32 %v1585, %v1380
  %v1592 = vadd.f32 %v1590, %v1591
  %v1593 = vadd.f32 %v1569, %v1520
  %v1594 = vxor.u32 %v1593, 2147483648
  %v1595 = vmul.f32 %v1594, 1.442695
  %v1596 = vpow.pop %v1595
  %v1597 = vadd.f32 %v1596, 1.0
  %v1598 = vrcp.pop %v1597
  %v1599 = vmul.f32 1.0, %v1598
  %v1600 = vadd.f32 %v1570, %v1522
  %v1601 = vxor.u32 %v1600, 2147483648
  %v1602 = vmul.f32 %v1601, 1.442695
  %v1603 = vpow.pop %v1602
  %v1604 = vadd.f32 %v1603, 1.0
  %v1605 = vrcp.pop %v1604
  %v1606 = vmul.f32 1.0, %v1605
  %v1607 = vmul.f32 %v1599, %v1561
  %v1608 = vadd.f32 %v1571, %v1607
  %v1609 = vtanh.pop %v1608
  %v1610 = vsub.f32 1.0, %v1606
  %v1611 = vmul.f32 %v1610, %v1609
  %v1612 = vmul.f32 %v1606, %v1401
  %v1613 = vadd.f32 %v1611, %v1612
  %v1614 = vpack.c.bf16 %v1592, %v1592
  %1615 = vmatprep.subr.bf16.mxu0 %v598
  %1616 = vmatpush1.bf16.msra.mxu0 %v597
  %1617 = vmatprep.subr.bf16.mxu0 %v595
  %1618 = vmatpush1.bf16.msra.mxu0 %v594
  %1619 = vmatprep.subr.bf16.mxu0 %v592
  %1620 = vmatpush1.bf16.msra.mxu0 %v591
  %1621 = vmatprep.subr.bf16.mxu0 %v589
  %1622 = vmatpush1.bf16.msra.mxu0 %v588
  %1623 = vmatprep.subr.bf16.mxu0 %v586
  %1624 = vmatpush1.bf16.msra.mxu0 %v585
  %1625 = vmatprep.subr.bf16.mxu0 %v583
  %1626 = vmatpush1.bf16.msra.mxu0 %v582
  %1627 = vmatprep.subr.bf16.mxu0 %v580
  %1628 = vmatpush1.bf16.msra.mxu0 %v579
  %1629 = vmatprep.subr.bf16.mxu0 %v577
  %1630 = vmatpush1.bf16.msra.mxu0 %v576
  %1631 = vmatprep.subr.bf16.mxu0 0
  %1632 = vmatpush2.bf16.msra.mxu0 0
  %1633 = vmatprep.subr.bf16.mxu0 0
  %1634 = vmatpush2.bf16.msra.mxu0 0
  %1635 = vmatprep.subr.bf16.mxu0 0
  %1636 = vmatpush2.bf16.msra.mxu0 0
  %1637 = vmatprep.subr.bf16.mxu0 0
  %1638 = vmatpush2.bf16.msra.mxu0 0
  %1639 = vmatprep.subr.bf16.mxu0 0
  %1640 = vmatpush2.bf16.msra.mxu0 0
  %1641 = vmatprep.subr.bf16.mxu0 0
  %1642 = vmatpush2.bf16.msra.mxu0 0
  %1643 = vmatprep.subr.bf16.mxu0 0
  %1644 = vmatpush2.bf16.msra.mxu0 0
  %1645 = vmatprep.subr.bf16.mxu0 0
  %1646 = vmatpush2.bf16.msra.mxu0 0
  %1647 = vmatprep.mubr.bf16.mxu0 0
  %1648 = vmatmul.mubr.bf16.gmra.mxu0 %v1614
  %v1649 = vpop.f32.mrf.mxu0
  %v1650 = vadd.f32 %v484, %v1649
  %v1651 = vpop.f32.mrf.mxu0
  %v1652 = vadd.f32 %v488, %v1651
  %v1653 = vpop.f32.mrf.mxu0
  %v1654 = vpop.f32.mrf.mxu0
  %1655 = vdwg.mxu0
  %1656 = vmatprep.subr.bf16.mxu0 0
  %1657 = vmatpush1.bf16.msra.mxu0 %v599
  %1658 = vmatprep.subr.bf16.mxu0 0
  %1659 = vmatpush1.bf16.msra.mxu0 %v596
  %1660 = vmatprep.subr.bf16.mxu0 0
  %1661 = vmatpush1.bf16.msra.mxu0 %v593
  %1662 = vmatprep.subr.bf16.mxu0 0
  %1663 = vmatpush1.bf16.msra.mxu0 %v590
  %1664 = vmatprep.subr.bf16.mxu0 0
  %1665 = vmatpush1.bf16.msra.mxu0 %v587
  %1666 = vmatprep.subr.bf16.mxu0 0
  %1667 = vmatpush1.bf16.msra.mxu0 %v584
  %1668 = vmatprep.subr.bf16.mxu0 0
  %1669 = vmatpush1.bf16.msra.mxu0 %v581
  %1670 = vmatprep.subr.bf16.mxu0 0
  %1671 = vmatpush1.bf16.msra.mxu0 %v578
  %1672 = vmatprep.subr.bf16.mxu0 0
  %1673 = vmatpush2.bf16.msra.mxu0 0
  %1674 = vmatprep.subr.bf16.mxu0 0
  %1675 = vmatpush2.bf16.msra.mxu0 0
  %1676 = vmatprep.subr.bf16.mxu0 0
  %1677 = vmatpush2.bf16.msra.mxu0 0
  %1678 = vmatprep.subr.bf16.mxu0 0
  %1679 = vmatpush2.bf16.msra.mxu0 0
  %1680 = vmatprep.subr.bf16.mxu0 0
  %1681 = vmatpush2.bf16.msra.mxu0 0
  %1682 = vmatprep.subr.bf16.mxu0 0
  %1683 = vmatpush2.bf16.msra.mxu0 0
  %1684 = vmatprep.subr.bf16.mxu0 0
  %1685 = vmatpush2.bf16.msra.mxu0 0
  %1686 = vmatprep.subr.bf16.mxu0 0
  %1687 = vmatpush2.bf16.msra.mxu0 0
  %1688 = vmatprep.mubr.bf16.mxu0 0
  %1689 = vmatmul.mubr.bf16.gmra.mxu0 %v1614
  %v1690 = vpop.f32.mrf.mxu0
  %v1691 = vadd.f32 %v492, %v1690
  %v1692 = vpop.f32.mrf.mxu0
  %v1693 = vpop.f32.mrf.mxu0
  %v1694 = vpop.f32.mrf.mxu0
  %1695 = vdwg.mxu0
  %v1696 = vpack.c.bf16 %v1613, %v1613
  %1697 = vmatprep.subr.bf16.mxu0 %v823
  %1698 = vmatpush1.bf16.msra.mxu0 %v822
  %1699 = vmatprep.subr.bf16.mxu0 %v820
  %1700 = vmatpush1.bf16.msra.mxu0 %v819
  %1701 = vmatprep.subr.bf16.mxu0 %v817
  %1702 = vmatpush1.bf16.msra.mxu0 %v816
  %1703 = vmatprep.subr.bf16.mxu0 %v814
  %1704 = vmatpush1.bf16.msra.mxu0 %v813
  %1705 = vmatprep.subr.bf16.mxu0 %v811
  %1706 = vmatpush1.bf16.msra.mxu0 %v810
  %1707 = vmatprep.subr.bf16.mxu0 %v808
  %1708 = vmatpush1.bf16.msra.mxu0 %v807
  %1709 = vmatprep.subr.bf16.mxu0 %v805
  %1710 = vmatpush1.bf16.msra.mxu0 %v804
  %1711 = vmatprep.subr.bf16.mxu0 %v802
  %1712 = vmatpush1.bf16.msra.mxu0 %v801
  %1713 = vmatprep.subr.bf16.mxu0 0
  %1714 = vmatpush2.bf16.msra.mxu0 0
  %1715 = vmatprep.subr.bf16.mxu0 0
  %1716 = vmatpush2.bf16.msra.mxu0 0
  %1717 = vmatprep.subr.bf16.mxu0 0
  %1718 = vmatpush2.bf16.msra.mxu0 0
  %1719 = vmatprep.subr.bf16.mxu0 0
  %1720 = vmatpush2.bf16.msra.mxu0 0
  %1721 = vmatprep.subr.bf16.mxu0 0
  %1722 = vmatpush2.bf16.msra.mxu0 0
  %1723 = vmatprep.subr.bf16.mxu0 0
  %1724 = vmatpush2.bf16.msra.mxu0 0
  %1725 = vmatprep.subr.bf16.mxu0 0
  %1726 = vmatpush2.bf16.msra.mxu0 0
  %1727 = vmatprep.subr.bf16.mxu0 0
  %1728 = vmatpush2.bf16.msra.mxu0 0
  %1729 = vmatprep.mubr.bf16.mxu0 0
  %1730 = vmatmul.mubr.bf16.gmra.mxu0 %v1696
  %v1731 = vpop.f32.mrf.mxu0
  %v1732 = vadd.f32 %v709, %v1731
  %v1733 = vpop.f32.mrf.mxu0
  %v1734 = vadd.f32 %v713, %v1733
  %v1735 = vpop.f32.mrf.mxu0
  %v1736 = vpop.f32.mrf.mxu0
  %1737 = vdwg.mxu0
  %1738 = vmatprep.subr.bf16.mxu0 0
  %1739 = vmatpush1.bf16.msra.mxu0 %v824
  %1740 = vmatprep.subr.bf16.mxu0 0
  %1741 = vmatpush1.bf16.msra.mxu0 %v821
  %1742 = vmatprep.subr.bf16.mxu0 0
  %1743 = vmatpush1.bf16.msra.mxu0 %v818
  %1744 = vmatprep.subr.bf16.mxu0 0
  %1745 = vmatpush1.bf16.msra.mxu0 %v815
  %1746 = vmatprep.subr.bf16.mxu0 0
  %1747 = vmatpush1.bf16.msra.mxu0 %v812
  %1748 = vmatprep.subr.bf16.mxu0 0
  %1749 = vmatpush1.bf16.msra.mxu0 %v809
  %1750 = vmatprep.subr.bf16.mxu0 0
  %1751 = vmatpush1.bf16.msra.mxu0 %v806
  %1752 = vmatprep.subr.bf16.mxu0 0
  %1753 = vmatpush1.bf16.msra.mxu0 %v803
  %1754 = vmatprep.subr.bf16.mxu0 0
  %1755 = vmatpush2.bf16.msra.mxu0 0
  %1756 = vmatprep.subr.bf16.mxu0 0
  %1757 = vmatpush2.bf16.msra.mxu0 0
  %1758 = vmatprep.subr.bf16.mxu0 0
  %1759 = vmatpush2.bf16.msra.mxu0 0
  %1760 = vmatprep.subr.bf16.mxu0 0
  %1761 = vmatpush2.bf16.msra.mxu0 0
  %1762 = vmatprep.subr.bf16.mxu0 0
  %1763 = vmatpush2.bf16.msra.mxu0 0
  %1764 = vmatprep.subr.bf16.mxu0 0
  %1765 = vmatpush2.bf16.msra.mxu0 0
  %1766 = vmatprep.subr.bf16.mxu0 0
  %1767 = vmatpush2.bf16.msra.mxu0 0
  %1768 = vmatprep.subr.bf16.mxu0 0
  %1769 = vmatpush2.bf16.msra.mxu0 0
  %1770 = vmatprep.mubr.bf16.mxu0 0
  %1771 = vmatmul.mubr.bf16.gmra.mxu0 %v1696
  %v1772 = vpop.f32.mrf.mxu0
  %v1773 = vadd.f32 %v717, %v1772
  %v1774 = vpop.f32.mrf.mxu0
  %v1775 = vpop.f32.mrf.mxu0
  %v1776 = vpop.f32.mrf.mxu0
  %1777 = vdwg.mxu0
  %v1778 = vld [vmem:[#allocation2 + $0xc0] sm:$0xff]
  %v1779 = vld [vmem:[#allocation2 + $0xc8] sm:$0xff]
  %v1780 = vld [vmem:[#allocation2 + $0xd0] sm:$0xff]
  %v1781 = vld [vmem:[#allocation2 + $0xa8] sm:$0xff]
  %v1782 = vld [vmem:[#allocation2 + $0xb0] sm:$0xff]
  %v1783 = vld [vmem:[#allocation2 + $0xb8] sm:$0xff]
  %v1784 = vadd.f32 %v1778, %v1650
  %v1785 = vxor.u32 %v1784, 2147483648
  %v1786 = vmul.f32 %v1785, 1.442695
  %v1787 = vpow.pop %v1786
  %v1788 = vadd.f32 %v1787, 1.0
  %v1789 = vrcp.pop %v1788
  %v1790 = vmul.f32 1.0, %v1789
  %v1791 = vadd.f32 %v1779, %v1652
  %v1792 = vxor.u32 %v1791, 2147483648
  %v1793 = vmul.f32 %v1792, 1.442695
  %v1794 = vpow.pop %v1793
  %v1795 = vadd.f32 %v1794, 1.0
  %v1796 = vrcp.pop %v1795
  %v1797 = vmul.f32 1.0, %v1796
  %v1798 = vmul.f32 %v1790, %v1691
  %v1799 = vadd.f32 %v1780, %v1798
  %v1800 = vtanh.pop %v1799
  %v1801 = vsub.f32 1.0, %v1797
  %v1802 = vmul.f32 %v1801, %v1800
  %v1803 = vmul.f32 %v1797, %v1592
  %v1804 = vadd.f32 %v1802, %v1803
  %v1805 = vadd.f32 %v1781, %v1732
  %v1806 = vxor.u32 %v1805, 2147483648
  %v1807 = vmul.f32 %v1806, 1.442695
  %v1808 = vpow.pop %v1807
  %v1809 = vadd.f32 %v1808, 1.0
  %v1810 = vrcp.pop %v1809
  %v1811 = vmul.f32 1.0, %v1810
  %v1812 = vadd.f32 %v1782, %v1734
  %v1813 = vxor.u32 %v1812, 2147483648
  %v1814 = vmul.f32 %v1813, 1.442695
  %v1815 = vpow.pop %v1814
  %v1816 = vadd.f32 %v1815, 1.0
  %v1817 = vrcp.pop %v1816
  %v1818 = vmul.f32 1.0, %v1817
  %v1819 = vmul.f32 %v1811, %v1773
  %v1820 = vadd.f32 %v1783, %v1819
  %v1821 = vtanh.pop %v1820
  %v1822 = vsub.f32 1.0, %v1818
  %v1823 = vmul.f32 %v1822, %v1821
  %v1824 = vmul.f32 %v1818, %v1613
  %v1825 = vadd.f32 %v1823, %v1824
  %v1826 = vpack.c.bf16 %v1804, %v1804
  %1827 = vmatprep.subr.bf16.mxu0 %v598
  %1828 = vmatpush1.bf16.msra.mxu0 %v597
  %1829 = vmatprep.subr.bf16.mxu0 %v595
  %1830 = vmatpush1.bf16.msra.mxu0 %v594
  %1831 = vmatprep.subr.bf16.mxu0 %v592
  %1832 = vmatpush1.bf16.msra.mxu0 %v591
  %1833 = vmatprep.subr.bf16.mxu0 %v589
  %1834 = vmatpush1.bf16.msra.mxu0 %v588
  %1835 = vmatprep.subr.bf16.mxu0 %v586
  %1836 = vmatpush1.bf16.msra.mxu0 %v585
  %1837 = vmatprep.subr.bf16.mxu0 %v583
  %1838 = vmatpush1.bf16.msra.mxu0 %v582
  %1839 = vmatprep.subr.bf16.mxu0 %v580
  %1840 = vmatpush1.bf16.msra.mxu0 %v579
  %1841 = vmatprep.subr.bf16.mxu0 %v577
  %1842 = vmatpush1.bf16.msra.mxu0 %v576
  %1843 = vmatprep.subr.bf16.mxu0 0
  %1844 = vmatpush2.bf16.msra.mxu0 0
  %1845 = vmatprep.subr.bf16.mxu0 0
  %1846 = vmatpush2.bf16.msra.mxu0 0
  %1847 = vmatprep.subr.bf16.mxu0 0
  %1848 = vmatpush2.bf16.msra.mxu0 0
  %1849 = vmatprep.subr.bf16.mxu0 0
  %1850 = vmatpush2.bf16.msra.mxu0 0
  %1851 = vmatprep.subr.bf16.mxu0 0
  %1852 = vmatpush2.bf16.msra.mxu0 0
  %1853 = vmatprep.subr.bf16.mxu0 0
  %1854 = vmatpush2.bf16.msra.mxu0 0
  %1855 = vmatprep.subr.bf16.mxu0 0
  %1856 = vmatpush2.bf16.msra.mxu0 0
  %1857 = vmatprep.subr.bf16.mxu0 0
  %1858 = vmatpush2.bf16.msra.mxu0 0
  %1859 = vmatprep.mubr.bf16.mxu0 0
  %1860 = vmatmul.mubr.bf16.gmra.mxu0 %v1826
  %v1861 = vpop.f32.mrf.mxu0
  %v1862 = vadd.f32 %v484, %v1861
  %v1863 = vpop.f32.mrf.mxu0
  %v1864 = vadd.f32 %v488, %v1863
  %v1865 = vpop.f32.mrf.mxu0
  %v1866 = vpop.f32.mrf.mxu0
  %1867 = vdwg.mxu0
  %1868 = vmatprep.subr.bf16.mxu0 0
  %1869 = vmatpush1.bf16.msra.mxu0 %v599
  %1870 = vmatprep.subr.bf16.mxu0 0
  %1871 = vmatpush1.bf16.msra.mxu0 %v596
  %1872 = vmatprep.subr.bf16.mxu0 0
  %1873 = vmatpush1.bf16.msra.mxu0 %v593
  %1874 = vmatprep.subr.bf16.mxu0 0
  %1875 = vmatpush1.bf16.msra.mxu0 %v590
  %1876 = vmatprep.subr.bf16.mxu0 0
  %1877 = vmatpush1.bf16.msra.mxu0 %v587
  %1878 = vmatprep.subr.bf16.mxu0 0
  %1879 = vmatpush1.bf16.msra.mxu0 %v584
  %1880 = vmatprep.subr.bf16.mxu0 0
  %1881 = vmatpush1.bf16.msra.mxu0 %v581
  %1882 = vmatprep.subr.bf16.mxu0 0
  %1883 = vmatpush1.bf16.msra.mxu0 %v578
  %1884 = vmatprep.subr.bf16.mxu0 0
  %1885 = vmatpush2.bf16.msra.mxu0 0
  %1886 = vmatprep.subr.bf16.mxu0 0
  %1887 = vmatpush2.bf16.msra.mxu0 0
  %1888 = vmatprep.subr.bf16.mxu0 0
  %1889 = vmatpush2.bf16.msra.mxu0 0
  %1890 = vmatprep.subr.bf16.mxu0 0
  %1891 = vmatpush2.bf16.msra.mxu0 0
  %1892 = vmatprep.subr.bf16.mxu0 0
  %1893 = vmatpush2.bf16.msra.mxu0 0
  %1894 = vmatprep.subr.bf16.mxu0 0
  %1895 = vmatpush2.bf16.msra.mxu0 0
  %1896 = vmatprep.subr.bf16.mxu0 0
  %1897 = vmatpush2.bf16.msra.mxu0 0
  %1898 = vmatprep.subr.bf16.mxu0 0
  %1899 = vmatpush2.bf16.msra.mxu0 0
  %1900 = vmatprep.mubr.bf16.mxu0 0
  %1901 = vmatmul.mubr.bf16.gmra.mxu0 %v1826
  %v1902 = vpop.f32.mrf.mxu0
  %v1903 = vadd.f32 %v492, %v1902
  %v1904 = vpop.f32.mrf.mxu0
  %v1905 = vpop.f32.mrf.mxu0
  %v1906 = vpop.f32.mrf.mxu0
  %1907 = vdwg.mxu0
  %v1908 = vpack.c.bf16 %v1825, %v1825
  %1909 = vmatprep.subr.bf16.mxu0 %v823
  %1910 = vmatpush1.bf16.msra.mxu0 %v822
  %1911 = vmatprep.subr.bf16.mxu0 %v820
  %1912 = vmatpush1.bf16.msra.mxu0 %v819
  %1913 = vmatprep.subr.bf16.mxu0 %v817
  %1914 = vmatpush1.bf16.msra.mxu0 %v816
  %1915 = vmatprep.subr.bf16.mxu0 %v814
  %1916 = vmatpush1.bf16.msra.mxu0 %v813
  %1917 = vmatprep.subr.bf16.mxu0 %v811
  %1918 = vmatpush1.bf16.msra.mxu0 %v810
  %1919 = vmatprep.subr.bf16.mxu0 %v808
  %1920 = vmatpush1.bf16.msra.mxu0 %v807
  %1921 = vmatprep.subr.bf16.mxu0 %v805
  %1922 = vmatpush1.bf16.msra.mxu0 %v804
  %1923 = vmatprep.subr.bf16.mxu0 %v802
  %1924 = vmatpush1.bf16.msra.mxu0 %v801
  %1925 = vmatprep.subr.bf16.mxu0 0
  %1926 = vmatpush2.bf16.msra.mxu0 0
  %1927 = vmatprep.subr.bf16.mxu0 0
  %1928 = vmatpush2.bf16.msra.mxu0 0
  %1929 = vmatprep.subr.bf16.mxu0 0
  %1930 = vmatpush2.bf16.msra.mxu0 0
  %1931 = vmatprep.subr.bf16.mxu0 0
  %1932 = vmatpush2.bf16.msra.mxu0 0
  %1933 = vmatprep.subr.bf16.mxu0 0
  %1934 = vmatpush2.bf16.msra.mxu0 0
  %1935 = vmatprep.subr.bf16.mxu0 0
  %1936 = vmatpush2.bf16.msra.mxu0 0
  %1937 = vmatprep.subr.bf16.mxu0 0
  %1938 = vmatpush2.bf16.msra.mxu0 0
  %1939 = vmatprep.subr.bf16.mxu0 0
  %1940 = vmatpush2.bf16.msra.mxu0 0
  %1941 = vmatprep.mubr.bf16.mxu0 0
  %1942 = vmatmul.mubr.bf16.gmra.mxu0 %v1908
  %v1943 = vpop.f32.mrf.mxu0
  %v1944 = vadd.f32 %v709, %v1943
  %v1945 = vpop.f32.mrf.mxu0
  %v1946 = vadd.f32 %v713, %v1945
  %v1947 = vpop.f32.mrf.mxu0
  %v1948 = vpop.f32.mrf.mxu0
  %1949 = vdwg.mxu0
  %1950 = vmatprep.subr.bf16.mxu0 0
  %1951 = vmatpush1.bf16.msra.mxu0 %v824
  %1952 = vmatprep.subr.bf16.mxu0 0
  %1953 = vmatpush1.bf16.msra.mxu0 %v821
  %1954 = vmatprep.subr.bf16.mxu0 0
  %1955 = vmatpush1.bf16.msra.mxu0 %v818
  %1956 = vmatprep.subr.bf16.mxu0 0
  %1957 = vmatpush1.bf16.msra.mxu0 %v815
  %1958 = vmatprep.subr.bf16.mxu0 0
  %1959 = vmatpush1.bf16.msra.mxu0 %v812
  %1960 = vmatprep.subr.bf16.mxu0 0
  %1961 = vmatpush1.bf16.msra.mxu0 %v809
  %1962 = vmatprep.subr.bf16.mxu0 0
  %1963 = vmatpush1.bf16.msra.mxu0 %v806
  %1964 = vmatprep.subr.bf16.mxu0 0
  %1965 = vmatpush1.bf16.msra.mxu0 %v803
  %1966 = vmatprep.subr.bf16.mxu0 0
  %1967 = vmatpush2.bf16.msra.mxu0 0
  %1968 = vmatprep.subr.bf16.mxu0 0
  %1969 = vmatpush2.bf16.msra.mxu0 0
  %1970 = vmatprep.subr.bf16.mxu0 0
  %1971 = vmatpush2.bf16.msra.mxu0 0
  %1972 = vmatprep.subr.bf16.mxu0 0
  %1973 = vmatpush2.bf16.msra.mxu0 0
  %1974 = vmatprep.subr.bf16.mxu0 0
  %1975 = vmatpush2.bf16.msra.mxu0 0
  %1976 = vmatprep.subr.bf16.mxu0 0
  %1977 = vmatpush2.bf16.msra.mxu0 0
  %1978 = vmatprep.subr.bf16.mxu0 0
  %1979 = vmatpush2.bf16.msra.mxu0 0
  %1980 = vmatprep.subr.bf16.mxu0 0
  %1981 = vmatpush2.bf16.msra.mxu0 0
  %1982 = vmatprep.mubr.bf16.mxu0 0
  %1983 = vmatmul.mubr.bf16.gmra.mxu0 %v1908
  %v1984 = vpop.f32.mrf.mxu0
  %v1985 = vadd.f32 %v717, %v1984
  %v1986 = vpop.f32.mrf.mxu0
  %v1987 = vpop.f32.mrf.mxu0
  %v1988 = vpop.f32.mrf.mxu0
  %1989 = vdwg.mxu0
  %v1990 = vld [vmem:[#allocation2 + $0xf0] sm:$0xff]
  %v1991 = vld [vmem:[#allocation2 + $0xf8] sm:$0xff]
  %v1992 = vld [vmem:[#allocation2 + $0x100] sm:$0xff]
  %v1993 = vld [vmem:[#allocation2 + $0x78] sm:$0xff]
  %v1994 = vld [vmem:[#allocation2 + $0x80] sm:$0xff]
  %v1995 = vld [vmem:[#allocation2 + $0x88] sm:$0xff]
  %v1996 = vadd.f32 %v1990, %v1862
  %v1997 = vxor.u32 %v1996, 2147483648
  %v1998 = vmul.f32 %v1997, 1.442695
  %v1999 = vpow.pop %v1998
  %v2000 = vadd.f32 %v1999, 1.0
  %v2001 = vrcp.pop %v2000
  %v2002 = vmul.f32 1.0, %v2001
  %v2003 = vadd.f32 %v1991, %v1864
  %v2004 = vxor.u32 %v2003, 2147483648
  %v2005 = vmul.f32 %v2004, 1.442695
  %v2006 = vpow.pop %v2005
  %v2007 = vadd.f32 %v2006, 1.0
  %v2008 = vrcp.pop %v2007
  %v2009 = vmul.f32 1.0, %v2008
  %v2010 = vmul.f32 %v2002, %v1903
  %v2011 = vadd.f32 %v1992, %v2010
  %v2012 = vtanh.pop %v2011
  %v2013 = vsub.f32 1.0, %v2009
  %v2014 = vmul.f32 %v2013, %v2012
  %v2015 = vmul.f32 %v2009, %v1804
  %v2016 = vadd.f32 %v2014, %v2015
  %v2017 = vadd.f32 %v1993, %v1944
  %v2018 = vxor.u32 %v2017, 2147483648
  %v2019 = vmul.f32 %v2018, 1.442695
  %v2020 = vpow.pop %v2019
  %v2021 = vadd.f32 %v2020, 1.0
  %v2022 = vrcp.pop %v2021
  %v2023 = vmul.f32 1.0, %v2022
  %v2024 = vadd.f32 %v1994, %v1946
  %v2025 = vxor.u32 %v2024, 2147483648
  %v2026 = vmul.f32 %v2025, 1.442695
  %v2027 = vpow.pop %v2026
  %v2028 = vadd.f32 %v2027, 1.0
  %v2029 = vrcp.pop %v2028
  %v2030 = vmul.f32 1.0, %v2029
  %v2031 = vmul.f32 %v2023, %v1985
  %v2032 = vadd.f32 %v1995, %v2031
  %v2033 = vtanh.pop %v2032
  %v2034 = vsub.f32 1.0, %v2030
  %v2035 = vmul.f32 %v2034, %v2033
  %v2036 = vmul.f32 %v2030, %v1825
  %v2037 = vadd.f32 %v2035, %v2036
  %v2038 = vpack.c.bf16 %v2016, %v2016
  %2039 = vmatprep.subr.bf16.mxu0 %v598
  %2040 = vmatpush1.bf16.msra.mxu0 %v597
  %2041 = vmatprep.subr.bf16.mxu0 %v595
  %2042 = vmatpush1.bf16.msra.mxu0 %v594
  %2043 = vmatprep.subr.bf16.mxu0 %v592
  %2044 = vmatpush1.bf16.msra.mxu0 %v591
  %2045 = vmatprep.subr.bf16.mxu0 %v589
  %2046 = vmatpush1.bf16.msra.mxu0 %v588
  %2047 = vmatprep.subr.bf16.mxu0 %v586
  %2048 = vmatpush1.bf16.msra.mxu0 %v585
  %2049 = vmatprep.subr.bf16.mxu0 %v583
  %2050 = vmatpush1.bf16.msra.mxu0 %v582
  %2051 = vmatprep.subr.bf16.mxu0 %v580
  %2052 = vmatpush1.bf16.msra.mxu0 %v579
  %2053 = vmatprep.subr.bf16.mxu0 %v577
  %2054 = vmatpush1.bf16.msra.mxu0 %v576
  %2055 = vmatprep.subr.bf16.mxu0 0
  %2056 = vmatpush2.bf16.msra.mxu0 0
  %2057 = vmatprep.subr.bf16.mxu0 0
  %2058 = vmatpush2.bf16.msra.mxu0 0
  %2059 = vmatprep.subr.bf16.mxu0 0
  %2060 = vmatpush2.bf16.msra.mxu0 0
  %2061 = vmatprep.subr.bf16.mxu0 0
  %2062 = vmatpush2.bf16.msra.mxu0 0
  %2063 = vmatprep.subr.bf16.mxu0 0
  %2064 = vmatpush2.bf16.msra.mxu0 0
  %2065 = vmatprep.subr.bf16.mxu0 0
  %2066 = vmatpush2.bf16.msra.mxu0 0
  %2067 = vmatprep.subr.bf16.mxu0 0
  %2068 = vmatpush2.bf16.msra.mxu0 0
  %2069 = vmatprep.subr.bf16.mxu0 0
  %2070 = vmatpush2.bf16.msra.mxu0 0
  %2071 = vmatprep.mubr.bf16.mxu0 0
  %2072 = vmatmul.mubr.bf16.gmra.mxu0 %v2038
  %v2073 = vpop.f32.mrf.mxu0
  %v2074 = vadd.f32 %v484, %v2073
  %v2075 = vpop.f32.mrf.mxu0
  %v2076 = vadd.f32 %v488, %v2075
  %v2077 = vpop.f32.mrf.mxu0
  %v2078 = vpop.f32.mrf.mxu0
  %2079 = vdwg.mxu0
  %2080 = vmatprep.subr.bf16.mxu0 0
  %2081 = vmatpush1.bf16.msra.mxu0 %v599
  %2082 = vmatprep.subr.bf16.mxu0 0
  %2083 = vmatpush1.bf16.msra.mxu0 %v596
  %2084 = vmatprep.subr.bf16.mxu0 0
  %2085 = vmatpush1.bf16.msra.mxu0 %v593
  %2086 = vmatprep.subr.bf16.mxu0 0
  %2087 = vmatpush1.bf16.msra.mxu0 %v590
  %2088 = vmatprep.subr.bf16.mxu0 0
  %2089 = vmatpush1.bf16.msra.mxu0 %v587
  %2090 = vmatprep.subr.bf16.mxu0 0
  %2091 = vmatpush1.bf16.msra.mxu0 %v584
  %2092 = vmatprep.subr.bf16.mxu0 0
  %2093 = vmatpush1.bf16.msra.mxu0 %v581
  %2094 = vmatprep.subr.bf16.mxu0 0
  %2095 = vmatpush1.bf16.msra.mxu0 %v578
  %2096 = vmatprep.subr.bf16.mxu0 0
  %2097 = vmatpush2.bf16.msra.mxu0 0
  %2098 = vmatprep.subr.bf16.mxu0 0
  %2099 = vmatpush2.bf16.msra.mxu0 0
  %2100 = vmatprep.subr.bf16.mxu0 0
  %2101 = vmatpush2.bf16.msra.mxu0 0
  %2102 = vmatprep.subr.bf16.mxu0 0
  %2103 = vmatpush2.bf16.msra.mxu0 0
  %2104 = vmatprep.subr.bf16.mxu0 0
  %2105 = vmatpush2.bf16.msra.mxu0 0
  %2106 = vmatprep.subr.bf16.mxu0 0
  %2107 = vmatpush2.bf16.msra.mxu0 0
  %2108 = vmatprep.subr.bf16.mxu0 0
  %2109 = vmatpush2.bf16.msra.mxu0 0
  %2110 = vmatprep.subr.bf16.mxu0 0
  %2111 = vmatpush2.bf16.msra.mxu0 0
  %2112 = vmatprep.mubr.bf16.mxu0 0
  %2113 = vmatmul.mubr.bf16.gmra.mxu0 %v2038
  %v2114 = vpop.f32.mrf.mxu0
  %v2115 = vadd.f32 %v492, %v2114
  %v2116 = vpop.f32.mrf.mxu0
  %v2117 = vpop.f32.mrf.mxu0
  %v2118 = vpop.f32.mrf.mxu0
  %2119 = vdwg.mxu0
  %v2120 = vpack.c.bf16 %v2037, %v2037
  %2121 = vmatprep.subr.bf16.mxu0 %v823
  %2122 = vmatpush1.bf16.msra.mxu0 %v822
  %2123 = vmatprep.subr.bf16.mxu0 %v820
  %2124 = vmatpush1.bf16.msra.mxu0 %v819
  %2125 = vmatprep.subr.bf16.mxu0 %v817
  %2126 = vmatpush1.bf16.msra.mxu0 %v816
  %2127 = vmatprep.subr.bf16.mxu0 %v814
  %2128 = vmatpush1.bf16.msra.mxu0 %v813
  %2129 = vmatprep.subr.bf16.mxu0 %v811
  %2130 = vmatpush1.bf16.msra.mxu0 %v810
  %2131 = vmatprep.subr.bf16.mxu0 %v808
  %2132 = vmatpush1.bf16.msra.mxu0 %v807
  %2133 = vmatprep.subr.bf16.mxu0 %v805
  %2134 = vmatpush1.bf16.msra.mxu0 %v804
  %2135 = vmatprep.subr.bf16.mxu0 %v802
  %2136 = vmatpush1.bf16.msra.mxu0 %v801
  %2137 = vmatprep.subr.bf16.mxu0 0
  %2138 = vmatpush2.bf16.msra.mxu0 0
  %2139 = vmatprep.subr.bf16.mxu0 0
  %2140 = vmatpush2.bf16.msra.mxu0 0
  %2141 = vmatprep.subr.bf16.mxu0 0
  %2142 = vmatpush2.bf16.msra.mxu0 0
  %2143 = vmatprep.subr.bf16.mxu0 0
  %2144 = vmatpush2.bf16.msra.mxu0 0
  %2145 = vmatprep.subr.bf16.mxu0 0
  %2146 = vmatpush2.bf16.msra.mxu0 0
  %2147 = vmatprep.subr.bf16.mxu0 0
  %2148 = vmatpush2.bf16.msra.mxu0 0
  %2149 = vmatprep.subr.bf16.mxu0 0
  %2150 = vmatpush2.bf16.msra.mxu0 0
  %2151 = vmatprep.subr.bf16.mxu0 0
  %2152 = vmatpush2.bf16.msra.mxu0 0
  %2153 = vmatprep.mubr.bf16.mxu0 0
  %2154 = vmatmul.mubr.bf16.gmra.mxu0 %v2120
  %v2155 = vpop.f32.mrf.mxu0
  %v2156 = vadd.f32 %v709, %v2155
  %v2157 = vpop.f32.mrf.mxu0
  %v2158 = vadd.f32 %v713, %v2157
  %v2159 = vpop.f32.mrf.mxu0
  %v2160 = vpop.f32.mrf.mxu0
  %2161 = vdwg.mxu0
  %2162 = vmatprep.subr.bf16.mxu0 0
  %2163 = vmatpush1.bf16.msra.mxu0 %v824
  %2164 = vmatprep.subr.bf16.mxu0 0
  %2165 = vmatpush1.bf16.msra.mxu0 %v821
  %2166 = vmatprep.subr.bf16.mxu0 0
  %2167 = vmatpush1.bf16.msra.mxu0 %v818
  %2168 = vmatprep.subr.bf16.mxu0 0
  %2169 = vmatpush1.bf16.msra.mxu0 %v815
  %2170 = vmatprep.subr.bf16.mxu0 0
  %2171 = vmatpush1.bf16.msra.mxu0 %v812
  %2172 = vmatprep.subr.bf16.mxu0 0
  %2173 = vmatpush1.bf16.msra.mxu0 %v809
  %2174 = vmatprep.subr.bf16.mxu0 0
  %2175 = vmatpush1.bf16.msra.mxu0 %v806
  %2176 = vmatprep.subr.bf16.mxu0 0
  %2177 = vmatpush1.bf16.msra.mxu0 %v803
  %2178 = vmatprep.subr.bf16.mxu0 0
  %2179 = vmatpush2.bf16.msra.mxu0 0
  %2180 = vmatprep.subr.bf16.mxu0 0
  %2181 = vmatpush2.bf16.msra.mxu0 0
  %2182 = vmatprep.subr.bf16.mxu0 0
  %2183 = vmatpush2.bf16.msra.mxu0 0
  %2184 = vmatprep.subr.bf16.mxu0 0
  %2185 = vmatpush2.bf16.msra.mxu0 0
  %2186 = vmatprep.subr.bf16.mxu0 0
  %2187 = vmatpush2.bf16.msra.mxu0 0
  %2188 = vmatprep.subr.bf16.mxu0 0
  %2189 = vmatpush2.bf16.msra.mxu0 0
  %2190 = vmatprep.subr.bf16.mxu0 0
  %2191 = vmatpush2.bf16.msra.mxu0 0
  %2192 = vmatprep.subr.bf16.mxu0 0
  %2193 = vmatpush2.bf16.msra.mxu0 0
  %2194 = vmatprep.mubr.bf16.mxu0 0
  %2195 = vmatmul.mubr.bf16.gmra.mxu0 %v2120
  %v2196 = vpop.f32.mrf.mxu0
  %v2197 = vadd.f32 %v717, %v2196
  %v2198 = vpop.f32.mrf.mxu0
  %v2199 = vpop.f32.mrf.mxu0
  %v2200 = vpop.f32.mrf.mxu0
  %2201 = vdwg.mxu0
  %v2202 = vld [vmem:[#allocation2 + $0x120] sm:$0xff]
  %v2203 = vld [vmem:[#allocation2 + $0x128] sm:$0xff]
  %v2204 = vld [vmem:[#allocation2 + $0x130] sm:$0xff]
  %v2205 = vld [vmem:[#allocation2 + $0x48] sm:$0xff]
  %v2206 = vld [vmem:[#allocation2 + $0x50] sm:$0xff]
  %v2207 = vld [vmem:[#allocation2 + $0x58] sm:$0xff]
  %v2208 = vadd.f32 %v2202, %v2074
  %v2209 = vxor.u32 %v2208, 2147483648
  %v2210 = vmul.f32 %v2209, 1.442695
  %v2211 = vpow.pop %v2210
  %v2212 = vadd.f32 %v2211, 1.0
  %v2213 = vrcp.pop %v2212
  %v2214 = vmul.f32 1.0, %v2213
  %v2215 = vadd.f32 %v2203, %v2076
  %v2216 = vxor.u32 %v2215, 2147483648
  %v2217 = vmul.f32 %v2216, 1.442695
  %v2218 = vpow.pop %v2217
  %v2219 = vadd.f32 %v2218, 1.0
  %v2220 = vrcp.pop %v2219
  %v2221 = vmul.f32 1.0, %v2220
  %v2222 = vmul.f32 %v2214, %v2115
  %v2223 = vadd.f32 %v2204, %v2222
  %v2224 = vtanh.pop %v2223
  %v2225 = vsub.f32 1.0, %v2221
  %v2226 = vmul.f32 %v2225, %v2224
  %v2227 = vmul.f32 %v2221, %v2016
  %v2228 = vadd.f32 %v2226, %v2227
  %v2229 = vadd.f32 %v2205, %v2156
  %v2230 = vxor.u32 %v2229, 2147483648
  %v2231 = vmul.f32 %v2230, 1.442695
  %v2232 = vpow.pop %v2231
  %v2233 = vadd.f32 %v2232, 1.0
  %v2234 = vrcp.pop %v2233
  %v2235 = vmul.f32 1.0, %v2234
  %v2236 = vadd.f32 %v2206, %v2158
  %v2237 = vxor.u32 %v2236, 2147483648
  %v2238 = vmul.f32 %v2237, 1.442695
  %v2239 = vpow.pop %v2238
  %v2240 = vadd.f32 %v2239, 1.0
  %v2241 = vrcp.pop %v2240
  %v2242 = vmul.f32 1.0, %v2241
  %v2243 = vmul.f32 %v2235, %v2197
  %v2244 = vadd.f32 %v2207, %v2243
  %v2245 = vtanh.pop %v2244
  %v2246 = vsub.f32 1.0, %v2242
  %v2247 = vmul.f32 %v2246, %v2245
  %v2248 = vmul.f32 %v2242, %v2037
  %v2249 = vadd.f32 %v2247, %v2248
  %v2250 = vpack.c.bf16 %v2228, %v2228
  %2251 = vmatprep.subr.bf16.mxu0 %v598
  %2252 = vmatpush1.bf16.msra.mxu0 %v597
  %2253 = vmatprep.subr.bf16.mxu0 %v595
  %2254 = vmatpush1.bf16.msra.mxu0 %v594
  %2255 = vmatprep.subr.bf16.mxu0 %v592
  %2256 = vmatpush1.bf16.msra.mxu0 %v591
  %2257 = vmatprep.subr.bf16.mxu0 %v589
  %2258 = vmatpush1.bf16.msra.mxu0 %v588
  %2259 = vmatprep.subr.bf16.mxu0 %v586
  %2260 = vmatpush1.bf16.msra.mxu0 %v585
  %2261 = vmatprep.subr.bf16.mxu0 %v583
  %2262 = vmatpush1.bf16.msra.mxu0 %v582
  %2263 = vmatprep.subr.bf16.mxu0 %v580
  %2264 = vmatpush1.bf16.msra.mxu0 %v579
  %2265 = vmatprep.subr.bf16.mxu0 %v577
  %2266 = vmatpush1.bf16.msra.mxu0 %v576
  %2267 = vmatprep.subr.bf16.mxu0 0
  %2268 = vmatpush2.bf16.msra.mxu0 0
  %2269 = vmatprep.subr.bf16.mxu0 0
  %2270 = vmatpush2.bf16.msra.mxu0 0
  %2271 = vmatprep.subr.bf16.mxu0 0
  %2272 = vmatpush2.bf16.msra.mxu0 0
  %2273 = vmatprep.subr.bf16.mxu0 0
  %2274 = vmatpush2.bf16.msra.mxu0 0
  %2275 = vmatprep.subr.bf16.mxu0 0
  %2276 = vmatpush2.bf16.msra.mxu0 0
  %2277 = vmatprep.subr.bf16.mxu0 0
  %2278 = vmatpush2.bf16.msra.mxu0 0
  %2279 = vmatprep.subr.bf16.mxu0 0
  %2280 = vmatpush2.bf16.msra.mxu0 0
  %2281 = vmatprep.subr.bf16.mxu0 0
  %2282 = vmatpush2.bf16.msra.mxu0 0
  %2283 = vmatprep.mubr.bf16.mxu0 0
  %2284 = vmatmul.mubr.bf16.gmra.mxu0 %v2250
  %v2285 = vpop.f32.mrf.mxu0
  %v2286 = vadd.f32 %v484, %v2285
  %v2287 = vpop.f32.mrf.mxu0
  %v2288 = vadd.f32 %v488, %v2287
  %v2289 = vpop.f32.mrf.mxu0
  %v2290 = vpop.f32.mrf.mxu0
  %2291 = vdwg.mxu0
  %2292 = vmatprep.subr.bf16.mxu0 0
  %2293 = vmatpush1.bf16.msra.mxu0 %v599
  %2294 = vmatprep.subr.bf16.mxu0 0
  %2295 = vmatpush1.bf16.msra.mxu0 %v596
  %2296 = vmatprep.subr.bf16.mxu0 0
  %2297 = vmatpush1.bf16.msra.mxu0 %v593
  %2298 = vmatprep.subr.bf16.mxu0 0
  %2299 = vmatpush1.bf16.msra.mxu0 %v590
  %2300 = vmatprep.subr.bf16.mxu0 0
  %2301 = vmatpush1.bf16.msra.mxu0 %v587
  %2302 = vmatprep.subr.bf16.mxu0 0
  %2303 = vmatpush1.bf16.msra.mxu0 %v584
  %2304 = vmatprep.subr.bf16.mxu0 0
  %2305 = vmatpush1.bf16.msra.mxu0 %v581
  %2306 = vmatprep.subr.bf16.mxu0 0
  %2307 = vmatpush1.bf16.msra.mxu0 %v578
  %2308 = vmatprep.subr.bf16.mxu0 0
  %2309 = vmatpush2.bf16.msra.mxu0 0
  %2310 = vmatprep.subr.bf16.mxu0 0
  %2311 = vmatpush2.bf16.msra.mxu0 0
  %2312 = vmatprep.subr.bf16.mxu0 0
  %2313 = vmatpush2.bf16.msra.mxu0 0
  %2314 = vmatprep.subr.bf16.mxu0 0
  %2315 = vmatpush2.bf16.msra.mxu0 0
  %2316 = vmatprep.subr.bf16.mxu0 0
  %2317 = vmatpush2.bf16.msra.mxu0 0
  %2318 = vmatprep.subr.bf16.mxu0 0
  %2319 = vmatpush2.bf16.msra.mxu0 0
  %2320 = vmatprep.subr.bf16.mxu0 0
  %2321 = vmatpush2.bf16.msra.mxu0 0
  %2322 = vmatprep.subr.bf16.mxu0 0
  %2323 = vmatpush2.bf16.msra.mxu0 0
  %2324 = vmatprep.mubr.bf16.mxu0 0
  %2325 = vmatmul.mubr.bf16.gmra.mxu0 %v2250
  %v2326 = vpop.f32.mrf.mxu0
  %v2327 = vadd.f32 %v492, %v2326
  %v2328 = vpop.f32.mrf.mxu0
  %v2329 = vpop.f32.mrf.mxu0
  %v2330 = vpop.f32.mrf.mxu0
  %2331 = vdwg.mxu0
  %v2332 = vpack.c.bf16 %v2249, %v2249
  %2333 = vmatprep.subr.bf16.mxu0 %v823
  %2334 = vmatpush1.bf16.msra.mxu0 %v822
  %2335 = vmatprep.subr.bf16.mxu0 %v820
  %2336 = vmatpush1.bf16.msra.mxu0 %v819
  %2337 = vmatprep.subr.bf16.mxu0 %v817
  %2338 = vmatpush1.bf16.msra.mxu0 %v816
  %2339 = vmatprep.subr.bf16.mxu0 %v814
  %2340 = vmatpush1.bf16.msra.mxu0 %v813
  %2341 = vmatprep.subr.bf16.mxu0 %v811
  %2342 = vmatpush1.bf16.msra.mxu0 %v810
  %2343 = vmatprep.subr.bf16.mxu0 %v808
  %2344 = vmatpush1.bf16.msra.mxu0 %v807
  %2345 = vmatprep.subr.bf16.mxu0 %v805
  %2346 = vmatpush1.bf16.msra.mxu0 %v804
  %2347 = vmatprep.subr.bf16.mxu0 %v802
  %2348 = vmatpush1.bf16.msra.mxu0 %v801
  %2349 = vmatprep.subr.bf16.mxu0 0
  %2350 = vmatpush2.bf16.msra.mxu0 0
  %2351 = vmatprep.subr.bf16.mxu0 0
  %2352 = vmatpush2.bf16.msra.mxu0 0
  %2353 = vmatprep.subr.bf16.mxu0 0
  %2354 = vmatpush2.bf16.msra.mxu0 0
  %2355 = vmatprep.subr.bf16.mxu0 0
  %2356 = vmatpush2.bf16.msra.mxu0 0
  %2357 = vmatprep.subr.bf16.mxu0 0
  %2358 = vmatpush2.bf16.msra.mxu0 0
  %2359 = vmatprep.subr.bf16.mxu0 0
  %2360 = vmatpush2.bf16.msra.mxu0 0
  %2361 = vmatprep.subr.bf16.mxu0 0
  %2362 = vmatpush2.bf16.msra.mxu0 0
  %2363 = vmatprep.subr.bf16.mxu0 0
  %2364 = vmatpush2.bf16.msra.mxu0 0
  %2365 = vmatprep.mubr.bf16.mxu0 0
  %2366 = vmatmul.mubr.bf16.gmra.mxu0 %v2332
  %v2367 = vpop.f32.mrf.mxu0
  %v2368 = vadd.f32 %v709, %v2367
  %v2369 = vpop.f32.mrf.mxu0
  %v2370 = vadd.f32 %v713, %v2369
  %v2371 = vpop.f32.mrf.mxu0
  %v2372 = vpop.f32.mrf.mxu0
  %2373 = vdwg.mxu0
  %2374 = vmatprep.subr.bf16.mxu0 0
  %2375 = vmatpush1.bf16.msra.mxu0 %v824
  %2376 = vmatprep.subr.bf16.mxu0 0
  %2377 = vmatpush1.bf16.msra.mxu0 %v821
  %2378 = vmatprep.subr.bf16.mxu0 0
  %2379 = vmatpush1.bf16.msra.mxu0 %v818
  %2380 = vmatprep.subr.bf16.mxu0 0
  %2381 = vmatpush1.bf16.msra.mxu0 %v815
  %2382 = vmatprep.subr.bf16.mxu0 0
  %2383 = vmatpush1.bf16.msra.mxu0 %v812
  %2384 = vmatprep.subr.bf16.mxu0 0
  %2385 = vmatpush1.bf16.msra.mxu0 %v809
  %2386 = vmatprep.subr.bf16.mxu0 0
  %2387 = vmatpush1.bf16.msra.mxu0 %v806
  %2388 = vmatprep.subr.bf16.mxu0 0
  %2389 = vmatpush1.bf16.msra.mxu0 %v803
  %2390 = vmatprep.subr.bf16.mxu0 0
  %2391 = vmatpush2.bf16.msra.mxu0 0
  %2392 = vmatprep.subr.bf16.mxu0 0
  %2393 = vmatpush2.bf16.msra.mxu0 0
  %2394 = vmatprep.subr.bf16.mxu0 0
  %2395 = vmatpush2.bf16.msra.mxu0 0
  %2396 = vmatprep.subr.bf16.mxu0 0
  %2397 = vmatpush2.bf16.msra.mxu0 0
  %2398 = vmatprep.subr.bf16.mxu0 0
  %2399 = vmatpush2.bf16.msra.mxu0 0
  %2400 = vmatprep.subr.bf16.mxu0 0
  %2401 = vmatpush2.bf16.msra.mxu0 0
  %2402 = vmatprep.subr.bf16.mxu0 0
  %2403 = vmatpush2.bf16.msra.mxu0 0
  %2404 = vmatprep.subr.bf16.mxu0 0
  %2405 = vmatpush2.bf16.msra.mxu0 0
  %2406 = vmatprep.mubr.bf16.mxu0 0
  %2407 = vmatmul.mubr.bf16.gmra.mxu0 %v2332
  %v2408 = vpop.f32.mrf.mxu0
  %v2409 = vadd.f32 %v717, %v2408
  %v2410 = vpop.f32.mrf.mxu0
  %v2411 = vpop.f32.mrf.mxu0
  %v2412 = vpop.f32.mrf.mxu0
  %2413 = vdwg.mxu0
  %v2414 = vld [vmem:[#allocation2 + $0x150] sm:$0xff]
  %v2415 = vld [vmem:[#allocation2 + $0x158] sm:$0xff]
  %v2416 = vld [vmem:[#allocation2 + $0x160] sm:$0xff]
  %v2417 = vld [vmem:[#allocation2 + $0x18] sm:$0xff]
  %v2418 = vld [vmem:[#allocation2 + $0x20] sm:$0xff]
  %v2419 = vld [vmem:[#allocation2 + $0x28] sm:$0xff]
  %v2420 = vadd.f32 %v2414, %v2286
  %v2421 = vxor.u32 %v2420, 2147483648
  %v2422 = vmul.f32 %v2421, 1.442695
  %v2423 = vpow.pop %v2422
  %v2424 = vadd.f32 %v2423, 1.0
  %v2425 = vrcp.pop %v2424
  %v2426 = vmul.f32 1.0, %v2425
  %v2427 = vadd.f32 %v2415, %v2288
  %v2428 = vxor.u32 %v2427, 2147483648
  %v2429 = vmul.f32 %v2428, 1.442695
  %v2430 = vpow.pop %v2429
  %v2431 = vadd.f32 %v2430, 1.0
  %v2432 = vrcp.pop %v2431
  %v2433 = vmul.f32 1.0, %v2432
  %v2434 = vmul.f32 %v2426, %v2327
  %v2435 = vadd.f32 %v2416, %v2434
  %v2436 = vtanh.pop %v2435
  %v2437 = vsub.f32 1.0, %v2433
  %v2438 = vmul.f32 %v2437, %v2436
  %v2439 = vmul.f32 %v2433, %v2228
  %v2440 = vadd.f32 %v2438, %v2439
  %v2441 = vadd.f32 %v2417, %v2368
  %v2442 = vxor.u32 %v2441, 2147483648
  %v2443 = vmul.f32 %v2442, 1.442695
  %v2444 = vpow.pop %v2443
  %v2445 = vadd.f32 %v2444, 1.0
  %v2446 = vrcp.pop %v2445
  %v2447 = vmul.f32 1.0, %v2446
  %v2448 = vadd.f32 %v2418, %v2370
  %v2449 = vxor.u32 %v2448, 2147483648
  %v2450 = vmul.f32 %v2449, 1.442695
  %v2451 = vpow.pop %v2450
  %v2452 = vadd.f32 %v2451, 1.0
  %v2453 = vrcp.pop %v2452
  %v2454 = vmul.f32 1.0, %v2453
  %v2455 = vmul.f32 %v2447, %v2409
  %v2456 = vadd.f32 %v2419, %v2455
  %v2457 = vtanh.pop %v2456
  %v2458 = vsub.f32 1.0, %v2454
  %v2459 = vmul.f32 %v2458, %v2457
  %v2460 = vmul.f32 %v2454, %v2249
  %v2461 = vadd.f32 %v2459, %v2460
  %2462 = vst [vmem:[%s11] sm:$0xff] %v2440
  %2463 = vst [vmem:[%s11 + $0x8] sm:$0xff] %v2461
  %v2464 = vpack.c.bf16 %v2440, %v2440
  %v2465 = vld [vmem:[%s7] sm:$0xf]
  %v2466 = vld [vmem:[%s7 + $0x4] sm:$0xf]
  %v2467 = vld [vmem:[%s7 + $0x8] sm:$0xf]
  %v2468 = vld [vmem:[%s7 + $0xc] sm:$0xf]
  %v2469 = vld [vmem:[%s7 + $0x10] sm:$0xf]
  %v2470 = vld [vmem:[%s7 + $0x14] sm:$0xf]
  %v2471 = vld [vmem:[%s7 + $0x18] sm:$0xf]
  %v2472 = vld [vmem:[%s7 + $0x1c] sm:$0xf]
  %v2473 = vld [vmem:[%s7 + $0x20] sm:$0xf]
  %v2474 = vld [vmem:[%s7 + $0x24] sm:$0xf]
  %v2475 = vld [vmem:[%s7 + $0x28] sm:$0xf]
  %v2476 = vld [vmem:[%s7 + $0x2c] sm:$0xf]
  %v2477 = vld [vmem:[%s7 + $0x30] sm:$0xf]
  %v2478 = vld [vmem:[%s7 + $0x34] sm:$0xf]
  %v2479 = vld [vmem:[%s7 + $0x38] sm:$0xf]
  %v2480 = vld [vmem:[%s7 + $0x3c] sm:$0xf]
  %v2481 = vpack.c.bf16 %v2461, %v2461
  %v2482 = vld [vmem:[%s8] sm:$0xf]
  %v2483 = vld [vmem:[%s8 + $0x4] sm:$0xf]
  %v2484 = vld [vmem:[%s8 + $0x8] sm:$0xf]
  %v2485 = vld [vmem:[%s8 + $0xc] sm:$0xf]
  %v2486 = vld [vmem:[%s8 + $0x10] sm:$0xf]
  %v2487 = vld [vmem:[%s8 + $0x14] sm:$0xf]
  %v2488 = vld [vmem:[%s8 + $0x18] sm:$0xf]
  %v2489 = vld [vmem:[%s8 + $0x1c] sm:$0xf]
  %v2490 = vld [vmem:[%s8 + $0x20] sm:$0xf]
  %v2491 = vld [vmem:[%s8 + $0x24] sm:$0xf]
  %v2492 = vld [vmem:[%s8 + $0x28] sm:$0xf]
  %v2493 = vld [vmem:[%s8 + $0x2c] sm:$0xf]
  %v2494 = vld [vmem:[%s8 + $0x30] sm:$0xf]
  %v2495 = vld [vmem:[%s8 + $0x34] sm:$0xf]
  %v2496 = vld [vmem:[%s8 + $0x38] sm:$0xf]
  %v2497 = vld [vmem:[%s8 + $0x3c] sm:$0xf]
  %v2514 = vunpack.c.l.b16 %v2482
  %v2515 = vunpack.c.l.b16 %v2483
  %v2516 = vunpack.c.l.b16 %v2484
  %v2517 = vunpack.c.l.b16 %v2485
  %v2518 = vunpack.c.l.b16 %v2486
  %v2519 = vunpack.c.l.b16 %v2487
  %v2520 = vunpack.c.l.b16 %v2488
  %v2521 = vunpack.c.l.b16 %v2489
  %v2522 = vunpack.c.l.b16 %v2490
  %v2523 = vunpack.c.l.b16 %v2491
  %v2524 = vunpack.c.l.b16 %v2492
  %v2525 = vunpack.c.l.b16 %v2493
  %v2526 = vunpack.c.l.b16 %v2494
  %v2527 = vunpack.c.l.b16 %v2495
  %v2528 = vunpack.c.l.b16 %v2496
  %v2529 = vunpack.c.l.b16 %v2497
  %v2530 = vpack.c.b16 %v2515, %v2514
  %v2531 = vpack.c.b16 %v2517, %v2516
  %v2532 = vpack.c.b16 %v2519, %v2518
  %v2533 = vpack.c.b16 %v2521, %v2520
  %v2534 = vpack.c.b16 %v2523, %v2522
  %v2535 = vpack.c.b16 %v2525, %v2524
  %v2536 = vpack.c.b16 %v2527, %v2526
  %v2537 = vpack.c.b16 %v2529, %v2528
  %2546 = vmatprep.subr.bf16.mxu0 0
  %2547 = vmatpush1.bf16.msra.mxu0 %v2537
  %2548 = vmatprep.subr.bf16.mxu0 0
  %2549 = vmatpush1.bf16.msra.mxu0 %v2536
  %2550 = vmatprep.subr.bf16.mxu0 0
  %2551 = vmatpush1.bf16.msra.mxu0 %v2535
  %2552 = vmatprep.subr.bf16.mxu0 0
  %2553 = vmatpush1.bf16.msra.mxu0 %v2534
  %2554 = vmatprep.subr.bf16.mxu0 0
  %2555 = vmatpush1.bf16.msra.mxu0 %v2533
  %2556 = vmatprep.subr.bf16.mxu0 0
  %2557 = vmatpush1.bf16.msra.mxu0 %v2532
  %2558 = vmatprep.subr.bf16.mxu0 0
  %2559 = vmatpush1.bf16.msra.mxu0 %v2531
  %2560 = vmatprep.subr.bf16.mxu0 0
  %2561 = vmatpush1.bf16.msra.mxu0 %v2530
  %2562 = vmatprep.subr.bf16.mxu0 0
  %2563 = vmatpush2.bf16.msra.mxu0 0
  %2564 = vmatprep.subr.bf16.mxu0 0
  %2565 = vmatpush2.bf16.msra.mxu0 0
  %2566 = vmatprep.subr.bf16.mxu0 0
  %2567 = vmatpush2.bf16.msra.mxu0 0
  %2568 = vmatprep.subr.bf16.mxu0 0
  %2569 = vmatpush2.bf16.msra.mxu0 0
  %2570 = vmatprep.subr.bf16.mxu0 0
  %2571 = vmatpush2.bf16.msra.mxu0 0
  %2572 = vmatprep.subr.bf16.mxu0 0
  %2573 = vmatpush2.bf16.msra.mxu0 0
  %2574 = vmatprep.subr.bf16.mxu0 0
  %2575 = vmatpush2.bf16.msra.mxu0 0
  %2576 = vmatprep.subr.bf16.mxu0 0
  %2577 = vmatpush2.bf16.msra.mxu0 0
  %2578 = vmatprep.mubr.bf16.mxu0 0
  %2579 = vmatmul.mubr.bf16.gmra.mxu0 %v2481
  %v2580 = vpop.f32.mrf.mxu0
  %v2581 = vadd.f32 0.0, %v2580
  %v2582 = vpop.f32.mrf.mxu0
  %v2583 = vpop.f32.mrf.mxu0
  %v2584 = vpop.f32.mrf.mxu0
  %2585 = vdwg.mxu0
  %v2602 = vunpack.c.l.b16 %v2465
  %v2603 = vunpack.c.l.b16 %v2466
  %v2604 = vunpack.c.l.b16 %v2467
  %v2605 = vunpack.c.l.b16 %v2468
  %v2606 = vunpack.c.l.b16 %v2469
  %v2607 = vunpack.c.l.b16 %v2470
  %v2608 = vunpack.c.l.b16 %v2471
  %v2609 = vunpack.c.l.b16 %v2472
  %v2610 = vunpack.c.l.b16 %v2473
  %v2611 = vunpack.c.l.b16 %v2474
  %v2612 = vunpack.c.l.b16 %v2475
  %v2613 = vunpack.c.l.b16 %v2476
  %v2614 = vunpack.c.l.b16 %v2477
  %v2615 = vunpack.c.l.b16 %v2478
  %v2616 = vunpack.c.l.b16 %v2479
  %v2617 = vunpack.c.l.b16 %v2480
  %v2618 = vpack.c.b16 %v2603, %v2602
  %v2619 = vpack.c.b16 %v2605, %v2604
  %v2620 = vpack.c.b16 %v2607, %v2606
  %v2621 = vpack.c.b16 %v2609, %v2608
  %v2622 = vpack.c.b16 %v2611, %v2610
  %v2623 = vpack.c.b16 %v2613, %v2612
  %v2624 = vpack.c.b16 %v2615, %v2614
  %v2625 = vpack.c.b16 %v2617, %v2616
  %2634 = vmatprep.subr.bf16.mxu0 0
  %2635 = vmatpush1.bf16.msra.mxu0 %v2625
  %2636 = vmatprep.subr.bf16.mxu0 0
  %2637 = vmatpush1.bf16.msra.mxu0 %v2624
  %2638 = vmatprep.subr.bf16.mxu0 0
  %2639 = vmatpush1.bf16.msra.mxu0 %v2623
  %2640 = vmatprep.subr.bf16.mxu0 0
  %2641 = vmatpush1.bf16.msra.mxu0 %v2622
  %2642 = vmatprep.subr.bf16.mxu0 0
  %2643 = vmatpush1.bf16.msra.mxu0 %v2621
  %2644 = vmatprep.subr.bf16.mxu0 0
  %2645 = vmatpush1.bf16.msra.mxu0 %v2620
  %2646 = vmatprep.subr.bf16.mxu0 0
  %2647 = vmatpush1.bf16.msra.mxu0 %v2619
  %2648 = vmatprep.subr.bf16.mxu0 0
  %2649 = vmatpush1.bf16.msra.mxu0 %v2618
  %2650 = vmatprep.subr.bf16.mxu0 0
  %2651 = vmatpush2.bf16.msra.mxu0 0
  %2652 = vmatprep.subr.bf16.mxu0 0
  %2653 = vmatpush2.bf16.msra.mxu0 0
  %2654 = vmatprep.subr.bf16.mxu0 0
  %2655 = vmatpush2.bf16.msra.mxu0 0
  %2656 = vmatprep.subr.bf16.mxu0 0
  %2657 = vmatpush2.bf16.msra.mxu0 0
  %2658 = vmatprep.subr.bf16.mxu0 0
  %2659 = vmatpush2.bf16.msra.mxu0 0
  %2660 = vmatprep.subr.bf16.mxu0 0
  %2661 = vmatpush2.bf16.msra.mxu0 0
  %2662 = vmatprep.subr.bf16.mxu0 0
  %2663 = vmatpush2.bf16.msra.mxu0 0
  %2664 = vmatprep.subr.bf16.mxu0 0
  %2665 = vmatpush2.bf16.msra.mxu0 0
  %2666 = vmatprep.mubr.bf16.mxu0 0
  %2667 = vmatmul.mubr.bf16.gmra.mxu0 %v2464
  %v2668 = vpop.f32.mrf.mxu0
  %v2669 = vadd.f32 %v2581, %v2668
  %v2670 = vpop.f32.mrf.mxu0
  %v2671 = vpop.f32.mrf.mxu0
  %v2672 = vpop.f32.mrf.mxu0
  %2673 = vdwg.mxu0
  %v2674 = vld [vmem:[%s9] sm:$0x1]
  %v2676 = vlaneseq
  %v2677 = vshrl.u32 %v2676, 7
  %v2678 = vsub.s32 0, %v2677
  %v2679 = vrot.slane %v2674, %v2678
  %v2681 = vadd.f32 %v2669, %v2679
  %2682 = vst [vmem:[%s10] sm:$0xff] %v2681
  // Predicated region
  $region42: #{gru_model_forward.1} parent=0 // pred_check
    _
  $region43: #{gru_model_forward.1} parent=0 // pred_check_branch
    %2684 = sbr.rel (0) target = $region45
  $region44: #{gru_model_forward.1} parent=0 // pred_region
    _
  $region45: #{gru_model_forward.1} parent=0 // pred_fallthru
    _
  // Predicated region
  $region46: #{gru_model_forward.1} parent=0 // pred_check
    _
  $region47: #{gru_model_forward.1} parent=0 // pred_check_branch
    %2686 = sbr.rel (0) target = $region49
  $region48: #{gru_model_forward.1} parent=0 // pred_region
    _
  $region49: #{gru_model_forward.1} parent=0 // pred_fallthru
    _
  // Predicated region
  $region50: #{gru_model_forward.1} parent=0 // pred_check
    _
  $region51: #{gru_model_forward.1} parent=0 // pred_check_branch
    %2688 = sbr.rel (0) target = $region53
  $region52: #{gru_model_forward.1} parent=0 // pred_region
    _
  $region53: #{gru_model_forward.1} parent=0 // pred_fallthru
    _
  // Predicated region
  $region54: #{gru_model_forward.1} parent=0 // pred_check
    _
  $region55: #{gru_model_forward.1} parent=0 // pred_check_branch
    %2690 = sbr.rel (0) target = $region57
  $region56: #{gru_model_forward.1} parent=0 // pred_region
    _
  $region57: #{gru_model_forward.1} parent=0 // pred_fallthru
    _

</llo_original>
